<compile_context>
chip_gen: v7x
topology: tpu7x:2x2x1
jax: 0.10.0
libtpu: 0.0.40
codegen_flags: <defaults>
</compile_context>

<pallas_src>
import jax
import jax.numpy as jnp
from jax.experimental import pallas as pl
from jax.experimental.pallas import tpu as pltpu


# ----------------------------------------------------------------------------
# Hardware query (VMEM per TensorCore); conservative v7x fallback.
# ----------------------------------------------------------------------------
def _vmem_capacity_bytes():
    try:
        cap = getattr(pltpu.get_tpu_info(), "vmem_capacity_bytes", None)
        if cap:
            return int(cap)
    except Exception:
        pass
    return 64 * 1024 * 1024


# ----------------------------------------------------------------------------
# Kernel A: resident-slab (single HBM read per element). One grid step = one batch
# element; pool, attention, adapters and fuse all computed from the VMEM-resident slab.
# ----------------------------------------------------------------------------
def _bev_fuse_slab_kernel(bev_ref, sem_ref, com_ref,
                          w_sem_ref, b_sem_ref, w_com_ref, b_com_ref,
                          w_ab_ref, b_ab_ref, w_as_ref, b_as_ref, w_ac_ref, b_ac_ref,
                          out_ref):
    P = bev_ref.shape[1]
    inv_p = jnp.float32(1.0 / P)
    bev = bev_ref[0]          # (P, C)   input dtype
    sem = sem_ref[0]          # (P, C/2)
    com = com_ref[0]          # (P, C/2)

    # Channel attention (tiny): global pool -> 1x1 conv -> sigmoid, all f32.
    # Adapter is linear, so mean(adapter(x)) == adapter(mean(x)).
    pooled_bev = jnp.sum(bev.astype(jnp.float32), axis=0, keepdims=True) * inv_p   # (1, C)
    pooled_sem = jnp.sum(sem.astype(jnp.float32), axis=0, keepdims=True) * inv_p   # (1, C/2)
    pooled_com = jnp.sum(com.astype(jnp.float32), axis=0, keepdims=True) * inv_p
    pooled_sem = jnp.dot(pooled_sem, w_sem_ref[...],
                         preferred_element_type=jnp.float32) + b_sem_ref[...]
    pooled_com = jnp.dot(pooled_com, w_com_ref[...],
                         preferred_element_type=jnp.float32) + b_com_ref[...]

    a_b = jax.nn.sigmoid(jnp.dot(pooled_bev, w_ab_ref[...],
                                 preferred_element_type=jnp.float32) + b_ab_ref[...])
    a_s = jax.nn.sigmoid(jnp.dot(pooled_sem, w_as_ref[...],
                                 preferred_element_type=jnp.float32) + b_as_ref[...])
    a_c = jax.nn.sigmoid(jnp.dot(pooled_com, w_ac_ref[...],
                                 preferred_element_type=jnp.float32) + b_ac_ref[...])

    # Fold attention + biases into the adapter weights: fewer full-width VPU passes.
    #   (x @ W + b) * a == x @ (W * a) + b * a
    w_s_f = (w_sem_ref[...] * a_s).astype(sem.dtype)      # (C/2, C)
    w_c_f = (w_com_ref[...] * a_c).astype(com.dtype)
    bias_f = b_sem_ref[...] * a_s + b_com_ref[...] * a_c   # (1, C) f32

    fused = (bev.astype(jnp.float32) * a_b
             + jnp.dot(sem, w_s_f, preferred_element_type=jnp.float32)
             + jnp.dot(com, w_c_f, preferred_element_type=jnp.float32)
             + bias_f)
    out_ref[0] = fused.astype(out_ref.dtype)


# ----------------------------------------------------------------------------
# Kernel B: streaming fuse (attention + biases pre-folded into the adapter weights).
# Grid is a single flattened parallel axis over (batch, pixel-tile).
# ----------------------------------------------------------------------------
def _bev_fuse_stream_kernel(bev_ref, sem_ref, com_ref,
                            w_sem_ref, w_com_ref, vec_ref, out_ref):
    # Adapter 1x1 convs (attention already folded into the weights) -> MXU, f32 acc.
    sem = jnp.dot(sem_ref[0], w_sem_ref[0], preferred_element_type=jnp.float32)
    com = jnp.dot(com_ref[0], w_com_ref[0], preferred_element_type=jnp.float32)

    vecs = vec_ref[0]           # (2, C) f32: row 0 = attn_bev, row 1 = folded bias
    attn_bev = vecs[0:1, :]
    bias_f = vecs[1:2, :]

    fused = bev_ref[0].astype(jnp.float32) * attn_bev + sem + com + bias_f
    out_ref[0] = fused.astype(out_ref.dtype)


# ----------------------------------------------------------------------------
# Wrapper: NHWC in, NHWC out (no layout transposes — this op is HBM-bound).
# ----------------------------------------------------------------------------
def bev_fusion_pallas(bev, sem, com, params, *, pixel_tile=None, force_streaming=False):
    """bev: (N, H, W, C); sem/com: (N, H, W, C//2). Returns (N, H, W, C).

    Works for f32 or bf16 inputs (matmuls / fuse accumulate in f32; output dtype = bev dtype).
    """
    N, H, W, C = bev.shape
    Ch = sem.shape[-1]
    assert Ch == C // 2 and com.shape[-1] == Ch
    P = H * W
    dtype = bev.dtype
    itemsize = jnp.dtype(dtype).itemsize

    (w_sem, b_sem, w_com, b_com,
     w_ab, b_ab, w_as, b_as, w_ac, b_ac) = params

    # Free reshapes (no transpose): (N, H, W, C) -> (N, P, C); channels stay on lanes.
    bev_p = bev.reshape(N, P, C)
    sem_p = sem.reshape(N, P, Ch)
    com_p = com.reshape(N, P, Ch)

    cap = _vmem_capacity_bytes()

    # ---- path selection -----------------------------------------------------
    # Resident slab = single HBM read (3C elems/pixel vs 5C for two-pass). Gate on a
    # conservative VMEM footprint estimate (double-buffered slabs + f32 temps).
    in_bytes = P * (C + 2 * Ch) * itemsize
    out_bytes = P * C * itemsize
    slab_est = 2 * (in_bytes + out_bytes) + 5 * P * C * 4
    use_slab = (not force_streaming) and slab_est <= int(0.55 * cap)
    # On a small-VMEM chip (v7x proxy: 2 TensorCores) with N == 1 the slab path would
    # leave one core idle; prefer the streaming path's flattened parallel grid there.
    if cap < 100 * 1024 * 1024 and N < 2:
        use_slab = False

    if use_slab:
        out = pl.pallas_call(
            _bev_fuse_slab_kernel,
            out_shape=jax.ShapeDtypeStruct((N, P, C), dtype),
            grid_spec=pltpu.PrefetchScalarGridSpec(
                num_scalar_prefetch=0,
                grid=(N,),
                in_specs=[
                    pl.BlockSpec((1, P, C), lambda n: (n, 0, 0)),
                    pl.BlockSpec((1, P, Ch), lambda n: (n, 0, 0)),
                    pl.BlockSpec((1, P, Ch), lambda n: (n, 0, 0)),
                    pl.BlockSpec((Ch, C), lambda n: (0, 0)),
                    pl.BlockSpec((1, C), lambda n: (0, 0)),
                    pl.BlockSpec((Ch, C), lambda n: (0, 0)),
                    pl.BlockSpec((1, C), lambda n: (0, 0)),
                    pl.BlockSpec((C, C), lambda n: (0, 0)),
                    pl.BlockSpec((1, C), lambda n: (0, 0)),
                    pl.BlockSpec((C, C), lambda n: (0, 0)),
                    pl.BlockSpec((1, C), lambda n: (0, 0)),
                    pl.BlockSpec((C, C), lambda n: (0, 0)),
                    pl.BlockSpec((1, C), lambda n: (0, 0)),
                ],
                out_specs=pl.BlockSpec((1, P, C), lambda n: (n, 0, 0)),
            ),
            compiler_params=pltpu.CompilerParams(
                dimension_semantics=("parallel",),
                vmem_limit_bytes=int(0.75 * cap),
            ),
        )(bev_p, sem_p, com_p,
          w_sem, b_sem, w_com, b_com, w_ab, b_ab, w_as, b_as, w_ac, b_ac)
        return out.reshape(N, H, W, C)

    # ---- streaming two-pass path -------------------------------------------
    # Stage 1 (tiny, plain JAX): global pools + attention convs + sigmoid, then fold the
    # per-batch attention vectors and adapter biases into the adapter weights.
    inv_p = jnp.float32(1.0 / P)
    pooled_bev = jnp.sum(bev_p.astype(jnp.float32), axis=1) * inv_p                    # (N, C)
    pooled_sem = (jnp.sum(sem_p.astype(jnp.float32), axis=1) * inv_p) @ w_sem + b_sem  # (N, C)
    pooled_com = (jnp.sum(com_p.astype(jnp.float32), axis=1) * inv_p) @ w_com + b_com

    a_b = jax.nn.sigmoid(pooled_bev @ w_ab + b_ab)                                     # (N, C)
    a_s = jax.nn.sigmoid(pooled_sem @ w_as + b_as)
    a_c = jax.nn.sigmoid(pooled_com @ w_ac + b_ac)

    w_sem_f = (w_sem[None, :, :] * a_s[:, None, :]).astype(dtype)                      # (N, C/2, C)
    w_com_f = (w_com[None, :, :] * a_c[:, None, :]).astype(dtype)
    bias_f = b_sem * a_s + b_com * a_c                                                 # (N, C) f32
    vecs = jnp.stack([a_b, bias_f], axis=1)                                            # (N, 2, C) f32

    # Stage 2: streaming fuse kernel, flattened parallel grid over (batch, pixel tile).
    if pixel_tile is None:
        big_vmem = cap >= 100 * 1024 * 1024     # v5e/v6e: 128 MiB; v7x: 64 MiB
        pixel_tile = (8192 if itemsize <= 2 else 4096) if big_vmem \
            else (4096 if itemsize <= 2 else 2048)
    TP = min(int(pixel_tile), P)
    if TP < P:
        TP = max(16, (TP // 16) * 16)           # sublane-friendly for f32 and bf16
    n_tiles = pl.cdiv(P, TP)                    # last tile padded if TP does not divide P
    grid = (N * n_tiles,)

    def px_map(i):
        return (i // n_tiles, i % n_tiles, 0)

    def per_batch_map(i):
        return (i // n_tiles, 0, 0)

    # NOTE: if xprof ever shows exposed output/bev DMA, add pipeline_mode=pl.Buffered(3)
    # to the bev input spec and out_specs; footprint headroom is ample.
    out = pl.pallas_call(
        _bev_fuse_stream_kernel,
        out_shape=jax.ShapeDtypeStruct((N, P, C), dtype),
        grid_spec=pltpu.PrefetchScalarGridSpec(
            num_scalar_prefetch=0,
            grid=grid,
            in_specs=[
                pl.BlockSpec((1, TP, C), px_map),
                pl.BlockSpec((1, TP, Ch), px_map),
                pl.BlockSpec((1, TP, Ch), px_map),
                pl.BlockSpec((1, Ch, C), per_batch_map),
                pl.BlockSpec((1, Ch, C), per_batch_map),
                pl.BlockSpec((1, 2, C), per_batch_map),
            ],
            out_specs=pl.BlockSpec((1, TP, C), px_map),
        ),
        compiler_params=pltpu.CompilerParams(
            dimension_semantics=("parallel",),
            vmem_limit_bytes=min(48 * 1024 * 1024, int(0.6 * cap)),
        ),
    )(bev_p, sem_p, com_p, w_sem_f, w_com_f, vecs)
    return out.reshape(N, H, W, C)


# ----------------------------------------------------------------------------
# Parameters & pure-JAX reference (mirrors the PyTorch NCHW forward exactly).
# ----------------------------------------------------------------------------
def make_params(key, C):
    """Deterministic synthetic parameters (1x1 conv weights stored as (C_in, C_out))."""
    Ch = C // 2
    ks = jax.random.split(key, 10)
    scale = 0.1
    w_sem = scale * jax.random.normal(ks[0], (Ch, C), jnp.float32)
    b_sem = scale * jax.random.normal(ks[1], (1, C), jnp.float32)
    w_com = scale * jax.random.normal(ks[2], (Ch, C), jnp.float32)
    b_com = scale * jax.random.normal(ks[3], (1, C), jnp.float32)
    w_ab = scale * jax.random.normal(ks[4], (C, C), jnp.float32)
    b_ab = scale * jax.random.normal(ks[5], (1, C), jnp.float32)
    w_as = scale * jax.random.normal(ks[6], (C, C), jnp.float32)
    b_as = scale * jax.random.normal(ks[7], (1, C), jnp.float32)
    w_ac = scale * jax.random.normal(ks[8], (C, C), jnp.float32)
    b_ac = scale * jax.random.normal(ks[9], (1, C), jnp.float32)
    return (w_sem, b_sem, w_com, b_com, w_ab, b_ab, w_as, b_as, w_ac, b_ac)


def bev_fusion_ref_nchw(bev, sem, com, params):
    """Pure-JAX reference mirroring the PyTorch forward in NCHW (f32)."""
    (w_sem, b_sem, w_com, b_com,
     w_ab, b_ab, w_as, b_as, w_ac, b_ac) = params

    def conv1x1(x_nchw, w_io, b):               # w_io: (C_in, C_out)
        y = jnp.einsum("nchw,cd->ndhw", x_nchw, w_io)
        return y + b.reshape(1, -1, 1, 1)

    def attn(x_nchw, w_io, b):
        pooled = jnp.mean(x_nchw, axis=(2, 3))              # AdaptiveAvgPool2d(1)
        a = jax.nn.sigmoid(pooled @ w_io + b)               # 1x1 conv + sigmoid
        return a[:, :, None, None]

    sem = conv1x1(sem, w_sem, b_sem)
    com = conv1x1(com, w_com, b_com)
    return (bev * attn(bev, w_ab, b_ab)
            + sem * attn(sem, w_as, b_as)
            + com * attn(com, w_ac, b_ac))


if __name__ == "__main__":
    key = jax.random.PRNGKey(0)
    k_bev, k_sem, k_com, k_par = jax.random.split(key, 4)

    C = 128                                     # lane-dense channel axis (production width)
    params = make_params(k_par, C)

    to_nchw = lambda x: jnp.transpose(x, (0, 3, 1, 2))
    from_nchw = lambda x: jnp.transpose(x, (0, 2, 3, 1))

    def run_and_check(bev, sem, com, *, atol, rtol, **kw):
        out = bev_fusion_pallas(bev, sem, com, params, **kw)
        out = jax.block_until_ready(out)
        ref_nchw = bev_fusion_ref_nchw(to_nchw(bev).astype(jnp.float32),
                                       to_nchw(sem).astype(jnp.float32),
                                       to_nchw(com).astype(jnp.float32), params)
        ref = from_nchw(ref_nchw)
        assert out.shape == bev.shape
        assert out.dtype == bev.dtype
        assert jnp.allclose(out.astype(jnp.float32), ref, atol=atol, rtol=rtol), \
            "mismatch vs reference"

    # Case 1: f32, resident-slab single-read path (per-batch slab fits VMEM).
    N, H, W = 2, 24, 24
    bev = jax.random.normal(k_bev, (N, H, W, C), jnp.float32)
    sem = jax.random.normal(k_sem, (N, H, W, C // 2), jnp.float32)
    com = jax.random.normal(k_com, (N, H, W, C // 2), jnp.float32)
    run_and_check(bev, sem, com, atol=2e-4, rtol=2e-4)

    # Case 2: f32, streaming path with a non-divisible pixel count (padded tail tile)
    # and a flattened parallel grid.
    N2, H2, W2 = 1, 27, 25                      # P = 675, not a multiple of the tile
    bev2 = jax.random.normal(k_bev, (N2, H2, W2, C), jnp.float32)
    sem2 = jax.random.normal(k_sem, (N2, H2, W2, C // 2), jnp.float32)
    com2 = jax.random.normal(k_com, (N2, H2, W2, C // 2), jnp.float32)
    run_and_check(bev2, sem2, com2, atol=2e-4, rtol=2e-4,
                  pixel_tile=256, force_streaming=True)

    # Case 3: bf16 streaming (halved HBM traffic; f32 accumulation inside the kernel).
    run_and_check(bev2.astype(jnp.bfloat16),
                  sem2.astype(jnp.bfloat16),
                  com2.astype(jnp.bfloat16),
                  atol=5e-2, rtol=5e-2, pixel_tile=256, force_streaming=True)

    print("KERNEL_OK")
</pallas_src>

<mosaic_0001>
module attributes {stable_mosaic.version = 11 : i64} {
  func.func @_bev_fuse_slab_kernel(%arg0: i32, %arg1: memref<1x576x128xf32, #tpu.memory_space<vmem>>, %arg2: memref<1x576x64xf32, #tpu.memory_space<vmem>>, %arg3: memref<1x576x64xf32, #tpu.memory_space<vmem>>, %arg4: memref<64x128xf32, #tpu.memory_space<vmem>>, %arg5: memref<1x128xf32, #tpu.memory_space<vmem>>, %arg6: memref<64x128xf32, #tpu.memory_space<vmem>>, %arg7: memref<1x128xf32, #tpu.memory_space<vmem>>, %arg8: memref<128x128xf32, #tpu.memory_space<vmem>>, %arg9: memref<1x128xf32, #tpu.memory_space<vmem>>, %arg10: memref<128x128xf32, #tpu.memory_space<vmem>>, %arg11: memref<1x128xf32, #tpu.memory_space<vmem>>, %arg12: memref<128x128xf32, #tpu.memory_space<vmem>>, %arg13: memref<1x128xf32, #tpu.memory_space<vmem>>, %arg14: memref<1x576x128xf32, #tpu.memory_space<vmem>>) attributes {dimension_semantics = [#tpu.dimension_semantics<parallel>], iteration_bounds = array<i64: 2>, scalar_prefetch = 0 : i64, scratch_operands = 0 : i64, tpu.core_type = #tpu.core_type<tc>, window_params = [{transform_indices = @transform_0, window_bounds = array<i64: 1, 576, 128>}, {transform_indices = @transform_1, window_bounds = array<i64: 1, 576, 64>}, {transform_indices = @transform_2, window_bounds = array<i64: 1, 576, 64>}, {pipeline_mode = #tpu.pipeline_mode<synchronous>, transform_indices = @transform_3, window_bounds = array<i64: 64, 128>}, {pipeline_mode = #tpu.pipeline_mode<synchronous>, transform_indices = @transform_4, window_bounds = array<i64: 1, 128>}, {pipeline_mode = #tpu.pipeline_mode<synchronous>, transform_indices = @transform_5, window_bounds = array<i64: 64, 128>}, {pipeline_mode = #tpu.pipeline_mode<synchronous>, transform_indices = @transform_6, window_bounds = array<i64: 1, 128>}, {pipeline_mode = #tpu.pipeline_mode<synchronous>, transform_indices = @transform_7, window_bounds = array<i64: 128, 128>}, {pipeline_mode = #tpu.pipeline_mode<synchronous>, transform_indices = @transform_8, window_bounds = array<i64: 1, 128>}, {pipeline_mode = #tpu.pipeline_mode<synchronous>, transform_indices = @transform_9, window_bounds = array<i64: 128, 128>}, {pipeline_mode = #tpu.pipeline_mode<synchronous>, transform_indices = @transform_10, window_bounds = array<i64: 1, 128>}, {pipeline_mode = #tpu.pipeline_mode<synchronous>, transform_indices = @transform_11, window_bounds = array<i64: 128, 128>}, {pipeline_mode = #tpu.pipeline_mode<synchronous>, transform_indices = @transform_12, window_bounds = array<i64: 1, 128>}, {transform_indices = @transform_13, window_bounds = array<i64: 1, 576, 128>}]} {
    %c0 = arith.constant 0 : index
    %c0_0 = arith.constant 0 : index
    %c0_1 = arith.constant 0 : index
    %0 = vector.load %arg1[%c0, %c0_0, %c0_1] : memref<1x576x128xf32, #tpu.memory_space<vmem>>, vector<1x576x128xf32>
    %1 = vector.shape_cast %0 : vector<1x576x128xf32> to vector<576x128xf32>
    %c0_2 = arith.constant 0 : index
    %c0_3 = arith.constant 0 : index
    %c0_4 = arith.constant 0 : index
    %2 = vector.load %arg2[%c0_2, %c0_3, %c0_4] : memref<1x576x64xf32, #tpu.memory_space<vmem>>, vector<1x576x64xf32>
    %3 = vector.shape_cast %2 : vector<1x576x64xf32> to vector<576x64xf32>
    %c0_5 = arith.constant 0 : index
    %c0_6 = arith.constant 0 : index
    %c0_7 = arith.constant 0 : index
    %4 = vector.load %arg3[%c0_5, %c0_6, %c0_7] : memref<1x576x64xf32, #tpu.memory_space<vmem>>, vector<1x576x64xf32>
    %5 = vector.shape_cast %4 : vector<1x576x64xf32> to vector<576x64xf32>
    %cst = arith.constant dense<0.000000e+00> : vector<128xf32>
    %6 = vector.multi_reduction <add>, %1, %cst [0] : vector<576x128xf32> to vector<128xf32>
    %7 = vector.shape_cast %6 : vector<128xf32> to vector<1x128xf32>
    %cst_8 = arith.constant 0.00173611112 : f32
    %8 = vector.broadcast %cst_8 : f32 to vector<1x128xf32>
    %9 = arith.mulf %7, %8 : vector<1x128xf32>
    %cst_9 = arith.constant dense<0.000000e+00> : vector<64xf32>
    %10 = vector.multi_reduction <add>, %3, %cst_9 [0] : vector<576x64xf32> to vector<64xf32>
    %11 = vector.shape_cast %10 : vector<64xf32> to vector<1x64xf32>
    %cst_10 = arith.constant 0.00173611112 : f32
    %12 = vector.broadcast %cst_10 : f32 to vector<1x64xf32>
    %13 = arith.mulf %11, %12 : vector<1x64xf32>
    %cst_11 = arith.constant dense<0.000000e+00> : vector<64xf32>
    %14 = vector.multi_reduction <add>, %5, %cst_11 [0] : vector<576x64xf32> to vector<64xf32>
    %15 = vector.shape_cast %14 : vector<64xf32> to vector<1x64xf32>
    %cst_12 = arith.constant 0.00173611112 : f32
    %16 = vector.broadcast %cst_12 : f32 to vector<1x64xf32>
    %17 = arith.mulf %15, %16 : vector<1x64xf32>
    %c0_13 = arith.constant 0 : index
    %c0_14 = arith.constant 0 : index
    %18 = vector.load %arg4[%c0_13, %c0_14] : memref<64x128xf32, #tpu.memory_space<vmem>>, vector<64x128xf32>
    %cst_15 = arith.constant dense<0.000000e+00> : vector<1x128xf32>
    %19 = tpu.matmul %13, %18, %cst_15 {dimension_numbers = #tpu.dot_dimension_numbers<[1], [0], [0], [1], [0, 0, 1, 1], [], []>} : vector<1x64xf32>, vector<64x128xf32>, vector<1x128xf32> -> vector<1x128xf32>
    %c0_16 = arith.constant 0 : index
    %c0_17 = arith.constant 0 : index
    %20 = vector.load %arg5[%c0_16, %c0_17] : memref<1x128xf32, #tpu.memory_space<vmem>>, vector<1x128xf32>
    %21 = arith.addf %19, %20 : vector<1x128xf32>
    %c0_18 = arith.constant 0 : index
    %c0_19 = arith.constant 0 : index
    %22 = vector.load %arg6[%c0_18, %c0_19] : memref<64x128xf32, #tpu.memory_space<vmem>>, vector<64x128xf32>
    %cst_20 = arith.constant dense<0.000000e+00> : vector<1x128xf32>
    %23 = tpu.matmul %17, %22, %cst_20 {dimension_numbers = #tpu.dot_dimension_numbers<[1], [0], [0], [1], [0, 0, 1, 1], [], []>} : vector<1x64xf32>, vector<64x128xf32>, vector<1x128xf32> -> vector<1x128xf32>
    %c0_21 = arith.constant 0 : index
    %c0_22 = arith.constant 0 : index
    %24 = vector.load %arg7[%c0_21, %c0_22] : memref<1x128xf32, #tpu.memory_space<vmem>>, vector<1x128xf32>
    %25 = arith.addf %23, %24 : vector<1x128xf32>
    %c0_23 = arith.constant 0 : index
    %c0_24 = arith.constant 0 : index
    %26 = vector.load %arg8[%c0_23, %c0_24] : memref<128x128xf32, #tpu.memory_space<vmem>>, vector<128x128xf32>
    %cst_25 = arith.constant dense<0.000000e+00> : vector<1x128xf32>
    %27 = tpu.matmul %9, %26, %cst_25 {dimension_numbers = #tpu.dot_dimension_numbers<[1], [0], [0], [1], [0, 0, 1, 1], [], []>} : vector<1x128xf32>, vector<128x128xf32>, vector<1x128xf32> -> vector<1x128xf32>
    %c0_26 = arith.constant 0 : index
    %c0_27 = arith.constant 0 : index
    %28 = vector.load %arg9[%c0_26, %c0_27] : memref<1x128xf32, #tpu.memory_space<vmem>>, vector<1x128xf32>
    %29 = arith.addf %27, %28 : vector<1x128xf32>
    %30 = arith.negf %29 : vector<1x128xf32>
    %31 = math.exp %30 : vector<1x128xf32>
    %cst_28 = arith.constant 1.000000e+00 : f32
    %32 = vector.broadcast %cst_28 : f32 to vector<1x128xf32>
    %33 = arith.addf %32, %31 : vector<1x128xf32>
    %34 = arith.divf %32, %33 : vector<1x128xf32>
    %c0_29 = arith.constant 0 : index
    %c0_30 = arith.constant 0 : index
    %35 = vector.load %arg10[%c0_29, %c0_30] : memref<128x128xf32, #tpu.memory_space<vmem>>, vector<128x128xf32>
    %cst_31 = arith.constant dense<0.000000e+00> : vector<1x128xf32>
    %36 = tpu.matmul %21, %35, %cst_31 {dimension_numbers = #tpu.dot_dimension_numbers<[1], [0], [0], [1], [0, 0, 1, 1], [], []>} : vector<1x128xf32>, vector<128x128xf32>, vector<1x128xf32> -> vector<1x128xf32>
    %c0_32 = arith.constant 0 : index
    %c0_33 = arith.constant 0 : index
    %37 = vector.load %arg11[%c0_32, %c0_33] : memref<1x128xf32, #tpu.memory_space<vmem>>, vector<1x128xf32>
    %38 = arith.addf %36, %37 : vector<1x128xf32>
    %39 = arith.negf %38 : vector<1x128xf32>
    %40 = math.exp %39 : vector<1x128xf32>
    %cst_34 = arith.constant 1.000000e+00 : f32
    %41 = vector.broadcast %cst_34 : f32 to vector<1x128xf32>
    %42 = arith.addf %41, %40 : vector<1x128xf32>
    %43 = arith.divf %41, %42 : vector<1x128xf32>
    %c0_35 = arith.constant 0 : index
    %c0_36 = arith.constant 0 : index
    %44 = vector.load %arg12[%c0_35, %c0_36] : memref<128x128xf32, #tpu.memory_space<vmem>>, vector<128x128xf32>
    %cst_37 = arith.constant dense<0.000000e+00> : vector<1x128xf32>
    %45 = tpu.matmul %25, %44, %cst_37 {dimension_numbers = #tpu.dot_dimension_numbers<[1], [0], [0], [1], [0, 0, 1, 1], [], []>} : vector<1x128xf32>, vector<128x128xf32>, vector<1x128xf32> -> vector<1x128xf32>
    %c0_38 = arith.constant 0 : index
    %c0_39 = arith.constant 0 : index
    %46 = vector.load %arg13[%c0_38, %c0_39] : memref<1x128xf32, #tpu.memory_space<vmem>>, vector<1x128xf32>
    %47 = arith.addf %45, %46 : vector<1x128xf32>
    %48 = arith.negf %47 : vector<1x128xf32>
    %49 = math.exp %48 : vector<1x128xf32>
    %cst_40 = arith.constant 1.000000e+00 : f32
    %50 = vector.broadcast %cst_40 : f32 to vector<1x128xf32>
    %51 = arith.addf %50, %49 : vector<1x128xf32>
    %52 = arith.divf %50, %51 : vector<1x128xf32>
    %c0_41 = arith.constant 0 : index
    %c0_42 = arith.constant 0 : index
    %53 = vector.load %arg4[%c0_41, %c0_42] : memref<64x128xf32, #tpu.memory_space<vmem>>, vector<64x128xf32>
    %54 = vector.broadcast %43 : vector<1x128xf32> to vector<64x128xf32>
    %55 = arith.mulf %53, %54 : vector<64x128xf32>
    %c0_43 = arith.constant 0 : index
    %c0_44 = arith.constant 0 : index
    %56 = vector.load %arg6[%c0_43, %c0_44] : memref<64x128xf32, #tpu.memory_space<vmem>>, vector<64x128xf32>
    %57 = vector.broadcast %52 : vector<1x128xf32> to vector<64x128xf32>
    %58 = arith.mulf %56, %57 : vector<64x128xf32>
    %c0_45 = arith.constant 0 : index
    %c0_46 = arith.constant 0 : index
    %59 = vector.load %arg5[%c0_45, %c0_46] : memref<1x128xf32, #tpu.memory_space<vmem>>, vector<1x128xf32>
    %60 = arith.mulf %59, %43 : vector<1x128xf32>
    %c0_47 = arith.constant 0 : index
    %c0_48 = arith.constant 0 : index
    %61 = vector.load %arg7[%c0_47, %c0_48] : memref<1x128xf32, #tpu.memory_space<vmem>>, vector<1x128xf32>
    %62 = arith.mulf %61, %52 : vector<1x128xf32>
    %63 = arith.addf %60, %62 : vector<1x128xf32>
    %64 = vector.broadcast %34 : vector<1x128xf32> to vector<576x128xf32>
    %65 = arith.mulf %1, %64 : vector<576x128xf32>
    %cst_49 = arith.constant dense<0.000000e+00> : vector<576x128xf32>
    %66 = tpu.matmul %3, %55, %cst_49 {dimension_numbers = #tpu.dot_dimension_numbers<[1], [0], [0], [1], [0, 0, 1, 1], [], []>} : vector<576x64xf32>, vector<64x128xf32>, vector<576x128xf32> -> vector<576x128xf32>
    %67 = arith.addf %65, %66 : vector<576x128xf32>
    %cst_50 = arith.constant dense<0.000000e+00> : vector<576x128xf32>
    %68 = tpu.matmul %5, %58, %cst_50 {dimension_numbers = #tpu.dot_dimension_numbers<[1], [0], [0], [1], [0, 0, 1, 1], [], []>} : vector<576x64xf32>, vector<64x128xf32>, vector<576x128xf32> -> vector<576x128xf32>
    %69 = arith.addf %67, %68 : vector<576x128xf32>
    %70 = vector.broadcast %63 : vector<1x128xf32> to vector<576x128xf32>
    %71 = arith.addf %69, %70 : vector<576x128xf32>
    %c0_51 = arith.constant 0 : index
    %c0_52 = arith.constant 0 : index
    %c0_53 = arith.constant 0 : index
    %72 = vector.load %arg14[%c0_51, %c0_52, %c0_53] : memref<1x576x128xf32, #tpu.memory_space<vmem>>, vector<1x576x128xf32>
    %73 = vector.shape_cast %72 : vector<1x576x128xf32> to vector<576x128xf32>
    %74 = vector.shape_cast %71 : vector<576x128xf32> to vector<1x576x128xf32>
    tpu.vector_store %arg14[%c0_51, %c0_52, %c0_53], %74 {strides = array<i32>} : memref<1x576x128xf32, #tpu.memory_space<vmem>>, vector<1x576x128xf32>,
    return
  }
  func.func @transform_0(%arg0: i32) -> (i32, i32, i32) {
    %c0_i32 = arith.constant 0 : i32
    %c0_i32_0 = arith.constant 0 : i32
    %c0_i32_1 = arith.constant 0 : i32
    return %arg0, %c0_i32, %c0_i32_0 : i32, i32, i32
  }
  func.func @transform_1(%arg0: i32) -> (i32, i32, i32) {
    %c0_i32 = arith.constant 0 : i32
    %c0_i32_0 = arith.constant 0 : i32
    %c0_i32_1 = arith.constant 0 : i32
    return %arg0, %c0_i32, %c0_i32_0 : i32, i32, i32
  }
  func.func @transform_2(%arg0: i32) -> (i32, i32, i32) {
    %c0_i32 = arith.constant 0 : i32
    %c0_i32_0 = arith.constant 0 : i32
    %c0_i32_1 = arith.constant 0 : i32
    return %arg0, %c0_i32, %c0_i32_0 : i32, i32, i32
  }
  func.func @transform_3(%arg0: i32) -> (i32, i32) {
    %c0_i32 = arith.constant 0 : i32
    %c0_i32_0 = arith.constant 0 : i32
    %c0_i32_1 = arith.constant 0 : i32
    return %c0_i32, %c0_i32_0 : i32, i32
  }
  func.func @transform_4(%arg0: i32) -> (i32, i32) {
    %c0_i32 = arith.constant 0 : i32
    %c0_i32_0 = arith.constant 0 : i32
    %c0_i32_1 = arith.constant 0 : i32
    return %c0_i32, %c0_i32_0 : i32, i32
  }
  func.func @transform_5(%arg0: i32) -> (i32, i32) {
    %c0_i32 = arith.constant 0 : i32
    %c0_i32_0 = arith.constant 0 : i32
    %c0_i32_1 = arith.constant 0 : i32
    return %c0_i32, %c0_i32_0 : i32, i32
  }
  func.func @transform_6(%arg0: i32) -> (i32, i32) {
    %c0_i32 = arith.constant 0 : i32
    %c0_i32_0 = arith.constant 0 : i32
    %c0_i32_1 = arith.constant 0 : i32
    return %c0_i32, %c0_i32_0 : i32, i32
  }
  func.func @transform_7(%arg0: i32) -> (i32, i32) {
    %c0_i32 = arith.constant 0 : i32
    %c0_i32_0 = arith.constant 0 : i32
    %c0_i32_1 = arith.constant 0 : i32
    return %c0_i32, %c0_i32_0 : i32, i32
  }
  func.func @transform_8(%arg0: i32) -> (i32, i32) {
    %c0_i32 = arith.constant 0 : i32
    %c0_i32_0 = arith.constant 0 : i32
    %c0_i32_1 = arith.constant 0 : i32
    return %c0_i32, %c0_i32_0 : i32, i32
  }
  func.func @transform_9(%arg0: i32) -> (i32, i32) {
    %c0_i32 = arith.constant 0 : i32
    %c0_i32_0 = arith.constant 0 : i32
    %c0_i32_1 = arith.constant 0 : i32
    return %c0_i32, %c0_i32_0 : i32, i32
  }
  func.func @transform_10(%arg0: i32) -> (i32, i32) {
    %c0_i32 = arith.constant 0 : i32
    %c0_i32_0 = arith.constant 0 : i32
    %c0_i32_1 = arith.constant 0 : i32
    return %c0_i32, %c0_i32_0 : i32, i32
  }
  func.func @transform_11(%arg0: i32) -> (i32, i32) {
    %c0_i32 = arith.constant 0 : i32
    %c0_i32_0 = arith.constant 0 : i32
    %c0_i32_1 = arith.constant 0 : i32
    return %c0_i32, %c0_i32_0 : i32, i32
  }
  func.func @transform_12(%arg0: i32) -> (i32, i32) {
    %c0_i32 = arith.constant 0 : i32
    %c0_i32_0 = arith.constant 0 : i32
    %c0_i32_1 = arith.constant 0 : i32
    return %c0_i32, %c0_i32_0 : i32, i32
  }
  func.func @transform_13(%arg0: i32) -> (i32, i32, i32) {
    %c0_i32 = arith.constant 0 : i32
    %c0_i32_0 = arith.constant 0 : i32
    %c0_i32_1 = arith.constant 0 : i32
    return %arg0, %c0_i32, %c0_i32_0 : i32, i32, i32
  }
}

</mosaic_0001>

<llo_original>
// kernel: tpu_custom_call.1
$region0: #{tpu_custom_call.1}
  #allocation0 [shape = 'u32[]', space=smem, size = 0x4, offset = 0x4, fixed_abs, tag = 'smem constant byte address 0x4 - core index']
  #allocation1 [shape = 'u32[144,128]{1,0:T(1,128)}', space=vmem, size = 0x12000, scoped, tag = 'internal scratch']
  %s0 = inlined_call_operand.vmem [shape: f32[2,576,128], index: 0, kind: input, shape index: {}]
  %s1 = inlined_call_operand.vmem [shape: f32[2,576,64], index: 1, kind: input, shape index: {}]
  %s2 = inlined_call_operand.vmem [shape: f32[2,576,64], index: 2, kind: input, shape index: {}]
  %s3 = inlined_call_operand.vmem [shape: f32[64,128], index: 3, kind: input, shape index: {}]
  %s4 = inlined_call_operand.vmem [shape: f32[1,128], index: 4, kind: input, shape index: {}]
  %s5 = inlined_call_operand.vmem [shape: f32[64,128], index: 5, kind: input, shape index: {}]
  %s6 = inlined_call_operand.vmem [shape: f32[1,128], index: 6, kind: input, shape index: {}]
  %s7 = inlined_call_operand.vmem [shape: f32[128,128], index: 7, kind: input, shape index: {}]
  %s8 = inlined_call_operand.vmem [shape: f32[1,128], index: 8, kind: input, shape index: {}]
  %s9 = inlined_call_operand.vmem [shape: f32[128,128], index: 9, kind: input, shape index: {}]
  %s10 = inlined_call_operand.vmem [shape: f32[1,128], index: 10, kind: input, shape index: {}]
  %s11 = inlined_call_operand.vmem [shape: f32[128,128], index: 11, kind: input, shape index: {}]
  %s12 = inlined_call_operand.vmem [shape: f32[1,128], index: 12, kind: input, shape index: {}]
  %s13 = inlined_call_operand.hbm [shape: f32[2,576,128], index: 13, kind: output, shape index: {}]
  %s14 = sld [smem:[#allocation0]]
  $region85: #{tpu_custom_call.1} parent=0
    _
  %s16 = ssub.s32 1, %s14
  %s17 = scalar_select 0, %s16, %s14
  $region1: #{tpu_custom_call.1} parent=0
    #allocation2 [shape = 'u8[589824]{0}', space=vmem, size = 0x90000, scoped, tag = 'output window, operand 0']
    #allocation3 [shape = 's32[2]{0}', space=sflag, size = 0x8, scoped, tag = 'scoped memory for tpu_custom_call.1']
    %18 = vsyncpa [#allocation3], 0
    %s19 = scalar_lea.sflag [#allocation3], 1
    %20 = vsyncpa %s19, 0
    loop: start=0, step=1, limit=4
    $region2: #{tpu_custom_call.1} parent=1 // loop_pre_header
      _
    $region3: #{tpu_custom_call.1} parent=1 // loop_header
      %s22 = sphi 0, %s26
      %p23 = scmp.ge.s32.totalorder %s22, 4
      %s32 = sphi 0, %s34
      %s35 = sphi 0, %s32
      %s36 = sphi 0, %s35
      %s52 = sphi 0, %s36
      %s58 = sphi 0, %s60
      %s61 = sphi 0, %s58
      %s62 = sphi 0, %s61
      %s78 = sphi 0, %s62
      %s84 = sphi 0, %s86
      %s87 = sphi 0, %s84
      %s88 = sphi 0, %s87
      %s104 = sphi 0, %s88
      %s108 = sphi 0, %s108
      %s110 = sphi 0, %s108
      %s111 = sphi 0, %s110
      %s125 = sphi 0, %s111
      %s129 = sphi 0, %s129
      %s131 = sphi 0, %s129
      %s132 = sphi 0, %s131
      %s146 = sphi 0, %s132
      %s150 = sphi 0, %s150
      %s152 = sphi 0, %s150
      %s153 = sphi 0, %s152
      %s167 = sphi 0, %s153
      %s171 = sphi 0, %s171
      %s173 = sphi 0, %s171
      %s174 = sphi 0, %s173
      %s188 = sphi 0, %s174
      %s192 = sphi 0, %s192
      %s194 = sphi 0, %s192
      %s195 = sphi 0, %s194
      %s209 = sphi 0, %s195
      %s213 = sphi 0, %s213
      %s215 = sphi 0, %s213
      %s216 = sphi 0, %s215
      %s230 = sphi 0, %s216
      %s234 = sphi 0, %s234
      %s236 = sphi 0, %s234
      %s237 = sphi 0, %s236
      %s251 = sphi 0, %s237
      %s255 = sphi 0, %s255
      %s257 = sphi 0, %s255
      %s258 = sphi 0, %s257
      %s272 = sphi 0, %s258
      %s276 = sphi 0, %s276
      %s278 = sphi 0, %s276
      %s279 = sphi 0, %s278
      %s293 = sphi 0, %s279
      %s297 = sphi 0, %s297
      %s299 = sphi 0, %s297
      %s300 = sphi 0, %s299
      %s314 = sphi 0, %s300
      %s320 = sphi 0, %s322
      %s323 = sphi 0, %s320
      %s324 = sphi 0, %s323
      %s340 = sphi 0, %s324
    $region4: #{tpu_custom_call.1} parent=1 // loop_header_branch
      %25 = sbr.rel (%p23) target = $region8
    $region5: #{tpu_custom_call.1} parent=1 // loop_body
      %s27 = ssub.s32 %s22, 1
      %s28 = ssub.s32 %s22, 2
      %s29 = sadd.s32 %s22, 1
      %s30 = ssub.s32 %s22, %s29
      %p31 = scmp.eq.s32.totalorder %s30, 0
      %s33 = sadd.s32 %s32, 1
      %s34 = scalar_select %p31, %s32, %s33
      %p37 = pneg %p31
      %p38 = scmp.eq.s32.totalorder %s22, 1
      %p39 = por %p37, %p38
      %p40 = scmp.ne.s32.totalorder %s32, %s35
      %p41 = scmp.eq.s32.totalorder %s22, 0
      %p42 = por %p40, %p41
      %p43 = scmp.ne.s32.totalorder %s32, %s35
      %p44 = scmp.eq.s32.totalorder %s27, 1
      %p45 = por %p43, %p44
      %p46 = scmp.ne.s32.totalorder %s35, %s36
      %p47 = scmp.eq.s32.totalorder %s27, 0
      %p48 = por %p46, %p47
      %p49 = scmp.ne.s32.totalorder %s35, %s36
      %p50 = scmp.eq.s32.totalorder %s28, 1
      %p51 = por %p49, %p50
      %p53 = scmp.ne.s32.totalorder %s36, %s52
      %p54 = scmp.eq.s32.totalorder %s28, 0
      %p55 = por %p53, %p54
      %s56 = ssub.s32 %s22, %s29
      %p57 = scmp.eq.s32.totalorder %s56, 0
      %s59 = sadd.s32 %s58, 1
      %s60 = scalar_select %p57, %s58, %s59
      %p63 = pneg %p57
      %p64 = scmp.eq.s32.totalorder %s22, 1
      %p65 = por %p63, %p64
      %p66 = scmp.ne.s32.totalorder %s58, %s61
      %p67 = scmp.eq.s32.totalorder %s22, 0
      %p68 = por %p66, %p67
      %p69 = scmp.ne.s32.totalorder %s58, %s61
      %p70 = scmp.eq.s32.totalorder %s27, 1
      %p71 = por %p69, %p70
      %p72 = scmp.ne.s32.totalorder %s61, %s62
      %p73 = scmp.eq.s32.totalorder %s27, 0
      %p74 = por %p72, %p73
      %p75 = scmp.ne.s32.totalorder %s61, %s62
      %p76 = scmp.eq.s32.totalorder %s28, 1
      %p77 = por %p75, %p76
      %p79 = scmp.ne.s32.totalorder %s62, %s78
      %p80 = scmp.eq.s32.totalorder %s28, 0
      %p81 = por %p79, %p80
      %s82 = ssub.s32 %s22, %s29
      %p83 = scmp.eq.s32.totalorder %s82, 0
      %s85 = sadd.s32 %s84, 1
      %s86 = scalar_select %p83, %s84, %s85
      %p89 = pneg %p83
      %p90 = scmp.eq.s32.totalorder %s22, 1
      %p91 = por %p89, %p90
      %p92 = scmp.ne.s32.totalorder %s84, %s87
      %p93 = scmp.eq.s32.totalorder %s22, 0
      %p94 = por %p92, %p93
      %p95 = scmp.ne.s32.totalorder %s84, %s87
      %p96 = scmp.eq.s32.totalorder %s27, 1
      %p97 = por %p95, %p96
      %p98 = scmp.ne.s32.totalorder %s87, %s88
      %p99 = scmp.eq.s32.totalorder %s27, 0
      %p100 = por %p98, %p99
      %p101 = scmp.ne.s32.totalorder %s87, %s88
      %p102 = scmp.eq.s32.totalorder %s28, 1
      %p103 = por %p101, %p102
      %p105 = scmp.ne.s32.totalorder %s88, %s104
      %p106 = scmp.eq.s32.totalorder %s28, 0
      %p107 = por %p105, %p106
      %s109 = sadd.s32 %s108, 1
      %p112 = scmp.eq.s32.totalorder %s22, 1
      %p113 = scmp.ne.s32.totalorder %s108, %s110
      %p114 = scmp.eq.s32.totalorder %s22, 0
      %p115 = por %p113, %p114
      %p116 = scmp.ne.s32.totalorder %s108, %s110
      %p117 = scmp.eq.s32.totalorder %s27, 1
      %p118 = por %p116, %p117
      %p119 = scmp.ne.s32.totalorder %s110, %s111
      %p120 = scmp.eq.s32.totalorder %s27, 0
      %p121 = por %p119, %p120
      %p122 = scmp.ne.s32.totalorder %s110, %s111
      %p123 = scmp.eq.s32.totalorder %s28, 1
      %p124 = por %p122, %p123
      %p126 = scmp.ne.s32.totalorder %s111, %s125
      %p127 = scmp.eq.s32.totalorder %s28, 0
      %p128 = por %p126, %p127
      %s130 = sadd.s32 %s129, 1
      %p133 = scmp.eq.s32.totalorder %s22, 1
      %p134 = scmp.ne.s32.totalorder %s129, %s131
      %p135 = scmp.eq.s32.totalorder %s22, 0
      %p136 = por %p134, %p135
      %p137 = scmp.ne.s32.totalorder %s129, %s131
      %p138 = scmp.eq.s32.totalorder %s27, 1
      %p139 = por %p137, %p138
      %p140 = scmp.ne.s32.totalorder %s131, %s132
      %p141 = scmp.eq.s32.totalorder %s27, 0
      %p142 = por %p140, %p141
      %p143 = scmp.ne.s32.totalorder %s131, %s132
      %p144 = scmp.eq.s32.totalorder %s28, 1
      %p145 = por %p143, %p144
      %p147 = scmp.ne.s32.totalorder %s132, %s146
      %p148 = scmp.eq.s32.totalorder %s28, 0
      %p149 = por %p147, %p148
      %s151 = sadd.s32 %s150, 1
      %p154 = scmp.eq.s32.totalorder %s22, 1
      %p155 = scmp.ne.s32.totalorder %s150, %s152
      %p156 = scmp.eq.s32.totalorder %s22, 0
      %p157 = por %p155, %p156
      %p158 = scmp.ne.s32.totalorder %s150, %s152
      %p159 = scmp.eq.s32.totalorder %s27, 1
      %p160 = por %p158, %p159
      %p161 = scmp.ne.s32.totalorder %s152, %s153
      %p162 = scmp.eq.s32.totalorder %s27, 0
      %p163 = por %p161, %p162
      %p164 = scmp.ne.s32.totalorder %s152, %s153
      %p165 = scmp.eq.s32.totalorder %s28, 1
      %p166 = por %p164, %p165
      %p168 = scmp.ne.s32.totalorder %s153, %s167
      %p169 = scmp.eq.s32.totalorder %s28, 0
      %p170 = por %p168, %p169
      %s172 = sadd.s32 %s171, 1
      %p175 = scmp.eq.s32.totalorder %s22, 1
      %p176 = scmp.ne.s32.totalorder %s171, %s173
      %p177 = scmp.eq.s32.totalorder %s22, 0
      %p178 = por %p176, %p177
      %p179 = scmp.ne.s32.totalorder %s171, %s173
      %p180 = scmp.eq.s32.totalorder %s27, 1
      %p181 = por %p179, %p180
      %p182 = scmp.ne.s32.totalorder %s173, %s174
      %p183 = scmp.eq.s32.totalorder %s27, 0
      %p184 = por %p182, %p183
      %p185 = scmp.ne.s32.totalorder %s173, %s174
      %p186 = scmp.eq.s32.totalorder %s28, 1
      %p187 = por %p185, %p186
      %p189 = scmp.ne.s32.totalorder %s174, %s188
      %p190 = scmp.eq.s32.totalorder %s28, 0
      %p191 = por %p189, %p190
      %s193 = sadd.s32 %s192, 1
      %p196 = scmp.eq.s32.totalorder %s22, 1
      %p197 = scmp.ne.s32.totalorder %s192, %s194
      %p198 = scmp.eq.s32.totalorder %s22, 0
      %p199 = por %p197, %p198
      %p200 = scmp.ne.s32.totalorder %s192, %s194
      %p201 = scmp.eq.s32.totalorder %s27, 1
      %p202 = por %p200, %p201
      %p203 = scmp.ne.s32.totalorder %s194, %s195
      %p204 = scmp.eq.s32.totalorder %s27, 0
      %p205 = por %p203, %p204
      %p206 = scmp.ne.s32.totalorder %s194, %s195
      %p207 = scmp.eq.s32.totalorder %s28, 1
      %p208 = por %p206, %p207
      %p210 = scmp.ne.s32.totalorder %s195, %s209
      %p211 = scmp.eq.s32.totalorder %s28, 0
      %p212 = por %p210, %p211
      %s214 = sadd.s32 %s213, 1
      %p217 = scmp.eq.s32.totalorder %s22, 1
      %p218 = scmp.ne.s32.totalorder %s213, %s215
      %p219 = scmp.eq.s32.totalorder %s22, 0
      %p220 = por %p218, %p219
      %p221 = scmp.ne.s32.totalorder %s213, %s215
      %p222 = scmp.eq.s32.totalorder %s27, 1
      %p223 = por %p221, %p222
      %p224 = scmp.ne.s32.totalorder %s215, %s216
      %p225 = scmp.eq.s32.totalorder %s27, 0
      %p226 = por %p224, %p225
      %p227 = scmp.ne.s32.totalorder %s215, %s216
      %p228 = scmp.eq.s32.totalorder %s28, 1
      %p229 = por %p227, %p228
      %p231 = scmp.ne.s32.totalorder %s216, %s230
      %p232 = scmp.eq.s32.totalorder %s28, 0
      %p233 = por %p231, %p232
      %s235 = sadd.s32 %s234, 1
      %p238 = scmp.eq.s32.totalorder %s22, 1
      %p239 = scmp.ne.s32.totalorder %s234, %s236
      %p240 = scmp.eq.s32.totalorder %s22, 0
      %p241 = por %p239, %p240
      %p242 = scmp.ne.s32.totalorder %s234, %s236
      %p243 = scmp.eq.s32.totalorder %s27, 1
      %p244 = por %p242, %p243
      %p245 = scmp.ne.s32.totalorder %s236, %s237
      %p246 = scmp.eq.s32.totalorder %s27, 0
      %p247 = por %p245, %p246
      %p248 = scmp.ne.s32.totalorder %s236, %s237
      %p249 = scmp.eq.s32.totalorder %s28, 1
      %p250 = por %p248, %p249
      %p252 = scmp.ne.s32.totalorder %s237, %s251
      %p253 = scmp.eq.s32.totalorder %s28, 0
      %p254 = por %p252, %p253
      %s256 = sadd.s32 %s255, 1
      %p259 = scmp.eq.s32.totalorder %s22, 1
      %p260 = scmp.ne.s32.totalorder %s255, %s257
      %p261 = scmp.eq.s32.totalorder %s22, 0
      %p262 = por %p260, %p261
      %p263 = scmp.ne.s32.totalorder %s255, %s257
      %p264 = scmp.eq.s32.totalorder %s27, 1
      %p265 = por %p263, %p264
      %p266 = scmp.ne.s32.totalorder %s257, %s258
      %p267 = scmp.eq.s32.totalorder %s27, 0
      %p268 = por %p266, %p267
      %p269 = scmp.ne.s32.totalorder %s257, %s258
      %p270 = scmp.eq.s32.totalorder %s28, 1
      %p271 = por %p269, %p270
      %p273 = scmp.ne.s32.totalorder %s258, %s272
      %p274 = scmp.eq.s32.totalorder %s28, 0
      %p275 = por %p273, %p274
      %s277 = sadd.s32 %s276, 1
      %p280 = scmp.eq.s32.totalorder %s22, 1
      %p281 = scmp.ne.s32.totalorder %s276, %s278
      %p282 = scmp.eq.s32.totalorder %s22, 0
      %p283 = por %p281, %p282
      %p284 = scmp.ne.s32.totalorder %s276, %s278
      %p285 = scmp.eq.s32.totalorder %s27, 1
      %p286 = por %p284, %p285
      %p287 = scmp.ne.s32.totalorder %s278, %s279
      %p288 = scmp.eq.s32.totalorder %s27, 0
      %p289 = por %p287, %p288
      %p290 = scmp.ne.s32.totalorder %s278, %s279
      %p291 = scmp.eq.s32.totalorder %s28, 1
      %p292 = por %p290, %p291
      %p294 = scmp.ne.s32.totalorder %s279, %s293
      %p295 = scmp.eq.s32.totalorder %s28, 0
      %p296 = por %p294, %p295
      %s298 = sadd.s32 %s297, 1
      %p301 = scmp.eq.s32.totalorder %s22, 1
      %p302 = scmp.ne.s32.totalorder %s297, %s299
      %p303 = scmp.eq.s32.totalorder %s22, 0
      %p304 = por %p302, %p303
      %p305 = scmp.ne.s32.totalorder %s297, %s299
      %p306 = scmp.eq.s32.totalorder %s27, 1
      %p307 = por %p305, %p306
      %p308 = scmp.ne.s32.totalorder %s299, %s300
      %p309 = scmp.eq.s32.totalorder %s27, 0
      %p310 = por %p308, %p309
      %p311 = scmp.ne.s32.totalorder %s299, %s300
      %p312 = scmp.eq.s32.totalorder %s28, 1
      %p313 = por %p311, %p312
      %p315 = scmp.ne.s32.totalorder %s300, %s314
      %p316 = scmp.eq.s32.totalorder %s28, 0
      %p317 = por %p315, %p316
      %s318 = ssub.s32 %s22, %s29
      %p319 = scmp.eq.s32.totalorder %s318, 0
      %s321 = sadd.s32 %s320, 1
      %s322 = scalar_select %p319, %s320, %s321
      %p325 = pneg %p319
      %p326 = scmp.eq.s32.totalorder %s22, 1
      %p327 = por %p325, %p326
      %p328 = scmp.ne.s32.totalorder %s320, %s323
      %p329 = scmp.eq.s32.totalorder %s22, 0
      %p330 = por %p328, %p329
      %p331 = scmp.ne.s32.totalorder %s320, %s323
      %p332 = scmp.eq.s32.totalorder %s27, 1
      %p333 = por %p331, %p332
      %p334 = scmp.ne.s32.totalorder %s323, %s324
      %p335 = scmp.eq.s32.totalorder %s27, 0
      %p336 = por %p334, %p335
      %p337 = scmp.ne.s32.totalorder %s323, %s324
      %p338 = scmp.eq.s32.totalorder %s28, 1
      %p339 = por %p337, %p338
      %p341 = scmp.ne.s32.totalorder %s324, %s340
      %p342 = scmp.eq.s32.totalorder %s28, 0
      %p343 = por %p341, %p342
      %p344 = scmp.le.s32.totalorder 1, %s22
      %p345 = scmp.lt.s32.totalorder %s22, 3
      %p346 = pnand %p344, %p345
      %p347 = pneg %p346
      // Predicated region
      $region9: #{tpu_custom_call.1} parent=5 // pred_check
        _
      $region10: #{tpu_custom_call.1} parent=5 // pred_check_branch
        %349 = sbr.rel (%p346) target = $region12
      $region11: #{tpu_custom_call.1} parent=5 // pred_region
        %s350 = ssub.s32 %s22, 1
        // Predicated region
        $region13: #{tpu_custom_call.1} parent=11 // pred_check
          %p351 = pneg %p121
        $region14: #{tpu_custom_call.1} parent=11 // pred_check_branch
          %353 = sbr.rel (%p351) target = $region16
        $region15: #{tpu_custom_call.1} parent=11 // pred_region
          _
        $region16: #{tpu_custom_call.1} parent=11 // pred_fallthru
          _
        // Predicated region
        $region17: #{tpu_custom_call.1} parent=11 // pred_check
          %p354 = pneg %p142
        $region18: #{tpu_custom_call.1} parent=11 // pred_check_branch
          %356 = sbr.rel (%p354) target = $region20
        $region19: #{tpu_custom_call.1} parent=11 // pred_region
          _
        $region20: #{tpu_custom_call.1} parent=11 // pred_fallthru
          _
        // Predicated region
        $region21: #{tpu_custom_call.1} parent=11 // pred_check
          %p357 = pneg %p163
        $region22: #{tpu_custom_call.1} parent=11 // pred_check_branch
          %359 = sbr.rel (%p357) target = $region24
        $region23: #{tpu_custom_call.1} parent=11 // pred_region
          _
        $region24: #{tpu_custom_call.1} parent=11 // pred_fallthru
          _
        // Predicated region
        $region25: #{tpu_custom_call.1} parent=11 // pred_check
          %p360 = pneg %p184
        $region26: #{tpu_custom_call.1} parent=11 // pred_check_branch
          %362 = sbr.rel (%p360) target = $region28
        $region27: #{tpu_custom_call.1} parent=11 // pred_region
          _
        $region28: #{tpu_custom_call.1} parent=11 // pred_fallthru
          _
        // Predicated region
        $region29: #{tpu_custom_call.1} parent=11 // pred_check
          %p363 = pneg %p205
        $region30: #{tpu_custom_call.1} parent=11 // pred_check_branch
          %365 = sbr.rel (%p363) target = $region32
        $region31: #{tpu_custom_call.1} parent=11 // pred_region
          _
        $region32: #{tpu_custom_call.1} parent=11 // pred_fallthru
          _
        // Predicated region
        $region33: #{tpu_custom_call.1} parent=11 // pred_check
          %p366 = pneg %p226
        $region34: #{tpu_custom_call.1} parent=11 // pred_check_branch
          %368 = sbr.rel (%p366) target = $region36
        $region35: #{tpu_custom_call.1} parent=11 // pred_region
          _
        $region36: #{tpu_custom_call.1} parent=11 // pred_fallthru
          _
        // Predicated region
        $region37: #{tpu_custom_call.1} parent=11 // pred_check
          %p369 = pneg %p247
        $region38: #{tpu_custom_call.1} parent=11 // pred_check_branch
          %371 = sbr.rel (%p369) target = $region40
        $region39: #{tpu_custom_call.1} parent=11 // pred_region
          _
        $region40: #{tpu_custom_call.1} parent=11 // pred_fallthru
          _
        // Predicated region
        $region41: #{tpu_custom_call.1} parent=11 // pred_check
          %p372 = pneg %p268
        $region42: #{tpu_custom_call.1} parent=11 // pred_check_branch
          %374 = sbr.rel (%p372) target = $region44
        $region43: #{tpu_custom_call.1} parent=11 // pred_region
          _
        $region44: #{tpu_custom_call.1} parent=11 // pred_fallthru
          _
        // Predicated region
        $region45: #{tpu_custom_call.1} parent=11 // pred_check
          %p375 = pneg %p289
        $region46: #{tpu_custom_call.1} parent=11 // pred_check_branch
          %377 = sbr.rel (%p375) target = $region48
        $region47: #{tpu_custom_call.1} parent=11 // pred_region
          _
        $region48: #{tpu_custom_call.1} parent=11 // pred_fallthru
          _
        // Predicated region
        $region49: #{tpu_custom_call.1} parent=11 // pred_check
          %p378 = pneg %p310
        $region50: #{tpu_custom_call.1} parent=11 // pred_check_branch
          %380 = sbr.rel (%p378) target = $region52
        $region51: #{tpu_custom_call.1} parent=11 // pred_region
          _
        $region52: #{tpu_custom_call.1} parent=11 // pred_fallthru
          _
      $region12: #{tpu_custom_call.1} parent=5 // pred_fallthru
        _
      %p381 = scmp.lt.s32.totalorder %s22, 2
      // Predicated region
      $region53: #{tpu_custom_call.1} parent=5 // pred_check
        %p382 = pneg %p381
      $region54: #{tpu_custom_call.1} parent=5 // pred_check_branch
        %384 = sbr.rel (%p382) target = $region56
      $region55: #{tpu_custom_call.1} parent=5 // pred_region
        // Predicated region
        $region57: #{tpu_custom_call.1} parent=55 // pred_check
          %p385 = pneg %p42
        $region58: #{tpu_custom_call.1} parent=55 // pred_check_branch
          %387 = sbr.rel (%p385) target = $region60
        $region59: #{tpu_custom_call.1} parent=55 // pred_region
          %p388 = scmp.lt.s32.totalorder %s22, 1
          %s389 = scalar_select %p388, %s22, 1
          %s390 = smul.addr %s389, 72
          %s391 = smul.addr %s390, 8
          %s392 = scalar_lea.vmem %s0, %s391
        $region60: #{tpu_custom_call.1} parent=55 // pred_fallthru
          _
        // Predicated region
        $region61: #{tpu_custom_call.1} parent=55 // pred_check
          %p393 = pneg %p68
        $region62: #{tpu_custom_call.1} parent=55 // pred_check_branch
          %395 = sbr.rel (%p393) target = $region64
        $region63: #{tpu_custom_call.1} parent=55 // pred_region
          %p396 = scmp.lt.s32.totalorder %s22, 1
          %s397 = scalar_select %p396, %s22, 1
          %s398 = smul.addr %s397, 72
          %s399 = smul.addr %s398, 8
          %s400 = scalar_lea.vmem %s1, %s399
        $region64: #{tpu_custom_call.1} parent=55 // pred_fallthru
          _
        // Predicated region
        $region65: #{tpu_custom_call.1} parent=55 // pred_check
          %p401 = pneg %p94
        $region66: #{tpu_custom_call.1} parent=55 // pred_check_branch
          %403 = sbr.rel (%p401) target = $region68
        $region67: #{tpu_custom_call.1} parent=55 // pred_region
          %p404 = scmp.lt.s32.totalorder %s22, 1
          %s405 = scalar_select %p404, %s22, 1
          %s406 = smul.addr %s405, 72
          %s407 = smul.addr %s406, 8
          %s408 = scalar_lea.vmem %s2, %s407
        $region68: #{tpu_custom_call.1} parent=55 // pred_fallthru
          _
      $region56: #{tpu_custom_call.1} parent=5 // pred_fallthru
        _
      %p409 = scmp.le.s32.totalorder 1, %s22
      %p410 = scmp.lt.s32.totalorder %s22, 3
      %p411 = pnand %p409, %p410
      %p412 = pneg %p411
      // Predicated region
      $region69: #{tpu_custom_call.1} parent=5 // pred_check
        _
      $region70: #{tpu_custom_call.1} parent=5 // pred_check_branch
        %414 = sbr.rel (%p411) target = $region72
      $region71: #{tpu_custom_call.1} parent=5 // pred_region
        %s415 = ssub.s32 %s22, 1
        %p416 = scmp.lt.s32.totalorder %s27, 1
        %s417 = scalar_select %p416, %s27, 1
        %s418 = smul.addr %s417, 72
        %s419 = smul.addr %s418, 8
        %s420 = scalar_lea.vmem %s0, %s419
        %p421 = pneg %p48
        %p422 = pneg %p45
        %p423 = scmp.lt.s32.totalorder %s27, 1
        %s424 = scalar_select %p423, %s27, 1
        %s425 = smul.addr %s424, 72
        %s426 = smul.addr %s425, 8
        %s427 = scalar_lea.vmem %s1, %s426
        %p428 = pneg %p74
        %p429 = pneg %p71
        %p430 = scmp.lt.s32.totalorder %s27, 1
        %s431 = scalar_select %p430, %s27, 1
        %s432 = smul.addr %s431, 72
        %s433 = smul.addr %s432, 8
        %s434 = scalar_lea.vmem %s2, %s433
        %p435 = pneg %p100
        %p436 = pneg %p97
        %p437 = pneg %p121
        %p438 = pneg %p118
        %p439 = pneg %p142
        %p440 = pneg %p139
        %p441 = pneg %p163
        %p442 = pneg %p160
        %p443 = pneg %p184
        %p444 = pneg %p181
        %p445 = pneg %p205
        %p446 = pneg %p202
        %p447 = pneg %p226
        %p448 = pneg %p223
        %p449 = pneg %p247
        %p450 = pneg %p244
        %p451 = pneg %p268
        %p452 = pneg %p265
        %p453 = pneg %p289
        %p454 = pneg %p286
        %p455 = pneg %p310
        %p456 = pneg %p307
        %p457 = pneg %p336
        %p458 = pneg %p333
        %s459 = sand.u32 %s323, 1
        %s460 = scalar_lea.sflag [#allocation3], %s459
        %s461 = sand.u32 %s323, 1
        %s462 = smul.addr %s461, 576
        %s463 = scalar_lea.vmem [#allocation2], %s462
        %p464 = scmp.lt.s32.totalorder %s27, 1
        %s465 = scalar_select %p464, %s27, 1
        %s466 = smul.addr %s465, 72
        %s467 = smul.addr %s466, 8
        %s468 = scalar_lea.vmem %s0, %s467
        %p469 = scmp.lt.s32.totalorder %s27, 1
        %s470 = scalar_select %p469, %s27, 1
        %s471 = smul.addr %s470, 72
        %s472 = smul.addr %s471, 8
        %s473 = scalar_lea.vmem %s1, %s472
        %p474 = scmp.lt.s32.totalorder %s27, 1
        %s475 = scalar_select %p474, %s27, 1
        %s476 = smul.addr %s475, 72
        %s477 = smul.addr %s476, 8
        %s478 = scalar_lea.vmem %s2, %s477
        %v479 = vld [vmem:[%s468] sm:$0xff]
        %v480 = vld [vmem:[%s468 + $0x8] sm:$0xff]
        %v481 = vld [vmem:[%s468 + $0x10] sm:$0xff]
        %v482 = vld [vmem:[%s468 + $0x18] sm:$0xff]
        %v483 = vld [vmem:[%s468 + $0x20] sm:$0xff]
        %v484 = vld [vmem:[%s468 + $0x28] sm:$0xff]
        %v485 = vld [vmem:[%s468 + $0x30] sm:$0xff]
        %v486 = vld [vmem:[%s468 + $0x38] sm:$0xff]
        %v487 = vld [vmem:[%s468 + $0x40] sm:$0xff]
        %v488 = vld [vmem:[%s468 + $0x48] sm:$0xff]
        %v489 = vld [vmem:[%s468 + $0x50] sm:$0xff]
        %v490 = vld [vmem:[%s468 + $0x58] sm:$0xff]
        %v491 = vld [vmem:[%s468 + $0x60] sm:$0xff]
        %v492 = vld [vmem:[%s468 + $0x68] sm:$0xff]
        %v493 = vld [vmem:[%s468 + $0x70] sm:$0xff]
        %v494 = vld [vmem:[%s468 + $0x78] sm:$0xff]
        %v495 = vld [vmem:[%s468 + $0x80] sm:$0xff]
        %v496 = vld [vmem:[%s468 + $0x88] sm:$0xff]
        %v497 = vld [vmem:[%s468 + $0x90] sm:$0xff]
        %v498 = vld [vmem:[%s468 + $0x98] sm:$0xff]
        %v499 = vld [vmem:[%s468 + $0xa0] sm:$0xff]
        %v500 = vld [vmem:[%s468 + $0xa8] sm:$0xff]
        %v501 = vld [vmem:[%s468 + $0xb0] sm:$0xff]
        %v502 = vld [vmem:[%s468 + $0xb8] sm:$0xff]
        %v503 = vld [vmem:[%s468 + $0xc0] sm:$0xff]
        %v504 = vld [vmem:[%s468 + $0xc8] sm:$0xff]
        %v505 = vld [vmem:[%s468 + $0xd0] sm:$0xff]
        %v506 = vld [vmem:[%s468 + $0xd8] sm:$0xff]
        %v507 = vld [vmem:[%s468 + $0xe0] sm:$0xff]
        %v508 = vld [vmem:[%s468 + $0xe8] sm:$0xff]
        %v509 = vld [vmem:[%s468 + $0xf0] sm:$0xff]
        %v510 = vld [vmem:[%s468 + $0xf8] sm:$0xff]
        %v511 = vld [vmem:[%s468 + $0x100] sm:$0xff]
        %v512 = vld [vmem:[%s468 + $0x108] sm:$0xff]
        %v513 = vld [vmem:[%s468 + $0x110] sm:$0xff]
        %v514 = vld [vmem:[%s468 + $0x118] sm:$0xff]
        %v515 = vld [vmem:[%s468 + $0x120] sm:$0xff]
        %v516 = vld [vmem:[%s468 + $0x128] sm:$0xff]
        %v517 = vld [vmem:[%s468 + $0x130] sm:$0xff]
        %v518 = vld [vmem:[%s468 + $0x138] sm:$0xff]
        %v519 = vld [vmem:[%s468 + $0x140] sm:$0xff]
        %v520 = vld [vmem:[%s468 + $0x148] sm:$0xff]
        %v521 = vld [vmem:[%s468 + $0x150] sm:$0xff]
        %v522 = vld [vmem:[%s468 + $0x158] sm:$0xff]
        %v523 = vld [vmem:[%s468 + $0x160] sm:$0xff]
        %v524 = vld [vmem:[%s468 + $0x168] sm:$0xff]
        %v525 = vld [vmem:[%s468 + $0x170] sm:$0xff]
        %v526 = vld [vmem:[%s468 + $0x178] sm:$0xff]
        %v527 = vld [vmem:[%s468 + $0x180] sm:$0xff]
        %v528 = vld [vmem:[%s468 + $0x188] sm:$0xff]
        %v529 = vld [vmem:[%s468 + $0x190] sm:$0xff]
        %v530 = vld [vmem:[%s468 + $0x198] sm:$0xff]
        %v531 = vld [vmem:[%s468 + $0x1a0] sm:$0xff]
        %v532 = vld [vmem:[%s468 + $0x1a8] sm:$0xff]
        %v533 = vld [vmem:[%s468 + $0x1b0] sm:$0xff]
        %v534 = vld [vmem:[%s468 + $0x1b8] sm:$0xff]
        %v535 = vld [vmem:[%s468 + $0x1c0] sm:$0xff]
        %v536 = vld [vmem:[%s468 + $0x1c8] sm:$0xff]
        %v537 = vld [vmem:[%s468 + $0x1d0] sm:$0xff]
        %v538 = vld [vmem:[%s468 + $0x1d8] sm:$0xff]
        %v539 = vld [vmem:[%s468 + $0x1e0] sm:$0xff]
        %v540 = vld [vmem:[%s468 + $0x1e8] sm:$0xff]
        %v541 = vld [vmem:[%s468 + $0x1f0] sm:$0xff]
        %v542 = vld [vmem:[%s468 + $0x1f8] sm:$0xff]
        %v543 = vld [vmem:[%s468 + $0x200] sm:$0xff]
        %v544 = vld [vmem:[%s468 + $0x208] sm:$0xff]
        %v545 = vld [vmem:[%s468 + $0x210] sm:$0xff]
        %v546 = vld [vmem:[%s468 + $0x218] sm:$0xff]
        %v547 = vld [vmem:[%s468 + $0x220] sm:$0xff]
        %v548 = vld [vmem:[%s468 + $0x228] sm:$0xff]
        %v549 = vld [vmem:[%s468 + $0x230] sm:$0xff]
        %v550 = vld [vmem:[%s468 + $0x238] sm:$0xff]
        %v551 = vld [vmem:[%s473] sm:$0xff]
        %v552 = vld [vmem:[%s473 + $0x8] sm:$0xff]
        %v553 = vld [vmem:[%s473 + $0x10] sm:$0xff]
        %v554 = vld [vmem:[%s473 + $0x18] sm:$0xff]
        %v555 = vld [vmem:[%s473 + $0x20] sm:$0xff]
        %v556 = vld [vmem:[%s473 + $0x28] sm:$0xff]
        %v557 = vld [vmem:[%s473 + $0x30] sm:$0xff]
        %v558 = vld [vmem:[%s473 + $0x38] sm:$0xff]
        %v559 = vld [vmem:[%s473 + $0x40] sm:$0xff]
        %v560 = vld [vmem:[%s473 + $0x48] sm:$0xff]
        %v561 = vld [vmem:[%s473 + $0x50] sm:$0xff]
        %v562 = vld [vmem:[%s473 + $0x58] sm:$0xff]
        %v563 = vld [vmem:[%s473 + $0x60] sm:$0xff]
        %v564 = vld [vmem:[%s473 + $0x68] sm:$0xff]
        %v565 = vld [vmem:[%s473 + $0x70] sm:$0xff]
        %v566 = vld [vmem:[%s473 + $0x78] sm:$0xff]
        %v567 = vld [vmem:[%s473 + $0x80] sm:$0xff]
        %v568 = vld [vmem:[%s473 + $0x88] sm:$0xff]
        %v569 = vld [vmem:[%s473 + $0x90] sm:$0xff]
        %v570 = vld [vmem:[%s473 + $0x98] sm:$0xff]
        %v571 = vld [vmem:[%s473 + $0xa0] sm:$0xff]
        %v572 = vld [vmem:[%s473 + $0xa8] sm:$0xff]
        %v573 = vld [vmem:[%s473 + $0xb0] sm:$0xff]
        %v574 = vld [vmem:[%s473 + $0xb8] sm:$0xff]
        %v575 = vld [vmem:[%s473 + $0xc0] sm:$0xff]
        %v576 = vld [vmem:[%s473 + $0xc8] sm:$0xff]
        %v577 = vld [vmem:[%s473 + $0xd0] sm:$0xff]
        %v578 = vld [vmem:[%s473 + $0xd8] sm:$0xff]
        %v579 = vld [vmem:[%s473 + $0xe0] sm:$0xff]
        %v580 = vld [vmem:[%s473 + $0xe8] sm:$0xff]
        %v581 = vld [vmem:[%s473 + $0xf0] sm:$0xff]
        %v582 = vld [vmem:[%s473 + $0xf8] sm:$0xff]
        %v583 = vld [vmem:[%s473 + $0x100] sm:$0xff]
        %v584 = vld [vmem:[%s473 + $0x108] sm:$0xff]
        %v585 = vld [vmem:[%s473 + $0x110] sm:$0xff]
        %v586 = vld [vmem:[%s473 + $0x118] sm:$0xff]
        %v587 = vld [vmem:[%s473 + $0x120] sm:$0xff]
        %v588 = vld [vmem:[%s473 + $0x128] sm:$0xff]
        %v589 = vld [vmem:[%s473 + $0x130] sm:$0xff]
        %v590 = vld [vmem:[%s473 + $0x138] sm:$0xff]
        %v591 = vld [vmem:[%s473 + $0x140] sm:$0xff]
        %v592 = vld [vmem:[%s473 + $0x148] sm:$0xff]
        %v593 = vld [vmem:[%s473 + $0x150] sm:$0xff]
        %v594 = vld [vmem:[%s473 + $0x158] sm:$0xff]
        %v595 = vld [vmem:[%s473 + $0x160] sm:$0xff]
        %v596 = vld [vmem:[%s473 + $0x168] sm:$0xff]
        %v597 = vld [vmem:[%s473 + $0x170] sm:$0xff]
        %v598 = vld [vmem:[%s473 + $0x178] sm:$0xff]
        %v599 = vld [vmem:[%s473 + $0x180] sm:$0xff]
        %v600 = vld [vmem:[%s473 + $0x188] sm:$0xff]
        %v601 = vld [vmem:[%s473 + $0x190] sm:$0xff]
        %v602 = vld [vmem:[%s473 + $0x198] sm:$0xff]
        %v603 = vld [vmem:[%s473 + $0x1a0] sm:$0xff]
        %v604 = vld [vmem:[%s473 + $0x1a8] sm:$0xff]
        %v605 = vld [vmem:[%s473 + $0x1b0] sm:$0xff]
        %v606 = vld [vmem:[%s473 + $0x1b8] sm:$0xff]
        %v607 = vld [vmem:[%s473 + $0x1c0] sm:$0xff]
        %v608 = vld [vmem:[%s473 + $0x1c8] sm:$0xff]
        %v609 = vld [vmem:[%s473 + $0x1d0] sm:$0xff]
        %v610 = vld [vmem:[%s473 + $0x1d8] sm:$0xff]
        %v611 = vld [vmem:[%s473 + $0x1e0] sm:$0xff]
        %v612 = vld [vmem:[%s473 + $0x1e8] sm:$0xff]
        %v613 = vld [vmem:[%s473 + $0x1f0] sm:$0xff]
        %v614 = vld [vmem:[%s473 + $0x1f8] sm:$0xff]
        %v615 = vld [vmem:[%s473 + $0x200] sm:$0xff]
        %v616 = vld [vmem:[%s473 + $0x208] sm:$0xff]
        %v617 = vld [vmem:[%s473 + $0x210] sm:$0xff]
        %v618 = vld [vmem:[%s473 + $0x218] sm:$0xff]
        %v619 = vld [vmem:[%s473 + $0x220] sm:$0xff]
        %v620 = vld [vmem:[%s473 + $0x228] sm:$0xff]
        %v621 = vld [vmem:[%s473 + $0x230] sm:$0xff]
        %v622 = vld [vmem:[%s473 + $0x238] sm:$0xff]
        %v623 = vld [vmem:[%s478] sm:$0xff]
        %v624 = vld [vmem:[%s478 + $0x8] sm:$0xff]
        %v625 = vld [vmem:[%s478 + $0x10] sm:$0xff]
        %v626 = vld [vmem:[%s478 + $0x18] sm:$0xff]
        %v627 = vld [vmem:[%s478 + $0x20] sm:$0xff]
        %v628 = vld [vmem:[%s478 + $0x28] sm:$0xff]
        %v629 = vld [vmem:[%s478 + $0x30] sm:$0xff]
        %v630 = vld [vmem:[%s478 + $0x38] sm:$0xff]
        %v631 = vld [vmem:[%s478 + $0x40] sm:$0xff]
        %v632 = vld [vmem:[%s478 + $0x48] sm:$0xff]
        %v633 = vld [vmem:[%s478 + $0x50] sm:$0xff]
        %v634 = vld [vmem:[%s478 + $0x58] sm:$0xff]
        %v635 = vld [vmem:[%s478 + $0x60] sm:$0xff]
        %v636 = vld [vmem:[%s478 + $0x68] sm:$0xff]
        %v637 = vld [vmem:[%s478 + $0x70] sm:$0xff]
        %v638 = vld [vmem:[%s478 + $0x78] sm:$0xff]
        %v639 = vld [vmem:[%s478 + $0x80] sm:$0xff]
        %v640 = vld [vmem:[%s478 + $0x88] sm:$0xff]
        %v641 = vld [vmem:[%s478 + $0x90] sm:$0xff]
        %v642 = vld [vmem:[%s478 + $0x98] sm:$0xff]
        %v643 = vld [vmem:[%s478 + $0xa0] sm:$0xff]
        %v644 = vld [vmem:[%s478 + $0xa8] sm:$0xff]
        %v645 = vld [vmem:[%s478 + $0xb0] sm:$0xff]
        %v646 = vld [vmem:[%s478 + $0xb8] sm:$0xff]
        %v647 = vld [vmem:[%s478 + $0xc0] sm:$0xff]
        %v648 = vld [vmem:[%s478 + $0xc8] sm:$0xff]
        %v649 = vld [vmem:[%s478 + $0xd0] sm:$0xff]
        %v650 = vld [vmem:[%s478 + $0xd8] sm:$0xff]
        %v651 = vld [vmem:[%s478 + $0xe0] sm:$0xff]
        %v652 = vld [vmem:[%s478 + $0xe8] sm:$0xff]
        %v653 = vld [vmem:[%s478 + $0xf0] sm:$0xff]
        %v654 = vld [vmem:[%s478 + $0xf8] sm:$0xff]
        %v655 = vld [vmem:[%s478 + $0x100] sm:$0xff]
        %v656 = vld [vmem:[%s478 + $0x108] sm:$0xff]
        %v657 = vld [vmem:[%s478 + $0x110] sm:$0xff]
        %v658 = vld [vmem:[%s478 + $0x118] sm:$0xff]
        %v659 = vld [vmem:[%s478 + $0x120] sm:$0xff]
        %v660 = vld [vmem:[%s478 + $0x128] sm:$0xff]
        %v661 = vld [vmem:[%s478 + $0x130] sm:$0xff]
        %v662 = vld [vmem:[%s478 + $0x138] sm:$0xff]
        %v663 = vld [vmem:[%s478 + $0x140] sm:$0xff]
        %v664 = vld [vmem:[%s478 + $0x148] sm:$0xff]
        %v665 = vld [vmem:[%s478 + $0x150] sm:$0xff]
        %v666 = vld [vmem:[%s478 + $0x158] sm:$0xff]
        %v667 = vld [vmem:[%s478 + $0x160] sm:$0xff]
        %v668 = vld [vmem:[%s478 + $0x168] sm:$0xff]
        %v669 = vld [vmem:[%s478 + $0x170] sm:$0xff]
        %v670 = vld [vmem:[%s478 + $0x178] sm:$0xff]
        %v671 = vld [vmem:[%s478 + $0x180] sm:$0xff]
        %v672 = vld [vmem:[%s478 + $0x188] sm:$0xff]
        %v673 = vld [vmem:[%s478 + $0x190] sm:$0xff]
        %v674 = vld [vmem:[%s478 + $0x198] sm:$0xff]
        %v675 = vld [vmem:[%s478 + $0x1a0] sm:$0xff]
        %v676 = vld [vmem:[%s478 + $0x1a8] sm:$0xff]
        %v677 = vld [vmem:[%s478 + $0x1b0] sm:$0xff]
        %v678 = vld [vmem:[%s478 + $0x1b8] sm:$0xff]
        %v679 = vld [vmem:[%s478 + $0x1c0] sm:$0xff]
        %v680 = vld [vmem:[%s478 + $0x1c8] sm:$0xff]
        %v681 = vld [vmem:[%s478 + $0x1d0] sm:$0xff]
        %v682 = vld [vmem:[%s478 + $0x1d8] sm:$0xff]
        %v683 = vld [vmem:[%s478 + $0x1e0] sm:$0xff]
        %v684 = vld [vmem:[%s478 + $0x1e8] sm:$0xff]
        %v685 = vld [vmem:[%s478 + $0x1f0] sm:$0xff]
        %v686 = vld [vmem:[%s478 + $0x1f8] sm:$0xff]
        %v687 = vld [vmem:[%s478 + $0x200] sm:$0xff]
        %v688 = vld [vmem:[%s478 + $0x208] sm:$0xff]
        %v689 = vld [vmem:[%s478 + $0x210] sm:$0xff]
        %v690 = vld [vmem:[%s478 + $0x218] sm:$0xff]
        %v691 = vld [vmem:[%s478 + $0x220] sm:$0xff]
        %v692 = vld [vmem:[%s478 + $0x228] sm:$0xff]
        %v693 = vld [vmem:[%s478 + $0x230] sm:$0xff]
        %v694 = vld [vmem:[%s478 + $0x238] sm:$0xff]
        %v695 = vadd.f32 %v479, %v480
        %v696 = vadd.f32 %v695, %v481
        %v697 = vadd.f32 %v696, %v482
        %v698 = vadd.f32 %v697, %v483
        %v699 = vadd.f32 %v698, %v484
        %v700 = vadd.f32 %v699, %v485
        %v701 = vadd.f32 %v700, %v486
        %v702 = vadd.f32 %v701, %v487
        %v703 = vadd.f32 %v702, %v488
        %v704 = vadd.f32 %v703, %v489
        %v705 = vadd.f32 %v704, %v490
        %v706 = vadd.f32 %v705, %v491
        %v707 = vadd.f32 %v706, %v492
        %v708 = vadd.f32 %v707, %v493
        %v709 = vadd.f32 %v708, %v494
        %v710 = vadd.f32 %v709, %v495
        %v711 = vadd.f32 %v710, %v496
        %v712 = vadd.f32 %v711, %v497
        %v713 = vadd.f32 %v712, %v498
        %v714 = vadd.f32 %v713, %v499
        %v715 = vadd.f32 %v714, %v500
        %v716 = vadd.f32 %v715, %v501
        %v717 = vadd.f32 %v716, %v502
        %v718 = vadd.f32 %v717, %v503
        %v719 = vadd.f32 %v718, %v504
        %v720 = vadd.f32 %v719, %v505
        %v721 = vadd.f32 %v720, %v506
        %v722 = vadd.f32 %v721, %v507
        %v723 = vadd.f32 %v722, %v508
        %v724 = vadd.f32 %v723, %v509
        %v725 = vadd.f32 %v724, %v510
        %v726 = vadd.f32 %v725, %v511
        %v727 = vadd.f32 %v726, %v512
        %v728 = vadd.f32 %v727, %v513
        %v729 = vadd.f32 %v728, %v514
        %v730 = vadd.f32 %v729, %v515
        %v731 = vadd.f32 %v730, %v516
        %v732 = vadd.f32 %v731, %v517
        %v733 = vadd.f32 %v732, %v518
        %v734 = vadd.f32 %v733, %v519
        %v735 = vadd.f32 %v734, %v520
        %v736 = vadd.f32 %v735, %v521
        %v737 = vadd.f32 %v736, %v522
        %v738 = vadd.f32 %v737, %v523
        %v739 = vadd.f32 %v738, %v524
        %v740 = vadd.f32 %v739, %v525
        %v741 = vadd.f32 %v740, %v526
        %v742 = vadd.f32 %v741, %v527
        %v743 = vadd.f32 %v742, %v528
        %v744 = vadd.f32 %v743, %v529
        %v745 = vadd.f32 %v744, %v530
        %v746 = vadd.f32 %v745, %v531
        %v747 = vadd.f32 %v746, %v532
        %v748 = vadd.f32 %v747, %v533
        %v749 = vadd.f32 %v748, %v534
        %v750 = vadd.f32 %v749, %v535
        %v751 = vadd.f32 %v750, %v536
        %v752 = vadd.f32 %v751, %v537
        %v753 = vadd.f32 %v752, %v538
        %v754 = vadd.f32 %v753, %v539
        %v755 = vadd.f32 %v754, %v540
        %v756 = vadd.f32 %v755, %v541
        %v757 = vadd.f32 %v756, %v542
        %v758 = vadd.f32 %v757, %v543
        %v759 = vadd.f32 %v758, %v544
        %v760 = vadd.f32 %v759, %v545
        %v761 = vadd.f32 %v760, %v546
        %v762 = vadd.f32 %v761, %v547
        %v763 = vadd.f32 %v762, %v548
        %v764 = vadd.f32 %v763, %v549
        %v765 = vadd.f32 %v764, %v550
        %v766 = vrot.slane %v765, 4
        %v767 = vadd.f32 %v765, %v766
        %v768 = vrot.slane %v767, 2
        %v769 = vadd.f32 %v767, %v768
        %v770 = vrot.slane %v769, 1
        %v771 = vadd.f32 %v769, %v770
        %v772 = vmul.f32 %v771, 0.0017361111
        %vm773 = vcmask 523264
        %v774 = vsel %vm773, %v551, 0.0
        %v775 = vsel %vm773, %v552, 0.0
        %v776 = vadd.f32 %v774, %v775
        %v777 = vsel %vm773, %v553, 0.0
        %v778 = vadd.f32 %v776, %v777
        %v779 = vsel %vm773, %v554, 0.0
        %v780 = vadd.f32 %v778, %v779
        %v781 = vsel %vm773, %v555, 0.0
        %v782 = vadd.f32 %v780, %v781
        %v783 = vsel %vm773, %v556, 0.0
        %v784 = vadd.f32 %v782, %v783
        %v785 = vsel %vm773, %v557, 0.0
        %v786 = vadd.f32 %v784, %v785
        %v787 = vsel %vm773, %v558, 0.0
        %v788 = vadd.f32 %v786, %v787
        %v789 = vsel %vm773, %v559, 0.0
        %v790 = vadd.f32 %v788, %v789
        %v791 = vsel %vm773, %v560, 0.0
        %v792 = vadd.f32 %v790, %v791
        %v793 = vsel %vm773, %v561, 0.0
        %v794 = vadd.f32 %v792, %v793
        %v795 = vsel %vm773, %v562, 0.0
        %v796 = vadd.f32 %v794, %v795
        %v797 = vsel %vm773, %v563, 0.0
        %v798 = vadd.f32 %v796, %v797
        %v799 = vsel %vm773, %v564, 0.0
        %v800 = vadd.f32 %v798, %v799
        %v801 = vsel %vm773, %v565, 0.0
        %v802 = vadd.f32 %v800, %v801
        %v803 = vsel %vm773, %v566, 0.0
        %v804 = vadd.f32 %v802, %v803
        %v805 = vsel %vm773, %v567, 0.0
        %v806 = vadd.f32 %v804, %v805
        %v807 = vsel %vm773, %v568, 0.0
        %v808 = vadd.f32 %v806, %v807
        %v809 = vsel %vm773, %v569, 0.0
        %v810 = vadd.f32 %v808, %v809
        %v811 = vsel %vm773, %v570, 0.0
        %v812 = vadd.f32 %v810, %v811
        %v813 = vsel %vm773, %v571, 0.0
        %v814 = vadd.f32 %v812, %v813
        %v815 = vsel %vm773, %v572, 0.0
        %v816 = vadd.f32 %v814, %v815
        %v817 = vsel %vm773, %v573, 0.0
        %v818 = vadd.f32 %v816, %v817
        %v819 = vsel %vm773, %v574, 0.0
        %v820 = vadd.f32 %v818, %v819
        %v821 = vsel %vm773, %v575, 0.0
        %v822 = vadd.f32 %v820, %v821
        %v823 = vsel %vm773, %v576, 0.0
        %v824 = vadd.f32 %v822, %v823
        %v825 = vsel %vm773, %v577, 0.0
        %v826 = vadd.f32 %v824, %v825
        %v827 = vsel %vm773, %v578, 0.0
        %v828 = vadd.f32 %v826, %v827
        %v829 = vsel %vm773, %v579, 0.0
        %v830 = vadd.f32 %v828, %v829
        %v831 = vsel %vm773, %v580, 0.0
        %v832 = vadd.f32 %v830, %v831
        %v833 = vsel %vm773, %v581, 0.0
        %v834 = vadd.f32 %v832, %v833
        %v835 = vsel %vm773, %v582, 0.0
        %v836 = vadd.f32 %v834, %v835
        %v837 = vsel %vm773, %v583, 0.0
        %v838 = vadd.f32 %v836, %v837
        %v839 = vsel %vm773, %v584, 0.0
        %v840 = vadd.f32 %v838, %v839
        %v841 = vsel %vm773, %v585, 0.0
        %v842 = vadd.f32 %v840, %v841
        %v843 = vsel %vm773, %v586, 0.0
        %v844 = vadd.f32 %v842, %v843
        %v845 = vsel %vm773, %v587, 0.0
        %v846 = vadd.f32 %v844, %v845
        %v847 = vsel %vm773, %v588, 0.0
        %v848 = vadd.f32 %v846, %v847
        %v849 = vsel %vm773, %v589, 0.0
        %v850 = vadd.f32 %v848, %v849
        %v851 = vsel %vm773, %v590, 0.0
        %v852 = vadd.f32 %v850, %v851
        %v853 = vsel %vm773, %v591, 0.0
        %v854 = vadd.f32 %v852, %v853
        %v855 = vsel %vm773, %v592, 0.0
        %v856 = vadd.f32 %v854, %v855
        %v857 = vsel %vm773, %v593, 0.0
        %v858 = vadd.f32 %v856, %v857
        %v859 = vsel %vm773, %v594, 0.0
        %v860 = vadd.f32 %v858, %v859
        %v861 = vsel %vm773, %v595, 0.0
        %v862 = vadd.f32 %v860, %v861
        %v863 = vsel %vm773, %v596, 0.0
        %v864 = vadd.f32 %v862, %v863
        %v865 = vsel %vm773, %v597, 0.0
        %v866 = vadd.f32 %v864, %v865
        %v867 = vsel %vm773, %v598, 0.0
        %v868 = vadd.f32 %v866, %v867
        %v869 = vsel %vm773, %v599, 0.0
        %v870 = vadd.f32 %v868, %v869
        %v871 = vsel %vm773, %v600, 0.0
        %v872 = vadd.f32 %v870, %v871
        %v873 = vsel %vm773, %v601, 0.0
        %v874 = vadd.f32 %v872, %v873
        %v875 = vsel %vm773, %v602, 0.0
        %v876 = vadd.f32 %v874, %v875
        %v877 = vsel %vm773, %v603, 0.0
        %v878 = vadd.f32 %v876, %v877
        %v879 = vsel %vm773, %v604, 0.0
        %v880 = vadd.f32 %v878, %v879
        %v881 = vsel %vm773, %v605, 0.0
        %v882 = vadd.f32 %v880, %v881
        %v883 = vsel %vm773, %v606, 0.0
        %v884 = vadd.f32 %v882, %v883
        %v885 = vsel %vm773, %v607, 0.0
        %v886 = vadd.f32 %v884, %v885
        %v887 = vsel %vm773, %v608, 0.0
        %v888 = vadd.f32 %v886, %v887
        %v889 = vsel %vm773, %v609, 0.0
        %v890 = vadd.f32 %v888, %v889
        %v891 = vsel %vm773, %v610, 0.0
        %v892 = vadd.f32 %v890, %v891
        %v893 = vsel %vm773, %v611, 0.0
        %v894 = vadd.f32 %v892, %v893
        %v895 = vsel %vm773, %v612, 0.0
        %v896 = vadd.f32 %v894, %v895
        %v897 = vsel %vm773, %v613, 0.0
        %v898 = vadd.f32 %v896, %v897
        %v899 = vsel %vm773, %v614, 0.0
        %v900 = vadd.f32 %v898, %v899
        %v901 = vsel %vm773, %v615, 0.0
        %v902 = vadd.f32 %v900, %v901
        %v903 = vsel %vm773, %v616, 0.0
        %v904 = vadd.f32 %v902, %v903
        %v905 = vsel %vm773, %v617, 0.0
        %v906 = vadd.f32 %v904, %v905
        %v907 = vsel %vm773, %v618, 0.0
        %v908 = vadd.f32 %v906, %v907
        %v909 = vsel %vm773, %v619, 0.0
        %v910 = vadd.f32 %v908, %v909
        %v911 = vsel %vm773, %v620, 0.0
        %v912 = vadd.f32 %v910, %v911
        %v913 = vsel %vm773, %v621, 0.0
        %v914 = vadd.f32 %v912, %v913
        %v915 = vsel %vm773, %v622, 0.0
        %v916 = vadd.f32 %v914, %v915
        %v917 = vrot.slane %v916, 4
        %v918 = vadd.f32 %v916, %v917
        %v919 = vrot.slane %v918, 2
        %v920 = vadd.f32 %v918, %v919
        %v921 = vrot.slane %v920, 1
        %v922 = vadd.f32 %v920, %v921
        %v923 = vmul.f32 %v922, 0.0017361111
        %v924 = vsel %vm773, %v623, 0.0
        %v925 = vsel %vm773, %v624, 0.0
        %v926 = vadd.f32 %v924, %v925
        %v927 = vsel %vm773, %v625, 0.0
        %v928 = vadd.f32 %v926, %v927
        %v929 = vsel %vm773, %v626, 0.0
        %v930 = vadd.f32 %v928, %v929
        %v931 = vsel %vm773, %v627, 0.0
        %v932 = vadd.f32 %v930, %v931
        %v933 = vsel %vm773, %v628, 0.0
        %v934 = vadd.f32 %v932, %v933
        %v935 = vsel %vm773, %v629, 0.0
        %v936 = vadd.f32 %v934, %v935
        %v937 = vsel %vm773, %v630, 0.0
        %v938 = vadd.f32 %v936, %v937
        %v939 = vsel %vm773, %v631, 0.0
        %v940 = vadd.f32 %v938, %v939
        %v941 = vsel %vm773, %v632, 0.0
        %v942 = vadd.f32 %v940, %v941
        %v943 = vsel %vm773, %v633, 0.0
        %v944 = vadd.f32 %v942, %v943
        %v945 = vsel %vm773, %v634, 0.0
        %v946 = vadd.f32 %v944, %v945
        %v947 = vsel %vm773, %v635, 0.0
        %v948 = vadd.f32 %v946, %v947
        %v949 = vsel %vm773, %v636, 0.0
        %v950 = vadd.f32 %v948, %v949
        %v951 = vsel %vm773, %v637, 0.0
        %v952 = vadd.f32 %v950, %v951
        %v953 = vsel %vm773, %v638, 0.0
        %v954 = vadd.f32 %v952, %v953
        %v955 = vsel %vm773, %v639, 0.0
        %v956 = vadd.f32 %v954, %v955
        %v957 = vsel %vm773, %v640, 0.0
        %v958 = vadd.f32 %v956, %v957
        %v959 = vsel %vm773, %v641, 0.0
        %v960 = vadd.f32 %v958, %v959
        %v961 = vsel %vm773, %v642, 0.0
        %v962 = vadd.f32 %v960, %v961
        %v963 = vsel %vm773, %v643, 0.0
        %v964 = vadd.f32 %v962, %v963
        %v965 = vsel %vm773, %v644, 0.0
        %v966 = vadd.f32 %v964, %v965
        %v967 = vsel %vm773, %v645, 0.0
        %v968 = vadd.f32 %v966, %v967
        %v969 = vsel %vm773, %v646, 0.0
        %v970 = vadd.f32 %v968, %v969
        %v971 = vsel %vm773, %v647, 0.0
        %v972 = vadd.f32 %v970, %v971
        %v973 = vsel %vm773, %v648, 0.0
        %v974 = vadd.f32 %v972, %v973
        %v975 = vsel %vm773, %v649, 0.0
        %v976 = vadd.f32 %v974, %v975
        %v977 = vsel %vm773, %v650, 0.0
        %v978 = vadd.f32 %v976, %v977
        %v979 = vsel %vm773, %v651, 0.0
        %v980 = vadd.f32 %v978, %v979
        %v981 = vsel %vm773, %v652, 0.0
        %v982 = vadd.f32 %v980, %v981
        %v983 = vsel %vm773, %v653, 0.0
        %v984 = vadd.f32 %v982, %v983
        %v985 = vsel %vm773, %v654, 0.0
        %v986 = vadd.f32 %v984, %v985
        %v987 = vsel %vm773, %v655, 0.0
        %v988 = vadd.f32 %v986, %v987
        %v989 = vsel %vm773, %v656, 0.0
        %v990 = vadd.f32 %v988, %v989
        %v991 = vsel %vm773, %v657, 0.0
        %v992 = vadd.f32 %v990, %v991
        %v993 = vsel %vm773, %v658, 0.0
        %v994 = vadd.f32 %v992, %v993
        %v995 = vsel %vm773, %v659, 0.0
        %v996 = vadd.f32 %v994, %v995
        %v997 = vsel %vm773, %v660, 0.0
        %v998 = vadd.f32 %v996, %v997
        %v999 = vsel %vm773, %v661, 0.0
        %v1000 = vadd.f32 %v998, %v999
        %v1001 = vsel %vm773, %v662, 0.0
        %v1002 = vadd.f32 %v1000, %v1001
        %v1003 = vsel %vm773, %v663, 0.0
        %v1004 = vadd.f32 %v1002, %v1003
        %v1005 = vsel %vm773, %v664, 0.0
        %v1006 = vadd.f32 %v1004, %v1005
        %v1007 = vsel %vm773, %v665, 0.0
        %v1008 = vadd.f32 %v1006, %v1007
        %v1009 = vsel %vm773, %v666, 0.0
        %v1010 = vadd.f32 %v1008, %v1009
        %v1011 = vsel %vm773, %v667, 0.0
        %v1012 = vadd.f32 %v1010, %v1011
        %v1013 = vsel %vm773, %v668, 0.0
        %v1014 = vadd.f32 %v1012, %v1013
        %v1015 = vsel %vm773, %v669, 0.0
        %v1016 = vadd.f32 %v1014, %v1015
        %v1017 = vsel %vm773, %v670, 0.0
        %v1018 = vadd.f32 %v1016, %v1017
        %v1019 = vsel %vm773, %v671, 0.0
        %v1020 = vadd.f32 %v1018, %v1019
        %v1021 = vsel %vm773, %v672, 0.0
        %v1022 = vadd.f32 %v1020, %v1021
        %v1023 = vsel %vm773, %v673, 0.0
        %v1024 = vadd.f32 %v1022, %v1023
        %v1025 = vsel %vm773, %v674, 0.0
        %v1026 = vadd.f32 %v1024, %v1025
        %v1027 = vsel %vm773, %v675, 0.0
        %v1028 = vadd.f32 %v1026, %v1027
        %v1029 = vsel %vm773, %v676, 0.0
        %v1030 = vadd.f32 %v1028, %v1029
        %v1031 = vsel %vm773, %v677, 0.0
        %v1032 = vadd.f32 %v1030, %v1031
        %v1033 = vsel %vm773, %v678, 0.0
        %v1034 = vadd.f32 %v1032, %v1033
        %v1035 = vsel %vm773, %v679, 0.0
        %v1036 = vadd.f32 %v1034, %v1035
        %v1037 = vsel %vm773, %v680, 0.0
        %v1038 = vadd.f32 %v1036, %v1037
        %v1039 = vsel %vm773, %v681, 0.0
        %v1040 = vadd.f32 %v1038, %v1039
        %v1041 = vsel %vm773, %v682, 0.0
        %v1042 = vadd.f32 %v1040, %v1041
        %v1043 = vsel %vm773, %v683, 0.0
        %v1044 = vadd.f32 %v1042, %v1043
        %v1045 = vsel %vm773, %v684, 0.0
        %v1046 = vadd.f32 %v1044, %v1045
        %v1047 = vsel %vm773, %v685, 0.0
        %v1048 = vadd.f32 %v1046, %v1047
        %v1049 = vsel %vm773, %v686, 0.0
        %v1050 = vadd.f32 %v1048, %v1049
        %v1051 = vsel %vm773, %v687, 0.0
        %v1052 = vadd.f32 %v1050, %v1051
        %v1053 = vsel %vm773, %v688, 0.0
        %v1054 = vadd.f32 %v1052, %v1053
        %v1055 = vsel %vm773, %v689, 0.0
        %v1056 = vadd.f32 %v1054, %v1055
        %v1057 = vsel %vm773, %v690, 0.0
        %v1058 = vadd.f32 %v1056, %v1057
        %v1059 = vsel %vm773, %v691, 0.0
        %v1060 = vadd.f32 %v1058, %v1059
        %v1061 = vsel %vm773, %v692, 0.0
        %v1062 = vadd.f32 %v1060, %v1061
        %v1063 = vsel %vm773, %v693, 0.0
        %v1064 = vadd.f32 %v1062, %v1063
        %v1065 = vsel %vm773, %v694, 0.0
        %v1066 = vadd.f32 %v1064, %v1065
        %v1067 = vrot.slane %v1066, 4
        %v1068 = vadd.f32 %v1066, %v1067
        %v1069 = vrot.slane %v1068, 2
        %v1070 = vadd.f32 %v1068, %v1069
        %v1071 = vrot.slane %v1070, 1
        %v1072 = vadd.f32 %v1070, %v1071
        %v1073 = vmul.f32 %v1072, 0.0017361111
        %v1074 = vld [vmem:[%s3] sm:$0xff]
        %v1075 = vld [vmem:[%s3 + $0x8] sm:$0xff]
        %v1076 = vld [vmem:[%s3 + $0x10] sm:$0xff]
        %v1077 = vld [vmem:[%s3 + $0x18] sm:$0xff]
        %v1078 = vld [vmem:[%s3 + $0x20] sm:$0xff]
        %v1079 = vld [vmem:[%s3 + $0x28] sm:$0xff]
        %v1080 = vld [vmem:[%s3 + $0x30] sm:$0xff]
        %v1081 = vld [vmem:[%s3 + $0x38] sm:$0xff]
        %v1082 = vld [vmem:[%s4] sm:$0x1]
        %v1084 = vsel %vm773, %v923, 0
        %1086 = vmatprep.subr.mxu0 0.0
        %1087 = vmatpush1.msra.mxu0 %v1074
        %1088 = vmatprep.subr.mxu0 0.0
        %1089 = vmatpush1.msra.mxu0 %v1075
        %1090 = vmatprep.subr.mxu0 0.0
        %1091 = vmatpush1.msra.mxu0 %v1076
        %1092 = vmatprep.subr.mxu0 0.0
        %1093 = vmatpush1.msra.mxu0 %v1077
        %1094 = vmatprep.subr.mxu0 0.0
        %1095 = vmatpush1.msra.mxu0 %v1078
        %1096 = vmatprep.subr.mxu0 0.0
        %1097 = vmatpush1.msra.mxu0 %v1079
        %1098 = vmatprep.subr.mxu0 0.0
        %1099 = vmatpush1.msra.mxu0 %v1080
        %1100 = vmatprep.subr.mxu0 0.0
        %1101 = vmatpush1.msra.mxu0 %v1081
        %1102 = vmatprep.subr.mxu0 0.0
        %1103 = vmatpush1.msra.mxu0 0.0
        %1104 = vmatprep.subr.mxu0 0.0
        %1105 = vmatpush1.msra.mxu0 0.0
        %1106 = vmatprep.subr.mxu0 0.0
        %1107 = vmatpush1.msra.mxu0 0.0
        %1108 = vmatprep.subr.mxu0 0.0
        %1109 = vmatpush1.msra.mxu0 0.0
        %1110 = vmatprep.subr.mxu0 0.0
        %1111 = vmatpush1.msra.mxu0 0.0
        %1112 = vmatprep.subr.mxu0 0.0
        %1113 = vmatpush1.msra.mxu0 0.0
        %1114 = vmatprep.subr.mxu0 0.0
        %1115 = vmatpush1.msra.mxu0 0.0
        %1116 = vmatprep.subr.mxu0 0.0
        %1117 = vmatpush1.msra.mxu0 0.0
        %1118 = vmatprep.subr.mxu0 0.0
        %1119 = vmatpush1.msra.mxu0 0.0
        %1120 = vmatprep.subr.mxu0 0.0
        %1121 = vmatpush1.msra.mxu0 0.0
        %1122 = vmatprep.subr.mxu0 0.0
        %1123 = vmatpush1.msra.mxu0 0.0
        %1124 = vmatprep.subr.mxu0 0.0
        %1125 = vmatpush1.msra.mxu0 0.0
        %1126 = vmatprep.subr.mxu0 0.0
        %1127 = vmatpush1.msra.mxu0 0.0
        %1128 = vmatprep.subr.mxu0 0.0
        %1129 = vmatpush1.msra.mxu0 0.0
        %1130 = vmatprep.subr.mxu0 0.0
        %1131 = vmatpush1.msra.mxu0 0.0
        %1132 = vmatprep.subr.mxu0 0.0
        %1133 = vmatpush1.msra.mxu0 0.0
        %1134 = vmatprep.subr.mxu0 0.0
        %1135 = vmatpush1.msra.mxu0 0.0
        %1136 = vmatprep.subr.mxu0 0.0
        %1137 = vmatpush1.msra.mxu0 0.0
        %1138 = vmatprep.subr.mxu0 0.0
        %1139 = vmatpush1.msra.mxu0 0.0
        %1140 = vmatprep.subr.mxu0 0.0
        %1141 = vmatpush1.msra.mxu0 0.0
        %1142 = vmatprep.subr.mxu0 0.0
        %1143 = vmatpush1.msra.mxu0 0.0
        %1144 = vmatprep.subr.mxu0 0.0
        %1145 = vmatpush1.msra.mxu0 0.0
        %1146 = vmatprep.subr.mxu0 0.0
        %1147 = vmatpush1.msra.mxu0 0.0
        %1148 = vmatprep.subr.mxu0 0.0
        %1149 = vmatpush1.msra.mxu0 0.0
        %1150 = vmatprep.mubr.f32.mxu0 0.0
        %1151 = vmatmul.mubr.f32.gmra.mrb[0].mxu0 %v1084
        %v1152 = vpop.f32.mrb[0].mxu0
        %v1153 = vadd.f32 %v1082, %v1152
        %v1154 = vpop.f32.mrb[0].mxu0
        %1155 = vdwg.mxu0
        %v1156 = vld [vmem:[%s5] sm:$0xff]
        %v1157 = vld [vmem:[%s5 + $0x8] sm:$0xff]
        %v1158 = vld [vmem:[%s5 + $0x10] sm:$0xff]
        %v1159 = vld [vmem:[%s5 + $0x18] sm:$0xff]
        %v1160 = vld [vmem:[%s5 + $0x20] sm:$0xff]
        %v1161 = vld [vmem:[%s5 + $0x28] sm:$0xff]
        %v1162 = vld [vmem:[%s5 + $0x30] sm:$0xff]
        %v1163 = vld [vmem:[%s5 + $0x38] sm:$0xff]
        %v1164 = vld [vmem:[%s6] sm:$0x1]
        %v1166 = vsel %vm773, %v1073, 0
        %1168 = vmatprep.subr.mxu0 0.0
        %1169 = vmatpush1.msra.mxu0 %v1156
        %1170 = vmatprep.subr.mxu0 0.0
        %1171 = vmatpush1.msra.mxu0 %v1157
        %1172 = vmatprep.subr.mxu0 0.0
        %1173 = vmatpush1.msra.mxu0 %v1158
        %1174 = vmatprep.subr.mxu0 0.0
        %1175 = vmatpush1.msra.mxu0 %v1159
        %1176 = vmatprep.subr.mxu0 0.0
        %1177 = vmatpush1.msra.mxu0 %v1160
        %1178 = vmatprep.subr.mxu0 0.0
        %1179 = vmatpush1.msra.mxu0 %v1161
        %1180 = vmatprep.subr.mxu0 0.0
        %1181 = vmatpush1.msra.mxu0 %v1162
        %1182 = vmatprep.subr.mxu0 0.0
        %1183 = vmatpush1.msra.mxu0 %v1163
        %1184 = vmatprep.subr.mxu0 0.0
        %1185 = vmatpush1.msra.mxu0 0.0
        %1186 = vmatprep.subr.mxu0 0.0
        %1187 = vmatpush1.msra.mxu0 0.0
        %1188 = vmatprep.subr.mxu0 0.0
        %1189 = vmatpush1.msra.mxu0 0.0
        %1190 = vmatprep.subr.mxu0 0.0
        %1191 = vmatpush1.msra.mxu0 0.0
        %1192 = vmatprep.subr.mxu0 0.0
        %1193 = vmatpush1.msra.mxu0 0.0
        %1194 = vmatprep.subr.mxu0 0.0
        %1195 = vmatpush1.msra.mxu0 0.0
        %1196 = vmatprep.subr.mxu0 0.0
        %1197 = vmatpush1.msra.mxu0 0.0
        %1198 = vmatprep.subr.mxu0 0.0
        %1199 = vmatpush1.msra.mxu0 0.0
        %1200 = vmatprep.subr.mxu0 0.0
        %1201 = vmatpush1.msra.mxu0 0.0
        %1202 = vmatprep.subr.mxu0 0.0
        %1203 = vmatpush1.msra.mxu0 0.0
        %1204 = vmatprep.subr.mxu0 0.0
        %1205 = vmatpush1.msra.mxu0 0.0
        %1206 = vmatprep.subr.mxu0 0.0
        %1207 = vmatpush1.msra.mxu0 0.0
        %1208 = vmatprep.subr.mxu0 0.0
        %1209 = vmatpush1.msra.mxu0 0.0
        %1210 = vmatprep.subr.mxu0 0.0
        %1211 = vmatpush1.msra.mxu0 0.0
        %1212 = vmatprep.subr.mxu0 0.0
        %1213 = vmatpush1.msra.mxu0 0.0
        %1214 = vmatprep.subr.mxu0 0.0
        %1215 = vmatpush1.msra.mxu0 0.0
        %1216 = vmatprep.subr.mxu0 0.0
        %1217 = vmatpush1.msra.mxu0 0.0
        %1218 = vmatprep.subr.mxu0 0.0
        %1219 = vmatpush1.msra.mxu0 0.0
        %1220 = vmatprep.subr.mxu0 0.0
        %1221 = vmatpush1.msra.mxu0 0.0
        %1222 = vmatprep.subr.mxu0 0.0
        %1223 = vmatpush1.msra.mxu0 0.0
        %1224 = vmatprep.subr.mxu0 0.0
        %1225 = vmatpush1.msra.mxu0 0.0
        %1226 = vmatprep.subr.mxu0 0.0
        %1227 = vmatpush1.msra.mxu0 0.0
        %1228 = vmatprep.subr.mxu0 0.0
        %1229 = vmatpush1.msra.mxu0 0.0
        %1230 = vmatprep.subr.mxu0 0.0
        %1231 = vmatpush1.msra.mxu0 0.0
        %1232 = vmatprep.mubr.f32.mxu0 0.0
        %1233 = vmatmul.mubr.f32.gmra.mrb[0].mxu0 %v1166
        %v1234 = vpop.f32.mrb[0].mxu0
        %v1235 = vadd.f32 %v1164, %v1234
        %v1236 = vpop.f32.mrb[0].mxu0
        %1237 = vdwg.mxu0
        %v1238 = vld [vmem:[%s7] sm:$0xff]
        %v1239 = vld [vmem:[%s7 + $0x8] sm:$0xff]
        %v1240 = vld [vmem:[%s7 + $0x10] sm:$0xff]
        %v1241 = vld [vmem:[%s7 + $0x18] sm:$0xff]
        %v1242 = vld [vmem:[%s7 + $0x20] sm:$0xff]
        %v1243 = vld [vmem:[%s7 + $0x28] sm:$0xff]
        %v1244 = vld [vmem:[%s7 + $0x30] sm:$0xff]
        %v1245 = vld [vmem:[%s7 + $0x38] sm:$0xff]
        %v1246 = vld [vmem:[%s7 + $0x40] sm:$0xff]
        %v1247 = vld [vmem:[%s7 + $0x48] sm:$0xff]
        %v1248 = vld [vmem:[%s7 + $0x50] sm:$0xff]
        %v1249 = vld [vmem:[%s7 + $0x58] sm:$0xff]
        %v1250 = vld [vmem:[%s7 + $0x60] sm:$0xff]
        %v1251 = vld [vmem:[%s7 + $0x68] sm:$0xff]
        %v1252 = vld [vmem:[%s7 + $0x70] sm:$0xff]
        %v1253 = vld [vmem:[%s7 + $0x78] sm:$0xff]
        %v1254 = vld [vmem:[%s8] sm:$0x1]
        %1255 = vmatprep.subr.mxu0 0.0
        %1256 = vmatpush1.msra.mxu0 %v1238
        %1257 = vmatprep.subr.mxu0 0.0
        %1258 = vmatpush1.msra.mxu0 %v1239
        %1259 = vmatprep.subr.mxu0 0.0
        %1260 = vmatpush1.msra.mxu0 %v1240
        %1261 = vmatprep.subr.mxu0 0.0
        %1262 = vmatpush1.msra.mxu0 %v1241
        %1263 = vmatprep.subr.mxu0 0.0
        %1264 = vmatpush1.msra.mxu0 %v1242
        %1265 = vmatprep.subr.mxu0 0.0
        %1266 = vmatpush1.msra.mxu0 %v1243
        %1267 = vmatprep.subr.mxu0 0.0
        %1268 = vmatpush1.msra.mxu0 %v1244
        %1269 = vmatprep.subr.mxu0 0.0
        %1270 = vmatpush1.msra.mxu0 %v1245
        %1271 = vmatprep.subr.mxu0 0.0
        %1272 = vmatpush1.msra.mxu0 %v1246
        %1273 = vmatprep.subr.mxu0 0.0
        %1274 = vmatpush1.msra.mxu0 %v1247
        %1275 = vmatprep.subr.mxu0 0.0
        %1276 = vmatpush1.msra.mxu0 %v1248
        %1277 = vmatprep.subr.mxu0 0.0
        %1278 = vmatpush1.msra.mxu0 %v1249
        %1279 = vmatprep.subr.mxu0 0.0
        %1280 = vmatpush1.msra.mxu0 %v1250
        %1281 = vmatprep.subr.mxu0 0.0
        %1282 = vmatpush1.msra.mxu0 %v1251
        %1283 = vmatprep.subr.mxu0 0.0
        %1284 = vmatpush1.msra.mxu0 %v1252
        %1285 = vmatprep.subr.mxu0 0.0
        %1286 = vmatpush1.msra.mxu0 %v1253
        %1287 = vmatprep.subr.mxu0 0.0
        %1288 = vmatpush1.msra.mxu0 0.0
        %1289 = vmatprep.subr.mxu0 0.0
        %1290 = vmatpush1.msra.mxu0 0.0
        %1291 = vmatprep.subr.mxu0 0.0
        %1292 = vmatpush1.msra.mxu0 0.0
        %1293 = vmatprep.subr.mxu0 0.0
        %1294 = vmatpush1.msra.mxu0 0.0
        %1295 = vmatprep.subr.mxu0 0.0
        %1296 = vmatpush1.msra.mxu0 0.0
        %1297 = vmatprep.subr.mxu0 0.0
        %1298 = vmatpush1.msra.mxu0 0.0
        %1299 = vmatprep.subr.mxu0 0.0
        %1300 = vmatpush1.msra.mxu0 0.0
        %1301 = vmatprep.subr.mxu0 0.0
        %1302 = vmatpush1.msra.mxu0 0.0
        %1303 = vmatprep.subr.mxu0 0.0
        %1304 = vmatpush1.msra.mxu0 0.0
        %1305 = vmatprep.subr.mxu0 0.0
        %1306 = vmatpush1.msra.mxu0 0.0
        %1307 = vmatprep.subr.mxu0 0.0
        %1308 = vmatpush1.msra.mxu0 0.0
        %1309 = vmatprep.subr.mxu0 0.0
        %1310 = vmatpush1.msra.mxu0 0.0
        %1311 = vmatprep.subr.mxu0 0.0
        %1312 = vmatpush1.msra.mxu0 0.0
        %1313 = vmatprep.subr.mxu0 0.0
        %1314 = vmatpush1.msra.mxu0 0.0
        %1315 = vmatprep.subr.mxu0 0.0
        %1316 = vmatpush1.msra.mxu0 0.0
        %1317 = vmatprep.subr.mxu0 0.0
        %1318 = vmatpush1.msra.mxu0 0.0
        %1319 = vmatprep.mubr.f32.mxu0 0.0
        %1320 = vmatmul.mubr.f32.gmra.mrb[0].mxu0 %v772
        %v1321 = vpop.f32.mrb[0].mxu0
        %v1322 = vadd.f32 %v1254, %v1321
        %v1323 = vpop.f32.mrb[0].mxu0
        %1324 = vdwg.mxu0
        %v1325 = vxor.u32 %v1322, 2147483648
        %v1326 = vmul.f32 %v1325, 1.442695
        %v1327 = vpow.pop %v1326
        %v1328 = vadd.f32 %v1327, 1.0
        %v1329 = vrcp.pop %v1328
        %v1330 = vmul.f32 1.0, %v1329
        %v1331 = vld [vmem:[%s9] sm:$0xff]
        %v1332 = vld [vmem:[%s9 + $0x8] sm:$0xff]
        %v1333 = vld [vmem:[%s9 + $0x10] sm:$0xff]
        %v1334 = vld [vmem:[%s9 + $0x18] sm:$0xff]
        %v1335 = vld [vmem:[%s9 + $0x20] sm:$0xff]
        %v1336 = vld [vmem:[%s9 + $0x28] sm:$0xff]
        %v1337 = vld [vmem:[%s9 + $0x30] sm:$0xff]
        %v1338 = vld [vmem:[%s9 + $0x38] sm:$0xff]
        %v1339 = vld [vmem:[%s9 + $0x40] sm:$0xff]
        %v1340 = vld [vmem:[%s9 + $0x48] sm:$0xff]
        %v1341 = vld [vmem:[%s9 + $0x50] sm:$0xff]
        %v1342 = vld [vmem:[%s9 + $0x58] sm:$0xff]
        %v1343 = vld [vmem:[%s9 + $0x60] sm:$0xff]
        %v1344 = vld [vmem:[%s9 + $0x68] sm:$0xff]
        %v1345 = vld [vmem:[%s9 + $0x70] sm:$0xff]
        %v1346 = vld [vmem:[%s9 + $0x78] sm:$0xff]
        %v1347 = vld [vmem:[%s10] sm:$0x1]
        %1348 = vmatprep.subr.mxu0 0.0
        %1349 = vmatpush1.msra.mxu0 %v1331
        %1350 = vmatprep.subr.mxu0 0.0
        %1351 = vmatpush1.msra.mxu0 %v1332
        %1352 = vmatprep.subr.mxu0 0.0
        %1353 = vmatpush1.msra.mxu0 %v1333
        %1354 = vmatprep.subr.mxu0 0.0
        %1355 = vmatpush1.msra.mxu0 %v1334
        %1356 = vmatprep.subr.mxu0 0.0
        %1357 = vmatpush1.msra.mxu0 %v1335
        %1358 = vmatprep.subr.mxu0 0.0
        %1359 = vmatpush1.msra.mxu0 %v1336
        %1360 = vmatprep.subr.mxu0 0.0
        %1361 = vmatpush1.msra.mxu0 %v1337
        %1362 = vmatprep.subr.mxu0 0.0
        %1363 = vmatpush1.msra.mxu0 %v1338
        %1364 = vmatprep.subr.mxu0 0.0
        %1365 = vmatpush1.msra.mxu0 %v1339
        %1366 = vmatprep.subr.mxu0 0.0
        %1367 = vmatpush1.msra.mxu0 %v1340
        %1368 = vmatprep.subr.mxu0 0.0
        %1369 = vmatpush1.msra.mxu0 %v1341
        %1370 = vmatprep.subr.mxu0 0.0
        %1371 = vmatpush1.msra.mxu0 %v1342
        %1372 = vmatprep.subr.mxu0 0.0
        %1373 = vmatpush1.msra.mxu0 %v1343
        %1374 = vmatprep.subr.mxu0 0.0
        %1375 = vmatpush1.msra.mxu0 %v1344
        %1376 = vmatprep.subr.mxu0 0.0
        %1377 = vmatpush1.msra.mxu0 %v1345
        %1378 = vmatprep.subr.mxu0 0.0
        %1379 = vmatpush1.msra.mxu0 %v1346
        %1380 = vmatprep.subr.mxu0 0.0
        %1381 = vmatpush1.msra.mxu0 0.0
        %1382 = vmatprep.subr.mxu0 0.0
        %1383 = vmatpush1.msra.mxu0 0.0
        %1384 = vmatprep.subr.mxu0 0.0
        %1385 = vmatpush1.msra.mxu0 0.0
        %1386 = vmatprep.subr.mxu0 0.0
        %1387 = vmatpush1.msra.mxu0 0.0
        %1388 = vmatprep.subr.mxu0 0.0
        %1389 = vmatpush1.msra.mxu0 0.0
        %1390 = vmatprep.subr.mxu0 0.0
        %1391 = vmatpush1.msra.mxu0 0.0
        %1392 = vmatprep.subr.mxu0 0.0
        %1393 = vmatpush1.msra.mxu0 0.0
        %1394 = vmatprep.subr.mxu0 0.0
        %1395 = vmatpush1.msra.mxu0 0.0
        %1396 = vmatprep.subr.mxu0 0.0
        %1397 = vmatpush1.msra.mxu0 0.0
        %1398 = vmatprep.subr.mxu0 0.0
        %1399 = vmatpush1.msra.mxu0 0.0
        %1400 = vmatprep.subr.mxu0 0.0
        %1401 = vmatpush1.msra.mxu0 0.0
        %1402 = vmatprep.subr.mxu0 0.0
        %1403 = vmatpush1.msra.mxu0 0.0
        %1404 = vmatprep.subr.mxu0 0.0
        %1405 = vmatpush1.msra.mxu0 0.0
        %1406 = vmatprep.subr.mxu0 0.0
        %1407 = vmatpush1.msra.mxu0 0.0
        %1408 = vmatprep.subr.mxu0 0.0
        %1409 = vmatpush1.msra.mxu0 0.0
        %1410 = vmatprep.subr.mxu0 0.0
        %1411 = vmatpush1.msra.mxu0 0.0
        %1412 = vmatprep.mubr.f32.mxu0 0.0
        %1413 = vmatmul.mubr.f32.gmra.mrb[0].mxu0 %v1153
        %v1414 = vpop.f32.mrb[0].mxu0
        %v1415 = vadd.f32 %v1347, %v1414
        %v1416 = vpop.f32.mrb[0].mxu0
        %1417 = vdwg.mxu0
        %v1418 = vxor.u32 %v1415, 2147483648
        %v1419 = vmul.f32 %v1418, 1.442695
        %v1420 = vpow.pop %v1419
        %v1421 = vadd.f32 %v1420, 1.0
        %v1422 = vrcp.pop %v1421
        %v1423 = vmul.f32 1.0, %v1422
        %v1424 = vld [vmem:[%s11] sm:$0xff]
        %v1425 = vld [vmem:[%s11 + $0x8] sm:$0xff]
        %v1426 = vld [vmem:[%s11 + $0x10] sm:$0xff]
        %v1427 = vld [vmem:[%s11 + $0x18] sm:$0xff]
        %v1428 = vld [vmem:[%s11 + $0x20] sm:$0xff]
        %v1429 = vld [vmem:[%s11 + $0x28] sm:$0xff]
        %v1430 = vld [vmem:[%s11 + $0x30] sm:$0xff]
        %v1431 = vld [vmem:[%s11 + $0x38] sm:$0xff]
        %v1432 = vld [vmem:[%s11 + $0x40] sm:$0xff]
        %v1433 = vld [vmem:[%s11 + $0x48] sm:$0xff]
        %v1434 = vld [vmem:[%s11 + $0x50] sm:$0xff]
        %v1435 = vld [vmem:[%s11 + $0x58] sm:$0xff]
        %v1436 = vld [vmem:[%s11 + $0x60] sm:$0xff]
        %v1437 = vld [vmem:[%s11 + $0x68] sm:$0xff]
        %v1438 = vld [vmem:[%s11 + $0x70] sm:$0xff]
        %v1439 = vld [vmem:[%s11 + $0x78] sm:$0xff]
        %v1440 = vld [vmem:[%s12] sm:$0x1]
        %1441 = vmatprep.subr.mxu0 0.0
        %1442 = vmatpush1.msra.mxu0 %v1424
        %1443 = vmatprep.subr.mxu0 0.0
        %1444 = vmatpush1.msra.mxu0 %v1425
        %1445 = vmatprep.subr.mxu0 0.0
        %1446 = vmatpush1.msra.mxu0 %v1426
        %1447 = vmatprep.subr.mxu0 0.0
        %1448 = vmatpush1.msra.mxu0 %v1427
        %1449 = vmatprep.subr.mxu0 0.0
        %1450 = vmatpush1.msra.mxu0 %v1428
        %1451 = vmatprep.subr.mxu0 0.0
        %1452 = vmatpush1.msra.mxu0 %v1429
        %1453 = vmatprep.subr.mxu0 0.0
        %1454 = vmatpush1.msra.mxu0 %v1430
        %1455 = vmatprep.subr.mxu0 0.0
        %1456 = vmatpush1.msra.mxu0 %v1431
        %1457 = vmatprep.subr.mxu0 0.0
        %1458 = vmatpush1.msra.mxu0 %v1432
        %1459 = vmatprep.subr.mxu0 0.0
        %1460 = vmatpush1.msra.mxu0 %v1433
        %1461 = vmatprep.subr.mxu0 0.0
        %1462 = vmatpush1.msra.mxu0 %v1434
        %1463 = vmatprep.subr.mxu0 0.0
        %1464 = vmatpush1.msra.mxu0 %v1435
        %1465 = vmatprep.subr.mxu0 0.0
        %1466 = vmatpush1.msra.mxu0 %v1436
        %1467 = vmatprep.subr.mxu0 0.0
        %1468 = vmatpush1.msra.mxu0 %v1437
        %1469 = vmatprep.subr.mxu0 0.0
        %1470 = vmatpush1.msra.mxu0 %v1438
        %1471 = vmatprep.subr.mxu0 0.0
        %1472 = vmatpush1.msra.mxu0 %v1439
        %1473 = vmatprep.subr.mxu0 0.0
        %1474 = vmatpush1.msra.mxu0 0.0
        %1475 = vmatprep.subr.mxu0 0.0
        %1476 = vmatpush1.msra.mxu0 0.0
        %1477 = vmatprep.subr.mxu0 0.0
        %1478 = vmatpush1.msra.mxu0 0.0
        %1479 = vmatprep.subr.mxu0 0.0
        %1480 = vmatpush1.msra.mxu0 0.0
        %1481 = vmatprep.subr.mxu0 0.0
        %1482 = vmatpush1.msra.mxu0 0.0
        %1483 = vmatprep.subr.mxu0 0.0
        %1484 = vmatpush1.msra.mxu0 0.0
        %1485 = vmatprep.subr.mxu0 0.0
        %1486 = vmatpush1.msra.mxu0 0.0
        %1487 = vmatprep.subr.mxu0 0.0
        %1488 = vmatpush1.msra.mxu0 0.0
        %1489 = vmatprep.subr.mxu0 0.0
        %1490 = vmatpush1.msra.mxu0 0.0
        %1491 = vmatprep.subr.mxu0 0.0
        %1492 = vmatpush1.msra.mxu0 0.0
        %1493 = vmatprep.subr.mxu0 0.0
        %1494 = vmatpush1.msra.mxu0 0.0
        %1495 = vmatprep.subr.mxu0 0.0
        %1496 = vmatpush1.msra.mxu0 0.0
        %1497 = vmatprep.subr.mxu0 0.0
        %1498 = vmatpush1.msra.mxu0 0.0
        %1499 = vmatprep.subr.mxu0 0.0
        %1500 = vmatpush1.msra.mxu0 0.0
        %1501 = vmatprep.subr.mxu0 0.0
        %1502 = vmatpush1.msra.mxu0 0.0
        %1503 = vmatprep.subr.mxu0 0.0
        %1504 = vmatpush1.msra.mxu0 0.0
        %1505 = vmatprep.mubr.f32.mxu0 0.0
        %1506 = vmatmul.mubr.f32.gmra.mrb[0].mxu0 %v1235
        %v1507 = vpop.f32.mrb[0].mxu0
        %v1508 = vadd.f32 %v1440, %v1507
        %v1509 = vpop.f32.mrb[0].mxu0
        %1510 = vdwg.mxu0
        %v1511 = vxor.u32 %v1508, 2147483648
        %v1512 = vmul.f32 %v1511, 1.442695
        %v1513 = vpow.pop %v1512
        %v1514 = vadd.f32 %v1513, 1.0
        %v1515 = vrcp.pop %v1514
        %v1516 = vmul.f32 1.0, %v1515
        %v1517 = vlaneseq
        %v1518 = vshrl.u32 %v1517, 7
        %v1519 = vsub.s32 0, %v1518
        %v1520 = vrot.slane %v1423, %v1519
        %v1521 = vmul.f32 %v1074, %v1520
        %v1522 = vmul.f32 %v1075, %v1520
        %v1523 = vmul.f32 %v1076, %v1520
        %v1524 = vmul.f32 %v1077, %v1520
        %v1525 = vmul.f32 %v1078, %v1520
        %v1526 = vmul.f32 %v1079, %v1520
        %v1527 = vmul.f32 %v1080, %v1520
        %v1528 = vmul.f32 %v1081, %v1520
        %v1529 = vlaneseq
        %v1530 = vshrl.u32 %v1529, 7
        %v1531 = vsub.s32 0, %v1530
        %v1532 = vrot.slane %v1516, %v1531
        %v1533 = vmul.f32 %v1156, %v1532
        %v1534 = vmul.f32 %v1157, %v1532
        %v1535 = vmul.f32 %v1158, %v1532
        %v1536 = vmul.f32 %v1159, %v1532
        %v1537 = vmul.f32 %v1160, %v1532
        %v1538 = vmul.f32 %v1161, %v1532
        %v1539 = vmul.f32 %v1162, %v1532
        %v1540 = vmul.f32 %v1163, %v1532
        %v1541 = vmul.f32 %v1082, %v1423
        %v1542 = vmul.f32 %v1164, %v1516
        %v1543 = vadd.f32 %v1541, %v1542
        %v1544 = vlaneseq
        %v1545 = vshrl.u32 %v1544, 7
        %v1546 = vsub.s32 0, %v1545
        %v1547 = vrot.slane %v1330, %v1546
        %v1548 = vmul.f32 %v479, %v1547
        %v1549 = vmul.f32 %v480, %v1547
        %v1550 = vmul.f32 %v481, %v1547
        %v1551 = vmul.f32 %v482, %v1547
        %v1552 = vmul.f32 %v483, %v1547
        %v1553 = vmul.f32 %v484, %v1547
        %v1554 = vmul.f32 %v485, %v1547
        %v1555 = vmul.f32 %v486, %v1547
        %v1556 = vmul.f32 %v487, %v1547
        %v1557 = vmul.f32 %v488, %v1547
        %v1558 = vmul.f32 %v489, %v1547
        %v1559 = vmul.f32 %v490, %v1547
        %v1560 = vmul.f32 %v491, %v1547
        %v1561 = vmul.f32 %v492, %v1547
        %v1562 = vmul.f32 %v493, %v1547
        %v1563 = vmul.f32 %v494, %v1547
        %v1564 = vmul.f32 %v495, %v1547
        %v1565 = vmul.f32 %v496, %v1547
        %v1566 = vmul.f32 %v497, %v1547
        %v1567 = vmul.f32 %v498, %v1547
        %v1568 = vmul.f32 %v499, %v1547
        %v1569 = vmul.f32 %v500, %v1547
        %v1570 = vmul.f32 %v501, %v1547
        %v1571 = vmul.f32 %v502, %v1547
        %v1572 = vmul.f32 %v503, %v1547
        %v1573 = vmul.f32 %v504, %v1547
        %v1574 = vmul.f32 %v505, %v1547
        %v1575 = vmul.f32 %v506, %v1547
        %v1576 = vmul.f32 %v507, %v1547
        %v1577 = vmul.f32 %v508, %v1547
        %v1578 = vmul.f32 %v509, %v1547
        %v1579 = vmul.f32 %v510, %v1547
        %v1580 = vmul.f32 %v511, %v1547
        %v1581 = vmul.f32 %v512, %v1547
        %v1582 = vmul.f32 %v513, %v1547
        %v1583 = vmul.f32 %v514, %v1547
        %v1584 = vmul.f32 %v515, %v1547
        %v1585 = vmul.f32 %v516, %v1547
        %v1586 = vmul.f32 %v517, %v1547
        %v1587 = vmul.f32 %v518, %v1547
        %v1588 = vmul.f32 %v519, %v1547
        %v1589 = vmul.f32 %v520, %v1547
        %v1590 = vmul.f32 %v521, %v1547
        %v1591 = vmul.f32 %v522, %v1547
        %v1592 = vmul.f32 %v523, %v1547
        %v1593 = vmul.f32 %v524, %v1547
        %v1594 = vmul.f32 %v525, %v1547
        %v1595 = vmul.f32 %v526, %v1547
        %v1596 = vmul.f32 %v527, %v1547
        %v1597 = vmul.f32 %v528, %v1547
        %v1598 = vmul.f32 %v529, %v1547
        %v1599 = vmul.f32 %v530, %v1547
        %v1600 = vmul.f32 %v531, %v1547
        %v1601 = vmul.f32 %v532, %v1547
        %v1602 = vmul.f32 %v533, %v1547
        %v1603 = vmul.f32 %v534, %v1547
        %v1604 = vmul.f32 %v535, %v1547
        %v1605 = vmul.f32 %v536, %v1547
        %v1606 = vmul.f32 %v537, %v1547
        %v1607 = vmul.f32 %v538, %v1547
        %v1608 = vmul.f32 %v539, %v1547
        %v1609 = vmul.f32 %v540, %v1547
        %v1610 = vmul.f32 %v541, %v1547
        %v1611 = vmul.f32 %v542, %v1547
        %v1612 = vmul.f32 %v543, %v1547
        %v1613 = vmul.f32 %v544, %v1547
        %v1614 = vmul.f32 %v545, %v1547
        %v1615 = vmul.f32 %v546, %v1547
        %v1616 = vmul.f32 %v547, %v1547
        %v1617 = vmul.f32 %v548, %v1547
        %v1618 = vmul.f32 %v549, %v1547
        %v1619 = vmul.f32 %v550, %v1547
        %v1621 = vsel %vm773, %v551, 0
        %v1624 = vsel %vm773, %v552, 0
        %v1627 = vsel %vm773, %v553, 0
        %v1630 = vsel %vm773, %v554, 0
        %v1633 = vsel %vm773, %v555, 0
        %v1636 = vsel %vm773, %v556, 0
        %v1639 = vsel %vm773, %v557, 0
        %v1642 = vsel %vm773, %v558, 0
        %v1645 = vsel %vm773, %v559, 0
        %v1648 = vsel %vm773, %v560, 0
        %v1651 = vsel %vm773, %v561, 0
        %v1654 = vsel %vm773, %v562, 0
        %v1657 = vsel %vm773, %v563, 0
        %v1660 = vsel %vm773, %v564, 0
        %v1663 = vsel %vm773, %v565, 0
        %v1666 = vsel %vm773, %v566, 0
        %v1669 = vsel %vm773, %v567, 0
        %v1672 = vsel %vm773, %v568, 0
        %v1675 = vsel %vm773, %v569, 0
        %v1678 = vsel %vm773, %v570, 0
        %v1681 = vsel %vm773, %v571, 0
        %v1684 = vsel %vm773, %v572, 0
        %v1687 = vsel %vm773, %v573, 0
        %v1690 = vsel %vm773, %v574, 0
        %v1693 = vsel %vm773, %v575, 0
        %v1696 = vsel %vm773, %v576, 0
        %v1699 = vsel %vm773, %v577, 0
        %v1702 = vsel %vm773, %v578, 0
        %v1705 = vsel %vm773, %v579, 0
        %v1708 = vsel %vm773, %v580, 0
        %v1711 = vsel %vm773, %v581, 0
        %v1714 = vsel %vm773, %v582, 0
        %v1717 = vsel %vm773, %v583, 0
        %v1720 = vsel %vm773, %v584, 0
        %v1723 = vsel %vm773, %v585, 0
        %v1726 = vsel %vm773, %v586, 0
        %v1729 = vsel %vm773, %v587, 0
        %v1732 = vsel %vm773, %v588, 0
        %v1735 = vsel %vm773, %v589, 0
        %v1738 = vsel %vm773, %v590, 0
        %v1741 = vsel %vm773, %v591, 0
        %v1744 = vsel %vm773, %v592, 0
        %v1747 = vsel %vm773, %v593, 0
        %v1750 = vsel %vm773, %v594, 0
        %v1753 = vsel %vm773, %v595, 0
        %v1756 = vsel %vm773, %v596, 0
        %v1759 = vsel %vm773, %v597, 0
        %v1762 = vsel %vm773, %v598, 0
        %v1765 = vsel %vm773, %v599, 0
        %v1768 = vsel %vm773, %v600, 0
        %v1771 = vsel %vm773, %v601, 0
        %v1774 = vsel %vm773, %v602, 0
        %v1777 = vsel %vm773, %v603, 0
        %v1780 = vsel %vm773, %v604, 0
        %v1783 = vsel %vm773, %v605, 0
        %v1786 = vsel %vm773, %v606, 0
        %v1789 = vsel %vm773, %v607, 0
        %v1792 = vsel %vm773, %v608, 0
        %v1795 = vsel %vm773, %v609, 0
        %v1798 = vsel %vm773, %v610, 0
        %v1801 = vsel %vm773, %v611, 0
        %v1804 = vsel %vm773, %v612, 0
        %v1807 = vsel %vm773, %v613, 0
        %v1810 = vsel %vm773, %v614, 0
        %v1813 = vsel %vm773, %v615, 0
        %v1816 = vsel %vm773, %v616, 0
        %v1819 = vsel %vm773, %v617, 0
        %v1822 = vsel %vm773, %v618, 0
        %v1825 = vsel %vm773, %v619, 0
        %v1828 = vsel %vm773, %v620, 0
        %v1831 = vsel %vm773, %v621, 0
        %v1834 = vsel %vm773, %v622, 0
        %1836 = vmatprep.subr.mxu0 0.0
        %1837 = vmatpush1.msra.mxu0 %v1521
        %1838 = vmatprep.subr.mxu0 0.0
        %1839 = vmatpush1.msra.mxu0 %v1522
        %1840 = vmatprep.subr.mxu0 0.0
        %1841 = vmatpush1.msra.mxu0 %v1523
        %1842 = vmatprep.subr.mxu0 0.0
        %1843 = vmatpush1.msra.mxu0 %v1524
        %1844 = vmatprep.subr.mxu0 0.0
        %1845 = vmatpush1.msra.mxu0 %v1525
        %1846 = vmatprep.subr.mxu0 0.0
        %1847 = vmatpush1.msra.mxu0 %v1526
        %1848 = vmatprep.subr.mxu0 0.0
        %1849 = vmatpush1.msra.mxu0 %v1527
        %1850 = vmatprep.subr.mxu0 0.0
        %1851 = vmatpush1.msra.mxu0 %v1528
        %1852 = vmatprep.subr.mxu0 0.0
        %1853 = vmatpush1.msra.mxu0 0.0
        %1854 = vmatprep.subr.mxu0 0.0
        %1855 = vmatpush1.msra.mxu0 0.0
        %1856 = vmatprep.subr.mxu0 0.0
        %1857 = vmatpush1.msra.mxu0 0.0
        %1858 = vmatprep.subr.mxu0 0.0
        %1859 = vmatpush1.msra.mxu0 0.0
        %1860 = vmatprep.subr.mxu0 0.0
        %1861 = vmatpush1.msra.mxu0 0.0
        %1862 = vmatprep.subr.mxu0 0.0
        %1863 = vmatpush1.msra.mxu0 0.0
        %1864 = vmatprep.subr.mxu0 0.0
        %1865 = vmatpush1.msra.mxu0 0.0
        %1866 = vmatprep.subr.mxu0 0.0
        %1867 = vmatpush1.msra.mxu0 0.0
        %1868 = vmatprep.subr.mxu0 0.0
        %1869 = vmatpush1.msra.mxu0 0.0
        %1870 = vmatprep.subr.mxu0 0.0
        %1871 = vmatpush1.msra.mxu0 0.0
        %1872 = vmatprep.subr.mxu0 0.0
        %1873 = vmatpush1.msra.mxu0 0.0
        %1874 = vmatprep.subr.mxu0 0.0
        %1875 = vmatpush1.msra.mxu0 0.0
        %1876 = vmatprep.subr.mxu0 0.0
        %1877 = vmatpush1.msra.mxu0 0.0
        %1878 = vmatprep.subr.mxu0 0.0
        %1879 = vmatpush1.msra.mxu0 0.0
        %1880 = vmatprep.subr.mxu0 0.0
        %1881 = vmatpush1.msra.mxu0 0.0
        %1882 = vmatprep.subr.mxu0 0.0
        %1883 = vmatpush1.msra.mxu0 0.0
        %1884 = vmatprep.subr.mxu0 0.0
        %1885 = vmatpush1.msra.mxu0 0.0
        %1886 = vmatprep.subr.mxu0 0.0
        %1887 = vmatpush1.msra.mxu0 0.0
        %1888 = vmatprep.subr.mxu0 0.0
        %1889 = vmatpush1.msra.mxu0 0.0
        %1890 = vmatprep.subr.mxu0 0.0
        %1891 = vmatpush1.msra.mxu0 0.0
        %1892 = vmatprep.subr.mxu0 0.0
        %1893 = vmatpush1.msra.mxu0 0.0
        %1894 = vmatprep.subr.mxu0 0.0
        %1895 = vmatpush1.msra.mxu0 0.0
        %1896 = vmatprep.subr.mxu0 0.0
        %1897 = vmatpush1.msra.mxu0 0.0
        %1898 = vmatprep.subr.mxu0 0.0
        %1899 = vmatpush1.msra.mxu0 0.0
        %1900 = vmatprep.mubr.f32.mxu0 0.0
        %1901 = vmatmul.mubr.f32.gmra.mrb[0].mxu0 %v1621
        %v1902 = vpop.f32.mrb[0].mxu0
        %v1903 = vadd.f32 0.0, %v1902
        %v1904 = vpop.f32.mrb[0].mxu0
        %1905 = vmatprep.mubr.f32.mxu0 0.0
        %1906 = vmatmul.mubr.f32.gmra.mrb[0].mxu0 %v1624
        %v1907 = vpop.f32.mrb[0].mxu0
        %v1908 = vadd.f32 0.0, %v1907
        %v1909 = vpop.f32.mrb[0].mxu0
        %1910 = vmatprep.mubr.f32.mxu0 0.0
        %1911 = vmatmul.mubr.f32.gmra.mrb[0].mxu0 %v1627
        %v1912 = vpop.f32.mrb[0].mxu0
        %v1913 = vadd.f32 0.0, %v1912
        %v1914 = vpop.f32.mrb[0].mxu0
        %1915 = vmatprep.mubr.f32.mxu0 0.0
        %1916 = vmatmul.mubr.f32.gmra.mrb[0].mxu0 %v1630
        %v1917 = vpop.f32.mrb[0].mxu0
        %v1918 = vadd.f32 0.0, %v1917
        %v1919 = vpop.f32.mrb[0].mxu0
        %1920 = vmatprep.mubr.f32.mxu0 0.0
        %1921 = vmatmul.mubr.f32.gmra.mrb[0].mxu0 %v1633
        %v1922 = vpop.f32.mrb[0].mxu0
        %v1923 = vadd.f32 0.0, %v1922
        %v1924 = vpop.f32.mrb[0].mxu0
        %1925 = vmatprep.mubr.f32.mxu0 0.0
        %1926 = vmatmul.mubr.f32.gmra.mrb[0].mxu0 %v1636
        %v1927 = vpop.f32.mrb[0].mxu0
        %v1928 = vadd.f32 0.0, %v1927
        %v1929 = vpop.f32.mrb[0].mxu0
        %1930 = vmatprep.mubr.f32.mxu0 0.0
        %1931 = vmatmul.mubr.f32.gmra.mrb[0].mxu0 %v1639
        %v1932 = vpop.f32.mrb[0].mxu0
        %v1933 = vadd.f32 0.0, %v1932
        %v1934 = vpop.f32.mrb[0].mxu0
        %1935 = vmatprep.mubr.f32.mxu0 0.0
        %1936 = vmatmul.mubr.f32.gmra.mrb[0].mxu0 %v1642
        %v1937 = vpop.f32.mrb[0].mxu0
        %v1938 = vadd.f32 0.0, %v1937
        %v1939 = vpop.f32.mrb[0].mxu0
        %1940 = vmatprep.mubr.f32.mxu0 0.0
        %1941 = vmatmul.mubr.f32.gmra.mrb[0].mxu0 %v1645
        %v1942 = vpop.f32.mrb[0].mxu0
        %v1943 = vadd.f32 0.0, %v1942
        %v1944 = vpop.f32.mrb[0].mxu0
        %1945 = vmatprep.mubr.f32.mxu0 0.0
        %1946 = vmatmul.mubr.f32.gmra.mrb[0].mxu0 %v1648
        %v1947 = vpop.f32.mrb[0].mxu0
        %v1948 = vadd.f32 0.0, %v1947
        %v1949 = vpop.f32.mrb[0].mxu0
        %1950 = vmatprep.mubr.f32.mxu0 0.0
        %1951 = vmatmul.mubr.f32.gmra.mrb[0].mxu0 %v1651
        %v1952 = vpop.f32.mrb[0].mxu0
        %v1953 = vadd.f32 0.0, %v1952
        %v1954 = vpop.f32.mrb[0].mxu0
        %1955 = vmatprep.mubr.f32.mxu0 0.0
        %1956 = vmatmul.mubr.f32.gmra.mrb[0].mxu0 %v1654
        %v1957 = vpop.f32.mrb[0].mxu0
        %v1958 = vadd.f32 0.0, %v1957
        %v1959 = vpop.f32.mrb[0].mxu0
        %1960 = vmatprep.mubr.f32.mxu0 0.0
        %1961 = vmatmul.mubr.f32.gmra.mrb[0].mxu0 %v1657
        %v1962 = vpop.f32.mrb[0].mxu0
        %v1963 = vadd.f32 0.0, %v1962
        %v1964 = vpop.f32.mrb[0].mxu0
        %1965 = vmatprep.mubr.f32.mxu0 0.0
        %1966 = vmatmul.mubr.f32.gmra.mrb[0].mxu0 %v1660
        %v1967 = vpop.f32.mrb[0].mxu0
        %v1968 = vadd.f32 0.0, %v1967
        %v1969 = vpop.f32.mrb[0].mxu0
        %1970 = vmatprep.mubr.f32.mxu0 0.0
        %1971 = vmatmul.mubr.f32.gmra.mrb[0].mxu0 %v1663
        %v1972 = vpop.f32.mrb[0].mxu0
        %v1973 = vadd.f32 0.0, %v1972
        %v1974 = vpop.f32.mrb[0].mxu0
        %1975 = vmatprep.mubr.f32.mxu0 0.0
        %1976 = vmatmul.mubr.f32.gmra.mrb[0].mxu0 %v1666
        %v1977 = vpop.f32.mrb[0].mxu0
        %v1978 = vadd.f32 0.0, %v1977
        %v1979 = vpop.f32.mrb[0].mxu0
        %1980 = vmatprep.mubr.f32.mxu0 0.0
        %1981 = vmatmul.mubr.f32.gmra.mrb[0].mxu0 %v1669
        %v1982 = vpop.f32.mrb[0].mxu0
        %v1983 = vadd.f32 0.0, %v1982
        %v1984 = vpop.f32.mrb[0].mxu0
        %1985 = vmatprep.mubr.f32.mxu0 0.0
        %1986 = vmatmul.mubr.f32.gmra.mrb[0].mxu0 %v1672
        %v1987 = vpop.f32.mrb[0].mxu0
        %v1988 = vadd.f32 0.0, %v1987
        %v1989 = vpop.f32.mrb[0].mxu0
        %1990 = vmatprep.mubr.f32.mxu0 0.0
        %1991 = vmatmul.mubr.f32.gmra.mrb[0].mxu0 %v1675
        %v1992 = vpop.f32.mrb[0].mxu0
        %v1993 = vadd.f32 0.0, %v1992
        %v1994 = vpop.f32.mrb[0].mxu0
        %1995 = vmatprep.mubr.f32.mxu0 0.0
        %1996 = vmatmul.mubr.f32.gmra.mrb[0].mxu0 %v1678
        %v1997 = vpop.f32.mrb[0].mxu0
        %v1998 = vadd.f32 0.0, %v1997
        %v1999 = vpop.f32.mrb[0].mxu0
        %2000 = vmatprep.mubr.f32.mxu0 0.0
        %2001 = vmatmul.mubr.f32.gmra.mrb[0].mxu0 %v1681
        %v2002 = vpop.f32.mrb[0].mxu0
        %v2003 = vadd.f32 0.0, %v2002
        %v2004 = vpop.f32.mrb[0].mxu0
        %2005 = vmatprep.mubr.f32.mxu0 0.0
        %2006 = vmatmul.mubr.f32.gmra.mrb[0].mxu0 %v1684
        %v2007 = vpop.f32.mrb[0].mxu0
        %v2008 = vadd.f32 0.0, %v2007
        %v2009 = vpop.f32.mrb[0].mxu0
        %2010 = vmatprep.mubr.f32.mxu0 0.0
        %2011 = vmatmul.mubr.f32.gmra.mrb[0].mxu0 %v1687
        %v2012 = vpop.f32.mrb[0].mxu0
        %v2013 = vadd.f32 0.0, %v2012
        %v2014 = vpop.f32.mrb[0].mxu0
        %2015 = vmatprep.mubr.f32.mxu0 0.0
        %2016 = vmatmul.mubr.f32.gmra.mrb[0].mxu0 %v1690
        %v2017 = vpop.f32.mrb[0].mxu0
        %v2018 = vadd.f32 0.0, %v2017
        %v2019 = vpop.f32.mrb[0].mxu0
        %2020 = vmatprep.mubr.f32.mxu0 0.0
        %2021 = vmatmul.mubr.f32.gmra.mrb[0].mxu0 %v1693
        %v2022 = vpop.f32.mrb[0].mxu0
        %v2023 = vadd.f32 0.0, %v2022
        %v2024 = vpop.f32.mrb[0].mxu0
        %2025 = vmatprep.mubr.f32.mxu0 0.0
        %2026 = vmatmul.mubr.f32.gmra.mrb[0].mxu0 %v1696
        %v2027 = vpop.f32.mrb[0].mxu0
        %v2028 = vadd.f32 0.0, %v2027
        %v2029 = vpop.f32.mrb[0].mxu0
        %2030 = vmatprep.mubr.f32.mxu0 0.0
        %2031 = vmatmul.mubr.f32.gmra.mrb[0].mxu0 %v1699
        %v2032 = vpop.f32.mrb[0].mxu0
        %v2033 = vadd.f32 0.0, %v2032
        %v2034 = vpop.f32.mrb[0].mxu0
        %2035 = vmatprep.mubr.f32.mxu0 0.0
        %2036 = vmatmul.mubr.f32.gmra.mrb[0].mxu0 %v1702
        %v2037 = vpop.f32.mrb[0].mxu0
        %v2038 = vadd.f32 0.0, %v2037
        %v2039 = vpop.f32.mrb[0].mxu0
        %2040 = vmatprep.mubr.f32.mxu0 0.0
        %2041 = vmatmul.mubr.f32.gmra.mrb[0].mxu0 %v1705
        %v2042 = vpop.f32.mrb[0].mxu0
        %v2043 = vadd.f32 0.0, %v2042
        %v2044 = vpop.f32.mrb[0].mxu0
        %2045 = vmatprep.mubr.f32.mxu0 0.0
        %2046 = vmatmul.mubr.f32.gmra.mrb[0].mxu0 %v1708
        %v2047 = vpop.f32.mrb[0].mxu0
        %v2048 = vadd.f32 0.0, %v2047
        %v2049 = vpop.f32.mrb[0].mxu0
        %2050 = vmatprep.mubr.f32.mxu0 0.0
        %2051 = vmatmul.mubr.f32.gmra.mrb[0].mxu0 %v1711
        %v2052 = vpop.f32.mrb[0].mxu0
        %v2053 = vadd.f32 0.0, %v2052
        %v2054 = vpop.f32.mrb[0].mxu0
        %2055 = vmatprep.mubr.f32.mxu0 0.0
        %2056 = vmatmul.mubr.f32.gmra.mrb[0].mxu0 %v1714
        %v2057 = vpop.f32.mrb[0].mxu0
        %v2058 = vadd.f32 0.0, %v2057
        %v2059 = vpop.f32.mrb[0].mxu0
        %2060 = vmatprep.mubr.f32.mxu0 0.0
        %2061 = vmatmul.mubr.f32.gmra.mrb[0].mxu0 %v1717
        %v2062 = vpop.f32.mrb[0].mxu0
        %v2063 = vadd.f32 0.0, %v2062
        %v2064 = vpop.f32.mrb[0].mxu0
        %2065 = vmatprep.mubr.f32.mxu0 0.0
        %2066 = vmatmul.mubr.f32.gmra.mrb[0].mxu0 %v1720
        %v2067 = vpop.f32.mrb[0].mxu0
        %v2068 = vadd.f32 0.0, %v2067
        %v2069 = vpop.f32.mrb[0].mxu0
        %2070 = vmatprep.mubr.f32.mxu0 0.0
        %2071 = vmatmul.mubr.f32.gmra.mrb[0].mxu0 %v1723
        %v2072 = vpop.f32.mrb[0].mxu0
        %v2073 = vadd.f32 0.0, %v2072
        %v2074 = vpop.f32.mrb[0].mxu0
        %2075 = vmatprep.mubr.f32.mxu0 0.0
        %2076 = vmatmul.mubr.f32.gmra.mrb[0].mxu0 %v1726
        %v2077 = vpop.f32.mrb[0].mxu0
        %v2078 = vadd.f32 0.0, %v2077
        %v2079 = vpop.f32.mrb[0].mxu0
        %2080 = vmatprep.mubr.f32.mxu0 0.0
        %2081 = vmatmul.mubr.f32.gmra.mrb[0].mxu0 %v1729
        %v2082 = vpop.f32.mrb[0].mxu0
        %v2083 = vadd.f32 0.0, %v2082
        %v2084 = vpop.f32.mrb[0].mxu0
        %2085 = vmatprep.mubr.f32.mxu0 0.0
        %2086 = vmatmul.mubr.f32.gmra.mrb[0].mxu0 %v1732
        %v2087 = vpop.f32.mrb[0].mxu0
        %v2088 = vadd.f32 0.0, %v2087
        %v2089 = vpop.f32.mrb[0].mxu0
        %2090 = vmatprep.mubr.f32.mxu0 0.0
        %2091 = vmatmul.mubr.f32.gmra.mrb[0].mxu0 %v1735
        %v2092 = vpop.f32.mrb[0].mxu0
        %v2093 = vadd.f32 0.0, %v2092
        %v2094 = vpop.f32.mrb[0].mxu0
        %2095 = vmatprep.mubr.f32.mxu0 0.0
        %2096 = vmatmul.mubr.f32.gmra.mrb[0].mxu0 %v1738
        %v2097 = vpop.f32.mrb[0].mxu0
        %v2098 = vadd.f32 0.0, %v2097
        %v2099 = vpop.f32.mrb[0].mxu0
        %2100 = vmatprep.mubr.f32.mxu0 0.0
        %2101 = vmatmul.mubr.f32.gmra.mrb[0].mxu0 %v1741
        %v2102 = vpop.f32.mrb[0].mxu0
        %v2103 = vadd.f32 0.0, %v2102
        %v2104 = vpop.f32.mrb[0].mxu0
        %2105 = vmatprep.mubr.f32.mxu0 0.0
        %2106 = vmatmul.mubr.f32.gmra.mrb[0].mxu0 %v1744
        %v2107 = vpop.f32.mrb[0].mxu0
        %v2108 = vadd.f32 0.0, %v2107
        %v2109 = vpop.f32.mrb[0].mxu0
        %2110 = vmatprep.mubr.f32.mxu0 0.0
        %2111 = vmatmul.mubr.f32.gmra.mrb[0].mxu0 %v1747
        %v2112 = vpop.f32.mrb[0].mxu0
        %v2113 = vadd.f32 0.0, %v2112
        %v2114 = vpop.f32.mrb[0].mxu0
        %2115 = vmatprep.mubr.f32.mxu0 0.0
        %2116 = vmatmul.mubr.f32.gmra.mrb[0].mxu0 %v1750
        %v2117 = vpop.f32.mrb[0].mxu0
        %v2118 = vadd.f32 0.0, %v2117
        %v2119 = vpop.f32.mrb[0].mxu0
        %2120 = vmatprep.mubr.f32.mxu0 0.0
        %2121 = vmatmul.mubr.f32.gmra.mrb[0].mxu0 %v1753
        %v2122 = vpop.f32.mrb[0].mxu0
        %v2123 = vadd.f32 0.0, %v2122
        %v2124 = vpop.f32.mrb[0].mxu0
        %2125 = vmatprep.mubr.f32.mxu0 0.0
        %2126 = vmatmul.mubr.f32.gmra.mrb[0].mxu0 %v1756
        %v2127 = vpop.f32.mrb[0].mxu0
        %v2128 = vadd.f32 0.0, %v2127
        %v2129 = vpop.f32.mrb[0].mxu0
        %2130 = vmatprep.mubr.f32.mxu0 0.0
        %2131 = vmatmul.mubr.f32.gmra.mrb[0].mxu0 %v1759
        %v2132 = vpop.f32.mrb[0].mxu0
        %v2133 = vadd.f32 0.0, %v2132
        %v2134 = vpop.f32.mrb[0].mxu0
        %2135 = vmatprep.mubr.f32.mxu0 0.0
        %2136 = vmatmul.mubr.f32.gmra.mrb[0].mxu0 %v1762
        %v2137 = vpop.f32.mrb[0].mxu0
        %v2138 = vadd.f32 0.0, %v2137
        %v2139 = vpop.f32.mrb[0].mxu0
        %2140 = vmatprep.mubr.f32.mxu0 0.0
        %2141 = vmatmul.mubr.f32.gmra.mrb[0].mxu0 %v1765
        %v2142 = vpop.f32.mrb[0].mxu0
        %v2143 = vadd.f32 0.0, %v2142
        %v2144 = vpop.f32.mrb[0].mxu0
        %2145 = vmatprep.mubr.f32.mxu0 0.0
        %2146 = vmatmul.mubr.f32.gmra.mrb[0].mxu0 %v1768
        %v2147 = vpop.f32.mrb[0].mxu0
        %v2148 = vadd.f32 0.0, %v2147
        %v2149 = vpop.f32.mrb[0].mxu0
        %2150 = vmatprep.mubr.f32.mxu0 0.0
        %2151 = vmatmul.mubr.f32.gmra.mrb[0].mxu0 %v1771
        %v2152 = vpop.f32.mrb[0].mxu0
        %v2153 = vadd.f32 0.0, %v2152
        %v2154 = vpop.f32.mrb[0].mxu0
        %2155 = vmatprep.mubr.f32.mxu0 0.0
        %2156 = vmatmul.mubr.f32.gmra.mrb[0].mxu0 %v1774
        %v2157 = vpop.f32.mrb[0].mxu0
        %v2158 = vadd.f32 0.0, %v2157
        %v2159 = vpop.f32.mrb[0].mxu0
        %2160 = vmatprep.mubr.f32.mxu0 0.0
        %2161 = vmatmul.mubr.f32.gmra.mrb[0].mxu0 %v1777
        %v2162 = vpop.f32.mrb[0].mxu0
        %v2163 = vadd.f32 0.0, %v2162
        %v2164 = vpop.f32.mrb[0].mxu0
        %2165 = vmatprep.mubr.f32.mxu0 0.0
        %2166 = vmatmul.mubr.f32.gmra.mrb[0].mxu0 %v1780
        %v2167 = vpop.f32.mrb[0].mxu0
        %v2168 = vadd.f32 0.0, %v2167
        %v2169 = vpop.f32.mrb[0].mxu0
        %2170 = vmatprep.mubr.f32.mxu0 0.0
        %2171 = vmatmul.mubr.f32.gmra.mrb[0].mxu0 %v1783
        %v2172 = vpop.f32.mrb[0].mxu0
        %v2173 = vadd.f32 0.0, %v2172
        %v2174 = vpop.f32.mrb[0].mxu0
        %2175 = vmatprep.mubr.f32.mxu0 0.0
        %2176 = vmatmul.mubr.f32.gmra.mrb[0].mxu0 %v1786
        %v2177 = vpop.f32.mrb[0].mxu0
        %v2178 = vadd.f32 0.0, %v2177
        %v2179 = vpop.f32.mrb[0].mxu0
        %2180 = vmatprep.mubr.f32.mxu0 0.0
        %2181 = vmatmul.mubr.f32.gmra.mrb[0].mxu0 %v1789
        %v2182 = vpop.f32.mrb[0].mxu0
        %v2183 = vadd.f32 0.0, %v2182
        %v2184 = vpop.f32.mrb[0].mxu0
        %2185 = vmatprep.mubr.f32.mxu0 0.0
        %2186 = vmatmul.mubr.f32.gmra.mrb[0].mxu0 %v1792
        %v2187 = vpop.f32.mrb[0].mxu0
        %v2188 = vadd.f32 0.0, %v2187
        %v2189 = vpop.f32.mrb[0].mxu0
        %2190 = vmatprep.mubr.f32.mxu0 0.0
        %2191 = vmatmul.mubr.f32.gmra.mrb[0].mxu0 %v1795
        %v2192 = vpop.f32.mrb[0].mxu0
        %v2193 = vadd.f32 0.0, %v2192
        %v2194 = vpop.f32.mrb[0].mxu0
        %2195 = vmatprep.mubr.f32.mxu0 0.0
        %2196 = vmatmul.mubr.f32.gmra.mrb[0].mxu0 %v1798
        %v2197 = vpop.f32.mrb[0].mxu0
        %v2198 = vadd.f32 0.0, %v2197
        %v2199 = vpop.f32.mrb[0].mxu0
        %2200 = vmatprep.mubr.f32.mxu0 0.0
        %2201 = vmatmul.mubr.f32.gmra.mrb[0].mxu0 %v1801
        %v2202 = vpop.f32.mrb[0].mxu0
        %v2203 = vadd.f32 0.0, %v2202
        %v2204 = vpop.f32.mrb[0].mxu0
        %2205 = vmatprep.mubr.f32.mxu0 0.0
        %2206 = vmatmul.mubr.f32.gmra.mrb[0].mxu0 %v1804
        %v2207 = vpop.f32.mrb[0].mxu0
        %v2208 = vadd.f32 0.0, %v2207
        %v2209 = vpop.f32.mrb[0].mxu0
        %2210 = vmatprep.mubr.f32.mxu0 0.0
        %2211 = vmatmul.mubr.f32.gmra.mrb[0].mxu0 %v1807
        %v2212 = vpop.f32.mrb[0].mxu0
        %v2213 = vadd.f32 0.0, %v2212
        %v2214 = vpop.f32.mrb[0].mxu0
        %2215 = vmatprep.mubr.f32.mxu0 0.0
        %2216 = vmatmul.mubr.f32.gmra.mrb[0].mxu0 %v1810
        %v2217 = vpop.f32.mrb[0].mxu0
        %v2218 = vadd.f32 0.0, %v2217
        %v2219 = vpop.f32.mrb[0].mxu0
        %2220 = vmatprep.mubr.f32.mxu0 0.0
        %2221 = vmatmul.mubr.f32.gmra.mrb[0].mxu0 %v1813
        %v2222 = vpop.f32.mrb[0].mxu0
        %v2223 = vadd.f32 0.0, %v2222
        %v2224 = vpop.f32.mrb[0].mxu0
        %2225 = vmatprep.mubr.f32.mxu0 0.0
        %2226 = vmatmul.mubr.f32.gmra.mrb[0].mxu0 %v1816
        %v2227 = vpop.f32.mrb[0].mxu0
        %v2228 = vadd.f32 0.0, %v2227
        %v2229 = vpop.f32.mrb[0].mxu0
        %2230 = vmatprep.mubr.f32.mxu0 0.0
        %2231 = vmatmul.mubr.f32.gmra.mrb[0].mxu0 %v1819
        %v2232 = vpop.f32.mrb[0].mxu0
        %v2233 = vadd.f32 0.0, %v2232
        %v2234 = vpop.f32.mrb[0].mxu0
        %2235 = vmatprep.mubr.f32.mxu0 0.0
        %2236 = vmatmul.mubr.f32.gmra.mrb[0].mxu0 %v1822
        %v2237 = vpop.f32.mrb[0].mxu0
        %v2238 = vadd.f32 0.0, %v2237
        %v2239 = vpop.f32.mrb[0].mxu0
        %2240 = vmatprep.mubr.f32.mxu0 0.0
        %2241 = vmatmul.mubr.f32.gmra.mrb[0].mxu0 %v1825
        %v2242 = vpop.f32.mrb[0].mxu0
        %v2243 = vadd.f32 0.0, %v2242
        %v2244 = vpop.f32.mrb[0].mxu0
        %2245 = vmatprep.mubr.f32.mxu0 0.0
        %2246 = vmatmul.mubr.f32.gmra.mrb[0].mxu0 %v1828
        %v2247 = vpop.f32.mrb[0].mxu0
        %v2248 = vadd.f32 0.0, %v2247
        %v2249 = vpop.f32.mrb[0].mxu0
        %2250 = vmatprep.mubr.f32.mxu0 0.0
        %2251 = vmatmul.mubr.f32.gmra.mrb[0].mxu0 %v1831
        %v2252 = vpop.f32.mrb[0].mxu0
        %v2253 = vadd.f32 0.0, %v2252
        %v2254 = vpop.f32.mrb[0].mxu0
        %2255 = vmatprep.mubr.f32.mxu0 0.0
        %2256 = vmatmul.mubr.f32.gmra.mrb[0].mxu0 %v1834
        %v2257 = vpop.f32.mrb[0].mxu0
        %v2258 = vadd.f32 0.0, %v2257
        %v2259 = vpop.f32.mrb[0].mxu0
        %2260 = vdwg.mxu0
        %v2261 = vadd.f32 %v1548, %v1903
        %v2262 = vadd.f32 %v1549, %v1908
        %v2263 = vadd.f32 %v1550, %v1913
        %v2264 = vadd.f32 %v1551, %v1918
        %v2265 = vadd.f32 %v1552, %v1923
        %v2266 = vadd.f32 %v1553, %v1928
        %v2267 = vadd.f32 %v1554, %v1933
        %v2268 = vadd.f32 %v1555, %v1938
        %v2269 = vadd.f32 %v1556, %v1943
        %v2270 = vadd.f32 %v1557, %v1948
        %v2271 = vadd.f32 %v1558, %v1953
        %v2272 = vadd.f32 %v1559, %v1958
        %v2273 = vadd.f32 %v1560, %v1963
        %v2274 = vadd.f32 %v1561, %v1968
        %v2275 = vadd.f32 %v1562, %v1973
        %v2276 = vadd.f32 %v1563, %v1978
        %v2277 = vadd.f32 %v1564, %v1983
        %v2278 = vadd.f32 %v1565, %v1988
        %v2279 = vadd.f32 %v1566, %v1993
        %v2280 = vadd.f32 %v1567, %v1998
        %v2281 = vadd.f32 %v1568, %v2003
        %v2282 = vadd.f32 %v1569, %v2008
        %v2283 = vadd.f32 %v1570, %v2013
        %v2284 = vadd.f32 %v1571, %v2018
        %v2285 = vadd.f32 %v1572, %v2023
        %v2286 = vadd.f32 %v1573, %v2028
        %v2287 = vadd.f32 %v1574, %v2033
        %v2288 = vadd.f32 %v1575, %v2038
        %v2289 = vadd.f32 %v1576, %v2043
        %v2290 = vadd.f32 %v1577, %v2048
        %v2291 = vadd.f32 %v1578, %v2053
        %v2292 = vadd.f32 %v1579, %v2058
        %v2293 = vadd.f32 %v1580, %v2063
        %v2294 = vadd.f32 %v1581, %v2068
        %v2295 = vadd.f32 %v1582, %v2073
        %v2296 = vadd.f32 %v1583, %v2078
        %v2297 = vadd.f32 %v1584, %v2083
        %v2298 = vadd.f32 %v1585, %v2088
        %v2299 = vadd.f32 %v1586, %v2093
        %v2300 = vadd.f32 %v1587, %v2098
        %v2301 = vadd.f32 %v1588, %v2103
        %v2302 = vadd.f32 %v1589, %v2108
        %v2303 = vadd.f32 %v1590, %v2113
        %v2304 = vadd.f32 %v1591, %v2118
        %v2305 = vadd.f32 %v1592, %v2123
        %v2306 = vadd.f32 %v1593, %v2128
        %v2307 = vadd.f32 %v1594, %v2133
        %v2308 = vadd.f32 %v1595, %v2138
        %v2309 = vadd.f32 %v1596, %v2143
        %v2310 = vadd.f32 %v1597, %v2148
        %v2311 = vadd.f32 %v1598, %v2153
        %v2312 = vadd.f32 %v1599, %v2158
        %v2313 = vadd.f32 %v1600, %v2163
        %v2314 = vadd.f32 %v1601, %v2168
        %v2315 = vadd.f32 %v1602, %v2173
        %v2316 = vadd.f32 %v1603, %v2178
        %v2317 = vadd.f32 %v1604, %v2183
        %v2318 = vadd.f32 %v1605, %v2188
        %v2319 = vadd.f32 %v1606, %v2193
        %v2320 = vadd.f32 %v1607, %v2198
        %v2321 = vadd.f32 %v1608, %v2203
        %v2322 = vadd.f32 %v1609, %v2208
        %v2323 = vadd.f32 %v1610, %v2213
        %v2324 = vadd.f32 %v1611, %v2218
        %v2325 = vadd.f32 %v1612, %v2223
        %v2326 = vadd.f32 %v1613, %v2228
        %v2327 = vadd.f32 %v1614, %v2233
        %v2328 = vadd.f32 %v1615, %v2238
        %v2329 = vadd.f32 %v1616, %v2243
        %v2330 = vadd.f32 %v1617, %v2248
        %v2331 = vadd.f32 %v1618, %v2253
        %v2332 = vadd.f32 %v1619, %v2258
        %v2334 = vsel %vm773, %v623, 0
        %v2337 = vsel %vm773, %v624, 0
        %v2340 = vsel %vm773, %v625, 0
        %v2343 = vsel %vm773, %v626, 0
        %v2346 = vsel %vm773, %v627, 0
        %v2349 = vsel %vm773, %v628, 0
        %v2352 = vsel %vm773, %v629, 0
        %v2355 = vsel %vm773, %v630, 0
        %v2358 = vsel %vm773, %v631, 0
        %v2361 = vsel %vm773, %v632, 0
        %v2364 = vsel %vm773, %v633, 0
        %v2367 = vsel %vm773, %v634, 0
        %v2370 = vsel %vm773, %v635, 0
        %v2373 = vsel %vm773, %v636, 0
        %v2376 = vsel %vm773, %v637, 0
        %v2379 = vsel %vm773, %v638, 0
        %v2382 = vsel %vm773, %v639, 0
        %v2385 = vsel %vm773, %v640, 0
        %v2388 = vsel %vm773, %v641, 0
        %v2391 = vsel %vm773, %v642, 0
        %v2394 = vsel %vm773, %v643, 0
        %v2397 = vsel %vm773, %v644, 0
        %v2400 = vsel %vm773, %v645, 0
        %v2403 = vsel %vm773, %v646, 0
        %v2406 = vsel %vm773, %v647, 0
        %v2409 = vsel %vm773, %v648, 0
        %v2412 = vsel %vm773, %v649, 0
        %v2415 = vsel %vm773, %v650, 0
        %v2418 = vsel %vm773, %v651, 0
        %v2421 = vsel %vm773, %v652, 0
        %v2424 = vsel %vm773, %v653, 0
        %v2427 = vsel %vm773, %v654, 0
        %v2430 = vsel %vm773, %v655, 0
        %v2433 = vsel %vm773, %v656, 0
        %v2436 = vsel %vm773, %v657, 0
        %v2439 = vsel %vm773, %v658, 0
        %v2442 = vsel %vm773, %v659, 0
        %v2445 = vsel %vm773, %v660, 0
        %v2448 = vsel %vm773, %v661, 0
        %v2451 = vsel %vm773, %v662, 0
        %v2454 = vsel %vm773, %v663, 0
        %v2457 = vsel %vm773, %v664, 0
        %v2460 = vsel %vm773, %v665, 0
        %v2463 = vsel %vm773, %v666, 0
        %v2466 = vsel %vm773, %v667, 0
        %v2469 = vsel %vm773, %v668, 0
        %v2472 = vsel %vm773, %v669, 0
        %v2475 = vsel %vm773, %v670, 0
        %v2478 = vsel %vm773, %v671, 0
        %v2481 = vsel %vm773, %v672, 0
        %v2484 = vsel %vm773, %v673, 0
        %v2487 = vsel %vm773, %v674, 0
        %v2490 = vsel %vm773, %v675, 0
        %v2493 = vsel %vm773, %v676, 0
        %v2496 = vsel %vm773, %v677, 0
        %v2499 = vsel %vm773, %v678, 0
        %v2502 = vsel %vm773, %v679, 0
        %v2505 = vsel %vm773, %v680, 0
        %v2508 = vsel %vm773, %v681, 0
        %v2511 = vsel %vm773, %v682, 0
        %v2514 = vsel %vm773, %v683, 0
        %v2517 = vsel %vm773, %v684, 0
        %v2520 = vsel %vm773, %v685, 0
        %v2523 = vsel %vm773, %v686, 0
        %v2526 = vsel %vm773, %v687, 0
        %v2529 = vsel %vm773, %v688, 0
        %v2532 = vsel %vm773, %v689, 0
        %v2535 = vsel %vm773, %v690, 0
        %v2538 = vsel %vm773, %v691, 0
        %v2541 = vsel %vm773, %v692, 0
        %v2544 = vsel %vm773, %v693, 0
        %v2547 = vsel %vm773, %v694, 0
        %2549 = vmatprep.subr.mxu0 0.0
        %2550 = vmatpush1.msra.mxu0 %v1533
        %2551 = vmatprep.subr.mxu0 0.0
        %2552 = vmatpush1.msra.mxu0 %v1534
        %2553 = vmatprep.subr.mxu0 0.0
        %2554 = vmatpush1.msra.mxu0 %v1535
        %2555 = vmatprep.subr.mxu0 0.0
        %2556 = vmatpush1.msra.mxu0 %v1536
        %2557 = vmatprep.subr.mxu0 0.0
        %2558 = vmatpush1.msra.mxu0 %v1537
        %2559 = vmatprep.subr.mxu0 0.0
        %2560 = vmatpush1.msra.mxu0 %v1538
        %2561 = vmatprep.subr.mxu0 0.0
        %2562 = vmatpush1.msra.mxu0 %v1539
        %2563 = vmatprep.subr.mxu0 0.0
        %2564 = vmatpush1.msra.mxu0 %v1540
        %2565 = vmatprep.subr.mxu0 0.0
        %2566 = vmatpush1.msra.mxu0 0.0
        %2567 = vmatprep.subr.mxu0 0.0
        %2568 = vmatpush1.msra.mxu0 0.0
        %2569 = vmatprep.subr.mxu0 0.0
        %2570 = vmatpush1.msra.mxu0 0.0
        %2571 = vmatprep.subr.mxu0 0.0
        %2572 = vmatpush1.msra.mxu0 0.0
        %2573 = vmatprep.subr.mxu0 0.0
        %2574 = vmatpush1.msra.mxu0 0.0
        %2575 = vmatprep.subr.mxu0 0.0
        %2576 = vmatpush1.msra.mxu0 0.0
        %2577 = vmatprep.subr.mxu0 0.0
        %2578 = vmatpush1.msra.mxu0 0.0
        %2579 = vmatprep.subr.mxu0 0.0
        %2580 = vmatpush1.msra.mxu0 0.0
        %2581 = vmatprep.subr.mxu0 0.0
        %2582 = vmatpush1.msra.mxu0 0.0
        %2583 = vmatprep.subr.mxu0 0.0
        %2584 = vmatpush1.msra.mxu0 0.0
        %2585 = vmatprep.subr.mxu0 0.0
        %2586 = vmatpush1.msra.mxu0 0.0
        %2587 = vmatprep.subr.mxu0 0.0
        %2588 = vmatpush1.msra.mxu0 0.0
        %2589 = vmatprep.subr.mxu0 0.0
        %2590 = vmatpush1.msra.mxu0 0.0
        %2591 = vmatprep.subr.mxu0 0.0
        %2592 = vmatpush1.msra.mxu0 0.0
        %2593 = vmatprep.subr.mxu0 0.0
        %2594 = vmatpush1.msra.mxu0 0.0
        %2595 = vmatprep.subr.mxu0 0.0
        %2596 = vmatpush1.msra.mxu0 0.0
        %2597 = vmatprep.subr.mxu0 0.0
        %2598 = vmatpush1.msra.mxu0 0.0
        %2599 = vmatprep.subr.mxu0 0.0
        %2600 = vmatpush1.msra.mxu0 0.0
        %2601 = vmatprep.subr.mxu0 0.0
        %2602 = vmatpush1.msra.mxu0 0.0
        %2603 = vmatprep.subr.mxu0 0.0
        %2604 = vmatpush1.msra.mxu0 0.0
        %2605 = vmatprep.subr.mxu0 0.0
        %2606 = vmatpush1.msra.mxu0 0.0
        %2607 = vmatprep.subr.mxu0 0.0
        %2608 = vmatpush1.msra.mxu0 0.0
        %2609 = vmatprep.subr.mxu0 0.0
        %2610 = vmatpush1.msra.mxu0 0.0
        %2611 = vmatprep.subr.mxu0 0.0
        %2612 = vmatpush1.msra.mxu0 0.0
        %2613 = vmatprep.mubr.f32.mxu0 0.0
        %2614 = vmatmul.mubr.f32.gmra.mrb[0].mxu0 %v2334
        %v2615 = vpop.f32.mrb[0].mxu0
        %v2616 = vadd.f32 0.0, %v2615
        %v2617 = vpop.f32.mrb[0].mxu0
        %2618 = vmatprep.mubr.f32.mxu0 0.0
        %2619 = vmatmul.mubr.f32.gmra.mrb[0].mxu0 %v2337
        %v2620 = vpop.f32.mrb[0].mxu0
        %v2621 = vadd.f32 0.0, %v2620
        %v2622 = vpop.f32.mrb[0].mxu0
        %2623 = vmatprep.mubr.f32.mxu0 0.0
        %2624 = vmatmul.mubr.f32.gmra.mrb[0].mxu0 %v2340
        %v2625 = vpop.f32.mrb[0].mxu0
        %v2626 = vadd.f32 0.0, %v2625
        %v2627 = vpop.f32.mrb[0].mxu0
        %2628 = vmatprep.mubr.f32.mxu0 0.0
        %2629 = vmatmul.mubr.f32.gmra.mrb[0].mxu0 %v2343
        %v2630 = vpop.f32.mrb[0].mxu0
        %v2631 = vadd.f32 0.0, %v2630
        %v2632 = vpop.f32.mrb[0].mxu0
        %2633 = vmatprep.mubr.f32.mxu0 0.0
        %2634 = vmatmul.mubr.f32.gmra.mrb[0].mxu0 %v2346
        %v2635 = vpop.f32.mrb[0].mxu0
        %v2636 = vadd.f32 0.0, %v2635
        %v2637 = vpop.f32.mrb[0].mxu0
        %2638 = vmatprep.mubr.f32.mxu0 0.0
        %2639 = vmatmul.mubr.f32.gmra.mrb[0].mxu0 %v2349
        %v2640 = vpop.f32.mrb[0].mxu0
        %v2641 = vadd.f32 0.0, %v2640
        %v2642 = vpop.f32.mrb[0].mxu0
        %2643 = vmatprep.mubr.f32.mxu0 0.0
        %2644 = vmatmul.mubr.f32.gmra.mrb[0].mxu0 %v2352
        %v2645 = vpop.f32.mrb[0].mxu0
        %v2646 = vadd.f32 0.0, %v2645
        %v2647 = vpop.f32.mrb[0].mxu0
        %2648 = vmatprep.mubr.f32.mxu0 0.0
        %2649 = vmatmul.mubr.f32.gmra.mrb[0].mxu0 %v2355
        %v2650 = vpop.f32.mrb[0].mxu0
        %v2651 = vadd.f32 0.0, %v2650
        %v2652 = vpop.f32.mrb[0].mxu0
        %2653 = vmatprep.mubr.f32.mxu0 0.0
        %2654 = vmatmul.mubr.f32.gmra.mrb[0].mxu0 %v2358
        %v2655 = vpop.f32.mrb[0].mxu0
        %v2656 = vadd.f32 0.0, %v2655
        %v2657 = vpop.f32.mrb[0].mxu0
        %2658 = vmatprep.mubr.f32.mxu0 0.0
        %2659 = vmatmul.mubr.f32.gmra.mrb[0].mxu0 %v2361
        %v2660 = vpop.f32.mrb[0].mxu0
        %v2661 = vadd.f32 0.0, %v2660
        %v2662 = vpop.f32.mrb[0].mxu0
        %2663 = vmatprep.mubr.f32.mxu0 0.0
        %2664 = vmatmul.mubr.f32.gmra.mrb[0].mxu0 %v2364
        %v2665 = vpop.f32.mrb[0].mxu0
        %v2666 = vadd.f32 0.0, %v2665
        %v2667 = vpop.f32.mrb[0].mxu0
        %2668 = vmatprep.mubr.f32.mxu0 0.0
        %2669 = vmatmul.mubr.f32.gmra.mrb[0].mxu0 %v2367
        %v2670 = vpop.f32.mrb[0].mxu0
        %v2671 = vadd.f32 0.0, %v2670
        %v2672 = vpop.f32.mrb[0].mxu0
        %2673 = vmatprep.mubr.f32.mxu0 0.0
        %2674 = vmatmul.mubr.f32.gmra.mrb[0].mxu0 %v2370
        %v2675 = vpop.f32.mrb[0].mxu0
        %v2676 = vadd.f32 0.0, %v2675
        %v2677 = vpop.f32.mrb[0].mxu0
        %2678 = vmatprep.mubr.f32.mxu0 0.0
        %2679 = vmatmul.mubr.f32.gmra.mrb[0].mxu0 %v2373
        %v2680 = vpop.f32.mrb[0].mxu0
        %v2681 = vadd.f32 0.0, %v2680
        %v2682 = vpop.f32.mrb[0].mxu0
        %2683 = vmatprep.mubr.f32.mxu0 0.0
        %2684 = vmatmul.mubr.f32.gmra.mrb[0].mxu0 %v2376
        %v2685 = vpop.f32.mrb[0].mxu0
        %v2686 = vadd.f32 0.0, %v2685
        %v2687 = vpop.f32.mrb[0].mxu0
        %2688 = vmatprep.mubr.f32.mxu0 0.0
        %2689 = vmatmul.mubr.f32.gmra.mrb[0].mxu0 %v2379
        %v2690 = vpop.f32.mrb[0].mxu0
        %v2691 = vadd.f32 0.0, %v2690
        %v2692 = vpop.f32.mrb[0].mxu0
        %2693 = vmatprep.mubr.f32.mxu0 0.0
        %2694 = vmatmul.mubr.f32.gmra.mrb[0].mxu0 %v2382
        %v2695 = vpop.f32.mrb[0].mxu0
        %v2696 = vadd.f32 0.0, %v2695
        %v2697 = vpop.f32.mrb[0].mxu0
        %2698 = vmatprep.mubr.f32.mxu0 0.0
        %2699 = vmatmul.mubr.f32.gmra.mrb[0].mxu0 %v2385
        %v2700 = vpop.f32.mrb[0].mxu0
        %v2701 = vadd.f32 0.0, %v2700
        %v2702 = vpop.f32.mrb[0].mxu0
        %2703 = vmatprep.mubr.f32.mxu0 0.0
        %2704 = vmatmul.mubr.f32.gmra.mrb[0].mxu0 %v2388
        %v2705 = vpop.f32.mrb[0].mxu0
        %v2706 = vadd.f32 0.0, %v2705
        %v2707 = vpop.f32.mrb[0].mxu0
        %2708 = vmatprep.mubr.f32.mxu0 0.0
        %2709 = vmatmul.mubr.f32.gmra.mrb[0].mxu0 %v2391
        %v2710 = vpop.f32.mrb[0].mxu0
        %v2711 = vadd.f32 0.0, %v2710
        %v2712 = vpop.f32.mrb[0].mxu0
        %2713 = vmatprep.mubr.f32.mxu0 0.0
        %2714 = vmatmul.mubr.f32.gmra.mrb[0].mxu0 %v2394
        %v2715 = vpop.f32.mrb[0].mxu0
        %v2716 = vadd.f32 0.0, %v2715
        %v2717 = vpop.f32.mrb[0].mxu0
        %2718 = vmatprep.mubr.f32.mxu0 0.0
        %2719 = vmatmul.mubr.f32.gmra.mrb[0].mxu0 %v2397
        %v2720 = vpop.f32.mrb[0].mxu0
        %v2721 = vadd.f32 0.0, %v2720
        %v2722 = vpop.f32.mrb[0].mxu0
        %2723 = vmatprep.mubr.f32.mxu0 0.0
        %2724 = vmatmul.mubr.f32.gmra.mrb[0].mxu0 %v2400
        %v2725 = vpop.f32.mrb[0].mxu0
        %v2726 = vadd.f32 0.0, %v2725
        %v2727 = vpop.f32.mrb[0].mxu0
        %2728 = vmatprep.mubr.f32.mxu0 0.0
        %2729 = vmatmul.mubr.f32.gmra.mrb[0].mxu0 %v2403
        %v2730 = vpop.f32.mrb[0].mxu0
        %v2731 = vadd.f32 0.0, %v2730
        %v2732 = vpop.f32.mrb[0].mxu0
        %2733 = vmatprep.mubr.f32.mxu0 0.0
        %2734 = vmatmul.mubr.f32.gmra.mrb[0].mxu0 %v2406
        %v2735 = vpop.f32.mrb[0].mxu0
        %v2736 = vadd.f32 0.0, %v2735
        %v2737 = vpop.f32.mrb[0].mxu0
        %2738 = vmatprep.mubr.f32.mxu0 0.0
        %2739 = vmatmul.mubr.f32.gmra.mrb[0].mxu0 %v2409
        %v2740 = vpop.f32.mrb[0].mxu0
        %v2741 = vadd.f32 0.0, %v2740
        %v2742 = vpop.f32.mrb[0].mxu0
        %2743 = vmatprep.mubr.f32.mxu0 0.0
        %2744 = vmatmul.mubr.f32.gmra.mrb[0].mxu0 %v2412
        %v2745 = vpop.f32.mrb[0].mxu0
        %v2746 = vadd.f32 0.0, %v2745
        %v2747 = vpop.f32.mrb[0].mxu0
        %2748 = vmatprep.mubr.f32.mxu0 0.0
        %2749 = vmatmul.mubr.f32.gmra.mrb[0].mxu0 %v2415
        %v2750 = vpop.f32.mrb[0].mxu0
        %v2751 = vadd.f32 0.0, %v2750
        %v2752 = vpop.f32.mrb[0].mxu0
        %2753 = vmatprep.mubr.f32.mxu0 0.0
        %2754 = vmatmul.mubr.f32.gmra.mrb[0].mxu0 %v2418
        %v2755 = vpop.f32.mrb[0].mxu0
        %v2756 = vadd.f32 0.0, %v2755
        %v2757 = vpop.f32.mrb[0].mxu0
        %2758 = vmatprep.mubr.f32.mxu0 0.0
        %2759 = vmatmul.mubr.f32.gmra.mrb[0].mxu0 %v2421
        %v2760 = vpop.f32.mrb[0].mxu0
        %v2761 = vadd.f32 0.0, %v2760
        %v2762 = vpop.f32.mrb[0].mxu0
        %2763 = vmatprep.mubr.f32.mxu0 0.0
        %2764 = vmatmul.mubr.f32.gmra.mrb[0].mxu0 %v2424
        %v2765 = vpop.f32.mrb[0].mxu0
        %v2766 = vadd.f32 0.0, %v2765
        %v2767 = vpop.f32.mrb[0].mxu0
        %2768 = vmatprep.mubr.f32.mxu0 0.0
        %2769 = vmatmul.mubr.f32.gmra.mrb[0].mxu0 %v2427
        %v2770 = vpop.f32.mrb[0].mxu0
        %v2771 = vadd.f32 0.0, %v2770
        %v2772 = vpop.f32.mrb[0].mxu0
        %2773 = vmatprep.mubr.f32.mxu0 0.0
        %2774 = vmatmul.mubr.f32.gmra.mrb[0].mxu0 %v2430
        %v2775 = vpop.f32.mrb[0].mxu0
        %v2776 = vadd.f32 0.0, %v2775
        %v2777 = vpop.f32.mrb[0].mxu0
        %2778 = vmatprep.mubr.f32.mxu0 0.0
        %2779 = vmatmul.mubr.f32.gmra.mrb[0].mxu0 %v2433
        %v2780 = vpop.f32.mrb[0].mxu0
        %v2781 = vadd.f32 0.0, %v2780
        %v2782 = vpop.f32.mrb[0].mxu0
        %2783 = vmatprep.mubr.f32.mxu0 0.0
        %2784 = vmatmul.mubr.f32.gmra.mrb[0].mxu0 %v2436
        %v2785 = vpop.f32.mrb[0].mxu0
        %v2786 = vadd.f32 0.0, %v2785
        %v2787 = vpop.f32.mrb[0].mxu0
        %2788 = vmatprep.mubr.f32.mxu0 0.0
        %2789 = vmatmul.mubr.f32.gmra.mrb[0].mxu0 %v2439
        %v2790 = vpop.f32.mrb[0].mxu0
        %v2791 = vadd.f32 0.0, %v2790
        %v2792 = vpop.f32.mrb[0].mxu0
        %2793 = vmatprep.mubr.f32.mxu0 0.0
        %2794 = vmatmul.mubr.f32.gmra.mrb[0].mxu0 %v2442
        %v2795 = vpop.f32.mrb[0].mxu0
        %v2796 = vadd.f32 0.0, %v2795
        %v2797 = vpop.f32.mrb[0].mxu0
        %2798 = vmatprep.mubr.f32.mxu0 0.0
        %2799 = vmatmul.mubr.f32.gmra.mrb[0].mxu0 %v2445
        %v2800 = vpop.f32.mrb[0].mxu0
        %v2801 = vadd.f32 0.0, %v2800
        %v2802 = vpop.f32.mrb[0].mxu0
        %2803 = vmatprep.mubr.f32.mxu0 0.0
        %2804 = vmatmul.mubr.f32.gmra.mrb[0].mxu0 %v2448
        %v2805 = vpop.f32.mrb[0].mxu0
        %v2806 = vadd.f32 0.0, %v2805
        %v2807 = vpop.f32.mrb[0].mxu0
        %2808 = vmatprep.mubr.f32.mxu0 0.0
        %2809 = vmatmul.mubr.f32.gmra.mrb[0].mxu0 %v2451
        %v2810 = vpop.f32.mrb[0].mxu0
        %v2811 = vadd.f32 0.0, %v2810
        %v2812 = vpop.f32.mrb[0].mxu0
        %2813 = vmatprep.mubr.f32.mxu0 0.0
        %2814 = vmatmul.mubr.f32.gmra.mrb[0].mxu0 %v2454
        %v2815 = vpop.f32.mrb[0].mxu0
        %v2816 = vadd.f32 0.0, %v2815
        %v2817 = vpop.f32.mrb[0].mxu0
        %2818 = vmatprep.mubr.f32.mxu0 0.0
        %2819 = vmatmul.mubr.f32.gmra.mrb[0].mxu0 %v2457
        %v2820 = vpop.f32.mrb[0].mxu0
        %v2821 = vadd.f32 0.0, %v2820
        %v2822 = vpop.f32.mrb[0].mxu0
        %2823 = vmatprep.mubr.f32.mxu0 0.0
        %2824 = vmatmul.mubr.f32.gmra.mrb[0].mxu0 %v2460
        %v2825 = vpop.f32.mrb[0].mxu0
        %v2826 = vadd.f32 0.0, %v2825
        %v2827 = vpop.f32.mrb[0].mxu0
        %2828 = vmatprep.mubr.f32.mxu0 0.0
        %2829 = vmatmul.mubr.f32.gmra.mrb[0].mxu0 %v2463
        %v2830 = vpop.f32.mrb[0].mxu0
        %v2831 = vadd.f32 0.0, %v2830
        %v2832 = vpop.f32.mrb[0].mxu0
        %2833 = vmatprep.mubr.f32.mxu0 0.0
        %2834 = vmatmul.mubr.f32.gmra.mrb[0].mxu0 %v2466
        %v2835 = vpop.f32.mrb[0].mxu0
        %v2836 = vadd.f32 0.0, %v2835
        %v2837 = vpop.f32.mrb[0].mxu0
        %2838 = vmatprep.mubr.f32.mxu0 0.0
        %2839 = vmatmul.mubr.f32.gmra.mrb[0].mxu0 %v2469
        %v2840 = vpop.f32.mrb[0].mxu0
        %v2841 = vadd.f32 0.0, %v2840
        %v2842 = vpop.f32.mrb[0].mxu0
        %2843 = vmatprep.mubr.f32.mxu0 0.0
        %2844 = vmatmul.mubr.f32.gmra.mrb[0].mxu0 %v2472
        %v2845 = vpop.f32.mrb[0].mxu0
        %v2846 = vadd.f32 0.0, %v2845
        %v2847 = vpop.f32.mrb[0].mxu0
        %2848 = vmatprep.mubr.f32.mxu0 0.0
        %2849 = vmatmul.mubr.f32.gmra.mrb[0].mxu0 %v2475
        %v2850 = vpop.f32.mrb[0].mxu0
        %v2851 = vadd.f32 0.0, %v2850
        %v2852 = vpop.f32.mrb[0].mxu0
        %2853 = vmatprep.mubr.f32.mxu0 0.0
        %2854 = vmatmul.mubr.f32.gmra.mrb[0].mxu0 %v2478
        %v2855 = vpop.f32.mrb[0].mxu0
        %v2856 = vadd.f32 0.0, %v2855
        %v2857 = vpop.f32.mrb[0].mxu0
        %2858 = vmatprep.mubr.f32.mxu0 0.0
        %2859 = vmatmul.mubr.f32.gmra.mrb[0].mxu0 %v2481
        %v2860 = vpop.f32.mrb[0].mxu0
        %v2861 = vadd.f32 0.0, %v2860
        %v2862 = vpop.f32.mrb[0].mxu0
        %2863 = vmatprep.mubr.f32.mxu0 0.0
        %2864 = vmatmul.mubr.f32.gmra.mrb[0].mxu0 %v2484
        %v2865 = vpop.f32.mrb[0].mxu0
        %v2866 = vadd.f32 0.0, %v2865
        %v2867 = vpop.f32.mrb[0].mxu0
        %2868 = vmatprep.mubr.f32.mxu0 0.0
        %2869 = vmatmul.mubr.f32.gmra.mrb[0].mxu0 %v2487
        %v2870 = vpop.f32.mrb[0].mxu0
        %v2871 = vadd.f32 0.0, %v2870
        %v2872 = vpop.f32.mrb[0].mxu0
        %2873 = vmatprep.mubr.f32.mxu0 0.0
        %2874 = vmatmul.mubr.f32.gmra.mrb[0].mxu0 %v2490
        %v2875 = vpop.f32.mrb[0].mxu0
        %v2876 = vadd.f32 0.0, %v2875
        %v2877 = vpop.f32.mrb[0].mxu0
        %2878 = vmatprep.mubr.f32.mxu0 0.0
        %2879 = vmatmul.mubr.f32.gmra.mrb[0].mxu0 %v2493
        %v2880 = vpop.f32.mrb[0].mxu0
        %v2881 = vadd.f32 0.0, %v2880
        %v2882 = vpop.f32.mrb[0].mxu0
        %2883 = vmatprep.mubr.f32.mxu0 0.0
        %2884 = vmatmul.mubr.f32.gmra.mrb[0].mxu0 %v2496
        %v2885 = vpop.f32.mrb[0].mxu0
        %v2886 = vadd.f32 0.0, %v2885
        %v2887 = vpop.f32.mrb[0].mxu0
        %2888 = vmatprep.mubr.f32.mxu0 0.0
        %2889 = vmatmul.mubr.f32.gmra.mrb[0].mxu0 %v2499
        %v2890 = vpop.f32.mrb[0].mxu0
        %v2891 = vadd.f32 0.0, %v2890
        %v2892 = vpop.f32.mrb[0].mxu0
        %2893 = vmatprep.mubr.f32.mxu0 0.0
        %2894 = vmatmul.mubr.f32.gmra.mrb[0].mxu0 %v2502
        %v2895 = vpop.f32.mrb[0].mxu0
        %v2896 = vadd.f32 0.0, %v2895
        %v2897 = vpop.f32.mrb[0].mxu0
        %2898 = vmatprep.mubr.f32.mxu0 0.0
        %2899 = vmatmul.mubr.f32.gmra.mrb[0].mxu0 %v2505
        %v2900 = vpop.f32.mrb[0].mxu0
        %v2901 = vadd.f32 0.0, %v2900
        %v2902 = vpop.f32.mrb[0].mxu0
        %2903 = vmatprep.mubr.f32.mxu0 0.0
        %2904 = vmatmul.mubr.f32.gmra.mrb[0].mxu0 %v2508
        %v2905 = vpop.f32.mrb[0].mxu0
        %v2906 = vadd.f32 0.0, %v2905
        %v2907 = vpop.f32.mrb[0].mxu0
        %2908 = vmatprep.mubr.f32.mxu0 0.0
        %2909 = vmatmul.mubr.f32.gmra.mrb[0].mxu0 %v2511
        %v2910 = vpop.f32.mrb[0].mxu0
        %v2911 = vadd.f32 0.0, %v2910
        %v2912 = vpop.f32.mrb[0].mxu0
        %2913 = vmatprep.mubr.f32.mxu0 0.0
        %2914 = vmatmul.mubr.f32.gmra.mrb[0].mxu0 %v2514
        %v2915 = vpop.f32.mrb[0].mxu0
        %v2916 = vadd.f32 0.0, %v2915
        %v2917 = vpop.f32.mrb[0].mxu0
        %2918 = vmatprep.mubr.f32.mxu0 0.0
        %2919 = vmatmul.mubr.f32.gmra.mrb[0].mxu0 %v2517
        %v2920 = vpop.f32.mrb[0].mxu0
        %v2921 = vadd.f32 0.0, %v2920
        %v2922 = vpop.f32.mrb[0].mxu0
        %2923 = vmatprep.mubr.f32.mxu0 0.0
        %2924 = vmatmul.mubr.f32.gmra.mrb[0].mxu0 %v2520
        %v2925 = vpop.f32.mrb[0].mxu0
        %v2926 = vadd.f32 0.0, %v2925
        %v2927 = vpop.f32.mrb[0].mxu0
        %2928 = vmatprep.mubr.f32.mxu0 0.0
        %2929 = vmatmul.mubr.f32.gmra.mrb[0].mxu0 %v2523
        %v2930 = vpop.f32.mrb[0].mxu0
        %v2931 = vadd.f32 0.0, %v2930
        %v2932 = vpop.f32.mrb[0].mxu0
        %2933 = vmatprep.mubr.f32.mxu0 0.0
        %2934 = vmatmul.mubr.f32.gmra.mrb[0].mxu0 %v2526
        %v2935 = vpop.f32.mrb[0].mxu0
        %v2936 = vadd.f32 0.0, %v2935
        %v2937 = vpop.f32.mrb[0].mxu0
        %2938 = vmatprep.mubr.f32.mxu0 0.0
        %2939 = vmatmul.mubr.f32.gmra.mrb[0].mxu0 %v2529
        %v2940 = vpop.f32.mrb[0].mxu0
        %v2941 = vadd.f32 0.0, %v2940
        %v2942 = vpop.f32.mrb[0].mxu0
        %2943 = vmatprep.mubr.f32.mxu0 0.0
        %2944 = vmatmul.mubr.f32.gmra.mrb[0].mxu0 %v2532
        %v2945 = vpop.f32.mrb[0].mxu0
        %v2946 = vadd.f32 0.0, %v2945
        %v2947 = vpop.f32.mrb[0].mxu0
        %2948 = vmatprep.mubr.f32.mxu0 0.0
        %2949 = vmatmul.mubr.f32.gmra.mrb[0].mxu0 %v2535
        %v2950 = vpop.f32.mrb[0].mxu0
        %v2951 = vadd.f32 0.0, %v2950
        %v2952 = vpop.f32.mrb[0].mxu0
        %2953 = vmatprep.mubr.f32.mxu0 0.0
        %2954 = vmatmul.mubr.f32.gmra.mrb[0].mxu0 %v2538
        %v2955 = vpop.f32.mrb[0].mxu0
        %v2956 = vadd.f32 0.0, %v2955
        %v2957 = vpop.f32.mrb[0].mxu0
        %2958 = vmatprep.mubr.f32.mxu0 0.0
        %2959 = vmatmul.mubr.f32.gmra.mrb[0].mxu0 %v2541
        %v2960 = vpop.f32.mrb[0].mxu0
        %v2961 = vadd.f32 0.0, %v2960
        %v2962 = vpop.f32.mrb[0].mxu0
        %2963 = vmatprep.mubr.f32.mxu0 0.0
        %2964 = vmatmul.mubr.f32.gmra.mrb[0].mxu0 %v2544
        %v2965 = vpop.f32.mrb[0].mxu0
        %v2966 = vadd.f32 0.0, %v2965
        %v2967 = vpop.f32.mrb[0].mxu0
        %2968 = vmatprep.mubr.f32.mxu0 0.0
        %2969 = vmatmul.mubr.f32.gmra.mrb[0].mxu0 %v2547
        %v2970 = vpop.f32.mrb[0].mxu0
        %v2971 = vadd.f32 0.0, %v2970
        %v2972 = vpop.f32.mrb[0].mxu0
        %2973 = vdwg.mxu0
        %v2974 = vadd.f32 %v2261, %v2616
        %v2975 = vadd.f32 %v2262, %v2621
        %v2976 = vadd.f32 %v2263, %v2626
        %v2977 = vadd.f32 %v2264, %v2631
        %v2978 = vadd.f32 %v2265, %v2636
        %v2979 = vadd.f32 %v2266, %v2641
        %v2980 = vadd.f32 %v2267, %v2646
        %v2981 = vadd.f32 %v2268, %v2651
        %v2982 = vadd.f32 %v2269, %v2656
        %v2983 = vadd.f32 %v2270, %v2661
        %v2984 = vadd.f32 %v2271, %v2666
        %v2985 = vadd.f32 %v2272, %v2671
        %v2986 = vadd.f32 %v2273, %v2676
        %v2987 = vadd.f32 %v2274, %v2681
        %v2988 = vadd.f32 %v2275, %v2686
        %v2989 = vadd.f32 %v2276, %v2691
        %v2990 = vadd.f32 %v2277, %v2696
        %v2991 = vadd.f32 %v2278, %v2701
        %v2992 = vadd.f32 %v2279, %v2706
        %v2993 = vadd.f32 %v2280, %v2711
        %v2994 = vadd.f32 %v2281, %v2716
        %v2995 = vadd.f32 %v2282, %v2721
        %v2996 = vadd.f32 %v2283, %v2726
        %v2997 = vadd.f32 %v2284, %v2731
        %v2998 = vadd.f32 %v2285, %v2736
        %v2999 = vadd.f32 %v2286, %v2741
        %v3000 = vadd.f32 %v2287, %v2746
        %v3001 = vadd.f32 %v2288, %v2751
        %v3002 = vadd.f32 %v2289, %v2756
        %v3003 = vadd.f32 %v2290, %v2761
        %v3004 = vadd.f32 %v2291, %v2766
        %v3005 = vadd.f32 %v2292, %v2771
        %v3006 = vadd.f32 %v2293, %v2776
        %v3007 = vadd.f32 %v2294, %v2781
        %v3008 = vadd.f32 %v2295, %v2786
        %v3009 = vadd.f32 %v2296, %v2791
        %v3010 = vadd.f32 %v2297, %v2796
        %v3011 = vadd.f32 %v2298, %v2801
        %v3012 = vadd.f32 %v2299, %v2806
        %v3013 = vadd.f32 %v2300, %v2811
        %v3014 = vadd.f32 %v2301, %v2816
        %v3015 = vadd.f32 %v2302, %v2821
        %v3016 = vadd.f32 %v2303, %v2826
        %v3017 = vadd.f32 %v2304, %v2831
        %v3018 = vadd.f32 %v2305, %v2836
        %v3019 = vadd.f32 %v2306, %v2841
        %v3020 = vadd.f32 %v2307, %v2846
        %v3021 = vadd.f32 %v2308, %v2851
        %v3022 = vadd.f32 %v2309, %v2856
        %v3023 = vadd.f32 %v2310, %v2861
        %v3024 = vadd.f32 %v2311, %v2866
        %v3025 = vadd.f32 %v2312, %v2871
        %v3026 = vadd.f32 %v2313, %v2876
        %v3027 = vadd.f32 %v2314, %v2881
        %v3028 = vadd.f32 %v2315, %v2886
        %v3029 = vadd.f32 %v2316, %v2891
        %v3030 = vadd.f32 %v2317, %v2896
        %v3031 = vadd.f32 %v2318, %v2901
        %v3032 = vadd.f32 %v2319, %v2906
        %v3033 = vadd.f32 %v2320, %v2911
        %v3034 = vadd.f32 %v2321, %v2916
        %v3035 = vadd.f32 %v2322, %v2921
        %v3036 = vadd.f32 %v2323, %v2926
        %v3037 = vadd.f32 %v2324, %v2931
        %v3038 = vadd.f32 %v2325, %v2936
        %v3039 = vadd.f32 %v2326, %v2941
        %v3040 = vadd.f32 %v2327, %v2946
        %v3041 = vadd.f32 %v2328, %v2951
        %v3042 = vadd.f32 %v2329, %v2956
        %v3043 = vadd.f32 %v2330, %v2961
        %v3044 = vadd.f32 %v2331, %v2966
        %v3045 = vadd.f32 %v2332, %v2971
        %v3047 = vlaneseq
        %v3048 = vshrl.u32 %v3047, 7
        %v3049 = vsub.s32 0, %v3048
        %v3050 = vrot.slane %v1543, %v3049
        %v3052 = vadd.f32 %v2974, %v3050
        %v3053 = vadd.f32 %v2975, %v3050
        %v3054 = vadd.f32 %v2976, %v3050
        %v3055 = vadd.f32 %v2977, %v3050
        %v3056 = vadd.f32 %v2978, %v3050
        %v3057 = vadd.f32 %v2979, %v3050
        %v3058 = vadd.f32 %v2980, %v3050
        %v3059 = vadd.f32 %v2981, %v3050
        %v3060 = vadd.f32 %v2982, %v3050
        %v3061 = vadd.f32 %v2983, %v3050
        %v3062 = vadd.f32 %v2984, %v3050
        %v3063 = vadd.f32 %v2985, %v3050
        %v3064 = vadd.f32 %v2986, %v3050
        %v3065 = vadd.f32 %v2987, %v3050
        %v3066 = vadd.f32 %v2988, %v3050
        %v3067 = vadd.f32 %v2989, %v3050
        %v3068 = vadd.f32 %v2990, %v3050
        %v3069 = vadd.f32 %v2991, %v3050
        %v3070 = vadd.f32 %v2992, %v3050
        %v3071 = vadd.f32 %v2993, %v3050
        %v3072 = vadd.f32 %v2994, %v3050
        %v3073 = vadd.f32 %v2995, %v3050
        %v3074 = vadd.f32 %v2996, %v3050
        %v3075 = vadd.f32 %v2997, %v3050
        %v3076 = vadd.f32 %v2998, %v3050
        %v3077 = vadd.f32 %v2999, %v3050
        %v3078 = vadd.f32 %v3000, %v3050
        %v3079 = vadd.f32 %v3001, %v3050
        %v3080 = vadd.f32 %v3002, %v3050
        %v3081 = vadd.f32 %v3003, %v3050
        %v3082 = vadd.f32 %v3004, %v3050
        %v3083 = vadd.f32 %v3005, %v3050
        %v3084 = vadd.f32 %v3006, %v3050
        %v3085 = vadd.f32 %v3007, %v3050
        %v3086 = vadd.f32 %v3008, %v3050
        %v3087 = vadd.f32 %v3009, %v3050
        %v3088 = vadd.f32 %v3010, %v3050
        %v3089 = vadd.f32 %v3011, %v3050
        %v3090 = vadd.f32 %v3012, %v3050
        %v3091 = vadd.f32 %v3013, %v3050
        %v3092 = vadd.f32 %v3014, %v3050
        %v3093 = vadd.f32 %v3015, %v3050
        %v3094 = vadd.f32 %v3016, %v3050
        %v3095 = vadd.f32 %v3017, %v3050
        %v3096 = vadd.f32 %v3018, %v3050
        %v3097 = vadd.f32 %v3019, %v3050
        %v3098 = vadd.f32 %v3020, %v3050
        %v3099 = vadd.f32 %v3021, %v3050
        %v3100 = vadd.f32 %v3022, %v3050
        %v3101 = vadd.f32 %v3023, %v3050
        %v3102 = vadd.f32 %v3024, %v3050
        %v3103 = vadd.f32 %v3025, %v3050
        %v3104 = vadd.f32 %v3026, %v3050
        %v3105 = vadd.f32 %v3027, %v3050
        %v3106 = vadd.f32 %v3028, %v3050
        %v3107 = vadd.f32 %v3029, %v3050
        %v3108 = vadd.f32 %v3030, %v3050
        %v3109 = vadd.f32 %v3031, %v3050
        %v3110 = vadd.f32 %v3032, %v3050
        %v3111 = vadd.f32 %v3033, %v3050
        %v3112 = vadd.f32 %v3034, %v3050
        %v3113 = vadd.f32 %v3035, %v3050
        %v3114 = vadd.f32 %v3036, %v3050
        %v3115 = vadd.f32 %v3037, %v3050
        %v3116 = vadd.f32 %v3038, %v3050
        %v3117 = vadd.f32 %v3039, %v3050
        %v3118 = vadd.f32 %v3040, %v3050
        %v3119 = vadd.f32 %v3041, %v3050
        %v3120 = vadd.f32 %v3042, %v3050
        %v3121 = vadd.f32 %v3043, %v3050
        %v3122 = vadd.f32 %v3044, %v3050
        %v3123 = vadd.f32 %v3045, %v3050
        %3124 = vst [vmem:[%s463] sm:$0xff] %v3052
        %3125 = vst [vmem:[%s463 + $0x8] sm:$0xff] %v3053
        %3126 = vst [vmem:[%s463 + $0x10] sm:$0xff] %v3054
        %3127 = vst [vmem:[%s463 + $0x18] sm:$0xff] %v3055
        %3128 = vst [vmem:[%s463 + $0x20] sm:$0xff] %v3056
        %3129 = vst [vmem:[%s463 + $0x28] sm:$0xff] %v3057
        %3130 = vst [vmem:[%s463 + $0x30] sm:$0xff] %v3058
        %3131 = vst [vmem:[%s463 + $0x38] sm:$0xff] %v3059
        %3132 = vst [vmem:[%s463 + $0x40] sm:$0xff] %v3060
        %3133 = vst [vmem:[%s463 + $0x48] sm:$0xff] %v3061
        %3134 = vst [vmem:[%s463 + $0x50] sm:$0xff] %v3062
        %3135 = vst [vmem:[%s463 + $0x58] sm:$0xff] %v3063
        %3136 = vst [vmem:[%s463 + $0x60] sm:$0xff] %v3064
        %3137 = vst [vmem:[%s463 + $0x68] sm:$0xff] %v3065
        %3138 = vst [vmem:[%s463 + $0x70] sm:$0xff] %v3066
        %3139 = vst [vmem:[%s463 + $0x78] sm:$0xff] %v3067
        %3140 = vst [vmem:[%s463 + $0x80] sm:$0xff] %v3068
        %3141 = vst [vmem:[%s463 + $0x88] sm:$0xff] %v3069
        %3142 = vst [vmem:[%s463 + $0x90] sm:$0xff] %v3070
        %3143 = vst [vmem:[%s463 + $0x98] sm:$0xff] %v3071
        %3144 = vst [vmem:[%s463 + $0xa0] sm:$0xff] %v3072
        %3145 = vst [vmem:[%s463 + $0xa8] sm:$0xff] %v3073
        %3146 = vst [vmem:[%s463 + $0xb0] sm:$0xff] %v3074
        %3147 = vst [vmem:[%s463 + $0xb8] sm:$0xff] %v3075
        %3148 = vst [vmem:[%s463 + $0xc0] sm:$0xff] %v3076
        %3149 = vst [vmem:[%s463 + $0xc8] sm:$0xff] %v3077
        %3150 = vst [vmem:[%s463 + $0xd0] sm:$0xff] %v3078
        %3151 = vst [vmem:[%s463 + $0xd8] sm:$0xff] %v3079
        %3152 = vst [vmem:[%s463 + $0xe0] sm:$0xff] %v3080
        %3153 = vst [vmem:[%s463 + $0xe8] sm:$0xff] %v3081
        %3154 = vst [vmem:[%s463 + $0xf0] sm:$0xff] %v3082
        %3155 = vst [vmem:[%s463 + $0xf8] sm:$0xff] %v3083
        %3156 = vst [vmem:[%s463 + $0x100] sm:$0xff] %v3084
        %3157 = vst [vmem:[%s463 + $0x108] sm:$0xff] %v3085
        %3158 = vst [vmem:[%s463 + $0x110] sm:$0xff] %v3086
        %3159 = vst [vmem:[%s463 + $0x118] sm:$0xff] %v3087
        %3160 = vst [vmem:[%s463 + $0x120] sm:$0xff] %v3088
        %3161 = vst [vmem:[%s463 + $0x128] sm:$0xff] %v3089
        %3162 = vst [vmem:[%s463 + $0x130] sm:$0xff] %v3090
        %3163 = vst [vmem:[%s463 + $0x138] sm:$0xff] %v3091
        %3164 = vst [vmem:[%s463 + $0x140] sm:$0xff] %v3092
        %3165 = vst [vmem:[%s463 + $0x148] sm:$0xff] %v3093
        %3166 = vst [vmem:[%s463 + $0x150] sm:$0xff] %v3094
        %3167 = vst [vmem:[%s463 + $0x158] sm:$0xff] %v3095
        %3168 = vst [vmem:[%s463 + $0x160] sm:$0xff] %v3096
        %3169 = vst [vmem:[%s463 + $0x168] sm:$0xff] %v3097
        %3170 = vst [vmem:[%s463 + $0x170] sm:$0xff] %v3098
        %3171 = vst [vmem:[%s463 + $0x178] sm:$0xff] %v3099
        %3172 = vst [vmem:[%s463 + $0x180] sm:$0xff] %v3100
        %3173 = vst [vmem:[%s463 + $0x188] sm:$0xff] %v3101
        %3174 = vst [vmem:[%s463 + $0x190] sm:$0xff] %v3102
        %3175 = vst [vmem:[%s463 + $0x198] sm:$0xff] %v3103
        %3176 = vst [vmem:[%s463 + $0x1a0] sm:$0xff] %v3104
        %3177 = vst [vmem:[%s463 + $0x1a8] sm:$0xff] %v3105
        %3178 = vst [vmem:[%s463 + $0x1b0] sm:$0xff] %v3106
        %3179 = vst [vmem:[%s463 + $0x1b8] sm:$0xff] %v3107
        %3180 = vst [vmem:[%s463 + $0x1c0] sm:$0xff] %v3108
        %3181 = vst [vmem:[%s463 + $0x1c8] sm:$0xff] %v3109
        %3182 = vst [vmem:[%s463 + $0x1d0] sm:$0xff] %v3110
        %3183 = vst [vmem:[%s463 + $0x1d8] sm:$0xff] %v3111
        %3184 = vst [vmem:[%s463 + $0x1e0] sm:$0xff] %v3112
        %3185 = vst [vmem:[%s463 + $0x1e8] sm:$0xff] %v3113
        %3186 = vst [vmem:[%s463 + $0x1f0] sm:$0xff] %v3114
        %3187 = vst [vmem:[%s463 + $0x1f8] sm:$0xff] %v3115
        %3188 = vst [vmem:[%s463 + $0x200] sm:$0xff] %v3116
        %3189 = vst [vmem:[%s463 + $0x208] sm:$0xff] %v3117
        %3190 = vst [vmem:[%s463 + $0x210] sm:$0xff] %v3118
        %3191 = vst [vmem:[%s463 + $0x218] sm:$0xff] %v3119
        %3192 = vst [vmem:[%s463 + $0x220] sm:$0xff] %v3120
        %3193 = vst [vmem:[%s463 + $0x228] sm:$0xff] %v3121
        %3194 = vst [vmem:[%s463 + $0x230] sm:$0xff] %v3122
        %3195 = vst [vmem:[%s463 + $0x238] sm:$0xff] %v3123
        %s3196 = sand.u32 %s323, 1
        %s3197 = scalar_lea.sflag [#allocation3], %s3196
        %s3198 = sand.u32 %s323, 1
        %s3199 = smul.addr %s3198, 576
        %s3200 = scalar_lea.vmem [#allocation2], %s3199
        // Predicated region
        $region73: #{tpu_custom_call.1} parent=71 // pred_check
          %p3201 = pneg %p333
        $region74: #{tpu_custom_call.1} parent=71 // pred_check_branch
          %3203 = sbr.rel (%p3201) target = $region76
        $region75: #{tpu_custom_call.1} parent=71 // pred_region
          %s3205 = ssub.s32 9216, 9216
          %3206 = vsyncadd %s3197, %s3205
          %s3207 = smul.addr %s27, 72
          %s3208 = smul.addr %s3207, 128
          %s3209 = scalar_lea.hbm %s13, %s3208
          %s3210 = sshll.u32 %s3200, 4
          %s3211 = int_to_ptr.vmem [resolvable:$true] %s3210
          %3216 = dma.vmem_to_hbm [thread:$0]  %s3211, 9216, %s3209, %s3197, 128, 128, 8
        $region76: #{tpu_custom_call.1} parent=71 // pred_fallthru
          _
      $region72: #{tpu_custom_call.1} parent=5 // pred_fallthru
        _
      %p3217 = scmp.le.s32.totalorder 2, %s22
      // Predicated region
      $region77: #{tpu_custom_call.1} parent=5 // pred_check
        %p3218 = pneg %p3217
      $region78: #{tpu_custom_call.1} parent=5 // pred_check_branch
        %3220 = sbr.rel (%p3218) target = $region80
      $region79: #{tpu_custom_call.1} parent=5 // pred_region
        %s3221 = ssub.s32 %s22, 2
        // Predicated region
        $region81: #{tpu_custom_call.1} parent=79 // pred_check
          %p3222 = pneg %p339
        $region82: #{tpu_custom_call.1} parent=79 // pred_check_branch
          %3224 = sbr.rel (%p3222) target = $region84
        $region83: #{tpu_custom_call.1} parent=79 // pred_region
          %s3225 = sand.u32 %s324, 1
          %s3226 = scalar_lea.sflag [#allocation3], %s3225
          %s3227 = sand.u32 %s324, 1
          %s3228 = smul.addr %s3227, 576
          %s3229 = scalar_lea.vmem [#allocation2], %s3228
          %3230 = dma.done %s3226, 9216
        $region84: #{tpu_custom_call.1} parent=79 // pred_fallthru
          _
      $region80: #{tpu_custom_call.1} parent=5 // pred_fallthru
        _
    $region6: #{tpu_custom_call.1} parent=1 // loop_footer
      %s26 = sadd.s32 1, %s22
    $region7: #{tpu_custom_call.1} parent=1 // loop_footer_branch
      %21 = sbr.rel target = $region3
    $region8: #{tpu_custom_call.1} parent=1 // loop_exit
      _
    %3231 = vsyncpa [#allocation3], 1
    %s3232 = scalar_lea.sflag [#allocation3], 1
    %3233 = vsyncpa %s3232, 1

</llo_original>
